<compile_context>
chip_gen: v7x
topology: tpu7x:2x2x1
jax: 0.10.0
libtpu: 0.0.40
codegen_flags: <defaults>
</compile_context>

<pallas_src>
import functools

import jax
import jax.numpy as jnp
from jax.experimental import pallas as pl
from jax.experimental.pallas import tpu as pltpu

EPS = 1e-5          # nn.BatchNorm2d default eps
LANE = 128
SUBLANE = 8


def _round_up(x, m):
    return (x + m - 1) // m * m


def _vmem_limit_bytes():
    """Explicit scoped-VMEM limit sized per chip generation (v5e/v6e: 128MiB
    physical -> 96MiB; v7x: 64MiB physical -> 48MiB)."""
    try:
        cap = pltpu.get_tpu_info().vmem_capacity_bytes
    except Exception:  # pragma: no cover - conservative fallback
        cap = 64 * 1024 * 1024
    return int(max(min(cap * 3 // 4, 96 * 1024 * 1024), 32 * 1024 * 1024))


def _compiler_params():
    return pltpu.CompilerParams(
        dimension_semantics=("parallel",),      # every grid step is independent
        vmem_limit_bytes=_vmem_limit_bytes())


# ----------------------------- Pallas kernels -------------------------------

def _store_stats(st_ref, acc, mask):
    """Per-tile masked per-channel sum / sum-of-squares partials (f32)."""
    ym = acc * mask
    s = jnp.sum(ym, axis=0, keepdims=True)
    q = jnp.sum(ym * acc, axis=0, keepdims=True)
    st_ref[0, 0:1, :] = s
    st_ref[0, 1:2, :] = q
    st_ref[0, 2:, :] = jnp.zeros((6, acc.shape[1]), jnp.float32)


def conv3x3_taps_stats_kernel(band_ref, w_ref, mask_ref, y_ref, st_ref, *,
                              wop, halo):
    """3x3 stride-1 conv on the flattened padded grid: 9 shifted matmuls of the
    band against resident per-tap weights, f32 accumulation, bf16 y store,
    per-tile masked BN-stat partials."""
    block_m, _ = y_ref.shape
    acc = None
    for ky in range(3):
        for kx in range(3):
            start = halo + (ky - 1) * wop + (kx - 1)
            a = band_ref[0, pl.ds(start, block_m), :]
            part = jnp.dot(a, w_ref[3 * ky + kx],
                           preferred_element_type=jnp.float32)
            acc = part if acc is None else acc + part
    y_ref[...] = acc.astype(y_ref.dtype)
    _store_stats(st_ref, acc, mask_ref[...])


def matmul_stats_kernel(a_ref, w_ref, mask_ref, y_ref, st_ref):
    """Tiled matmul (im2col fallback for strided conv1) + masked stat partials."""
    acc = jnp.dot(a_ref[...], w_ref[...], preferred_element_type=jnp.float32)
    y_ref[...] = acc.astype(y_ref.dtype)
    _store_stats(st_ref, acc, mask_ref[...])


def matmul_stats_only_kernel(a_ref, w_ref, mask_ref, st_ref):
    """Projection shortcut pass 1: only the BN stats are needed (ys is
    recomputed in the fused final pass, never stored)."""
    acc = jnp.dot(a_ref[...], w_ref[...], preferred_element_type=jnp.float32)
    _store_stats(st_ref, acc, mask_ref[...])


def bn_relu_mask_kernel(y_ref, a_ref, mask_ref, o_ref):
    """y*scale+shift -> ReLU -> zero out pad/garbage rows (conv2 padding)."""
    y = y_ref[...].astype(jnp.float32)
    o = jnp.maximum(y * a_ref[0:1, :] + a_ref[1:2, :], 0.0) * mask_ref[...]
    o_ref[...] = o.astype(o_ref.dtype)


def bn_add_relu_kernel(y_ref, a_ref, r_ref, o_ref):
    """BN2 + identity residual + ReLU."""
    y = y_ref[...].astype(jnp.float32)
    o = jnp.maximum(y * a_ref[0:1, :] + a_ref[1:2, :]
                    + r_ref[...].astype(jnp.float32), 0.0)
    o_ref[...] = o.astype(o_ref.dtype)


def bn_add_proj_relu_kernel(y_ref, a2_ref, xs_ref, ws_ref, as_ref, o_ref):
    """BN2 + (recomputed 1x1-projection shortcut + its BN) + ReLU."""
    y = y_ref[...].astype(jnp.float32)
    ys = jnp.dot(xs_ref[...], ws_ref[...], preferred_element_type=jnp.float32)
    o = jnp.maximum(y * a2_ref[0:1, :] + a2_ref[1:2, :]
                    + ys * as_ref[0:1, :] + as_ref[1:2, :], 0.0)
    o_ref[...] = o.astype(o_ref.dtype)


# --------------------------- pallas_call wrappers ----------------------------

def _row_spec(block_m, cols):
    return pl.BlockSpec((block_m, cols), lambda i: (i, 0))


def _full_spec(shape):
    nd = len(shape)
    return pl.BlockSpec(shape, lambda i, _n=nd: (0,) * _n)


def _stat_spec(cp):
    return pl.BlockSpec((1, 8, cp), lambda i: (i, 0, 0))


def conv3x3_flat(bands, w_taps, mask, *, wop, halo, block_m, cp):
    n_tiles, band_len, cin_p = bands.shape
    mp = n_tiles * block_m
    kern = functools.partial(conv3x3_taps_stats_kernel, wop=wop, halo=halo)
    cost = pl.CostEstimate(
        flops=2 * mp * 9 * cin_p * cp, transcendentals=0,
        bytes_accessed=int(bands.size * 2 + w_taps.size * 2 +
                           mp * cp * 2 + n_tiles * 8 * cp * 4 + mask.size * 4))
    return pl.pallas_call(
        kern,
        out_shape=(jax.ShapeDtypeStruct((mp, cp), jnp.bfloat16),
                   jax.ShapeDtypeStruct((n_tiles, 8, cp), jnp.float32)),
        grid=(n_tiles,),
        in_specs=[pl.BlockSpec((1, band_len, cin_p), lambda i: (i, 0, 0)),
                  _full_spec((9, cin_p, cp)),
                  _row_spec(block_m, 1)],
        out_specs=(_row_spec(block_m, cp), _stat_spec(cp)),
        compiler_params=_compiler_params(),
        cost_estimate=cost,
    )(bands, w_taps, mask)


def matmul_stats(a, wmat, mask, *, block_m, cp):
    mp, kp = a.shape
    n_tiles = mp // block_m
    cost = pl.CostEstimate(
        flops=2 * mp * kp * cp, transcendentals=0,
        bytes_accessed=int(a.size * 2 + wmat.size * 2 + mp * cp * 2))
    return pl.pallas_call(
        matmul_stats_kernel,
        out_shape=(jax.ShapeDtypeStruct((mp, cp), jnp.bfloat16),
                   jax.ShapeDtypeStruct((n_tiles, 8, cp), jnp.float32)),
        grid=(n_tiles,),
        in_specs=[_row_spec(block_m, kp), _full_spec((kp, cp)),
                  _row_spec(block_m, 1)],
        out_specs=(_row_spec(block_m, cp), _stat_spec(cp)),
        compiler_params=_compiler_params(),
        cost_estimate=cost,
    )(a, wmat, mask)


def matmul_stats_only(a, wmat, mask, *, block_m, cp):
    mp, kp = a.shape
    n_tiles = mp // block_m
    return pl.pallas_call(
        matmul_stats_only_kernel,
        out_shape=jax.ShapeDtypeStruct((n_tiles, 8, cp), jnp.float32),
        grid=(n_tiles,),
        in_specs=[_row_spec(block_m, kp), _full_spec((kp, cp)),
                  _row_spec(block_m, 1)],
        out_specs=_stat_spec(cp),
        compiler_params=_compiler_params(),
    )(a, wmat, mask)


def bn_relu_mask(y, a_fold, mask, *, block_m):
    mp, cp = y.shape
    return pl.pallas_call(
        bn_relu_mask_kernel,
        out_shape=jax.ShapeDtypeStruct((mp, cp), jnp.bfloat16),
        grid=(mp // block_m,),
        in_specs=[_row_spec(block_m, cp), _full_spec((2, cp)),
                  _row_spec(block_m, 1)],
        out_specs=_row_spec(block_m, cp),
        compiler_params=_compiler_params(),
    )(y, a_fold, mask)


def bn_add_relu(y, a_fold, res, *, block_m):
    mp, cp = y.shape
    return pl.pallas_call(
        bn_add_relu_kernel,
        out_shape=jax.ShapeDtypeStruct((mp, cp), jnp.float32),
        grid=(mp // block_m,),
        in_specs=[_row_spec(block_m, cp), _full_spec((2, cp)),
                  _row_spec(block_m, cp)],
        out_specs=_row_spec(block_m, cp),
        compiler_params=_compiler_params(),
    )(y, a_fold, res)


def bn_add_proj_relu(y, a2_fold, xs, wmat, as_fold, *, block_m):
    mp, cp = y.shape
    cin_p = xs.shape[1]
    return pl.pallas_call(
        bn_add_proj_relu_kernel,
        out_shape=jax.ShapeDtypeStruct((mp, cp), jnp.float32),
        grid=(mp // block_m,),
        in_specs=[_row_spec(block_m, cp), _full_spec((2, cp)),
                  _row_spec(block_m, cin_p), _full_spec((cin_p, cp)),
                  _full_spec((2, cp))],
        out_specs=_row_spec(block_m, cp),
        compiler_params=_compiler_params(),
    )(y, a2_fold, xs, wmat, as_fold)


# ------------------------------ JAX glue -------------------------------------

def _flatten_pad_grid(x_nhwc, cpad, mp, dtype):
    """Zero-pad spatially by 1, flatten per image to (Hp*Wp) rows, pad rows to
    mp and channels to cpad (single fused producer, cast once)."""
    n, h, w, c = x_nhwc.shape
    xp = jnp.pad(x_nhwc.astype(dtype), ((0, 0), (1, 1), (1, 1), (0, 0)))
    flat = xp.reshape(n * (h + 2) * (w + 2), c)
    return jnp.pad(flat, ((0, mp - flat.shape[0]), (0, cpad - c)))


def _make_bands(flat, block_m, halo, dtype):
    """Overlapping row bands (tile + halo) of the flattened padded grid.
    TODO(synk): replace with in-kernel halo DMA at scale."""
    mp, c = flat.shape
    n_tiles = mp // block_m
    band_len = block_m + 2 * halo
    pieces = []
    for t in range(n_tiles):
        lo = t * block_m - halo
        hi = lo + band_len
        lo_c, hi_c = max(lo, 0), min(hi, mp)
        seg = jax.lax.slice(flat, (lo_c, 0), (hi_c, c)).astype(dtype)
        parts = []
        if lo_c > lo:
            parts.append(jnp.zeros((lo_c - lo, c), dtype))
        parts.append(seg)
        if hi > hi_c:
            parts.append(jnp.zeros((hi - hi_c, c), dtype))
        pieces.append(jnp.concatenate(parts, axis=0) if len(parts) > 1 else seg)
    return jnp.stack(pieces, axis=0)


def _make_mask(n, hop, wop, ho, wo, mp):
    """1.0 on interior (valid output) rows of the flattened padded grid."""
    r = jnp.arange(mp)
    m_flat = n * hop * wop
    rem = r % (hop * wop)
    hh = rem // wop
    ww = rem % wop
    valid = (r < m_flat) & (hh >= 1) & (hh <= ho) & (ww >= 1) & (ww <= wo)
    return valid.astype(jnp.float32).reshape(mp, 1)


def _im2col_padded_grid(x_nhwc, stride, hop, wop, kpad, mp):
    """im2col fallback for strided conv1, laid out on the PADDED output grid
    (garbage rows at pad positions are masked downstream).  x is cast to bf16
    once; K/channel padding is folded into the concat."""
    n, h, w, c = x_nhwc.shape
    pad = stride + 1
    xp = jnp.pad(x_nhwc.astype(jnp.bfloat16),
                 ((0, 0), (pad, pad), (pad, pad), (0, 0)))
    cols = []
    for ky in range(3):
        for kx in range(3):
            patch = jax.lax.slice(
                xp, (0, ky, kx, 0),
                (n, ky + (hop - 1) * stride + 1, kx + (wop - 1) * stride + 1, c),
                (1, stride, stride, 1))
            cols.append(patch)
    if kpad > 9 * c:
        cols.append(jnp.zeros((n, hop, wop, kpad - 9 * c), jnp.bfloat16))
    a = jnp.concatenate(cols, axis=-1).reshape(n * hop * wop, kpad)
    return jnp.pad(a, ((0, mp - a.shape[0]), (0, 0)))


def _w3x3_taps(w_oihw, cin_p, cp):
    cout, cin = w_oihw.shape[0], w_oihw.shape[1]
    wt = jnp.transpose(w_oihw, (2, 3, 1, 0)).reshape(9, cin, cout)
    wt = jnp.pad(wt, ((0, 0), (0, cin_p - cin), (0, cp - cout)))
    return wt.astype(jnp.bfloat16)


def _w3x3_mat(w_oihw, kpad, cp):
    cout, cin = w_oihw.shape[0], w_oihw.shape[1]
    wm = jnp.transpose(w_oihw, (2, 3, 1, 0)).reshape(9 * cin, cout)
    wm = jnp.pad(wm, ((0, kpad - 9 * cin), (0, cp - cout)))
    return wm.astype(jnp.bfloat16)


def _w1x1_mat(w_oihw, cin_p, cp):
    cout, cin = w_oihw.shape[0], w_oihw.shape[1]
    wm = w_oihw.reshape(cout, cin).T
    wm = jnp.pad(wm, ((0, cin_p - cin), (0, cp - cout)))
    return wm.astype(jnp.bfloat16)


def _fold_bn(st_partials, gamma, beta, inv_m, cp):
    """Reduce per-tile stat partials and fold training-mode BN into (scale, shift).
    Note: E[x^2]-E[x]^2 in f32; fine at these scales (see review note)."""
    tot = jnp.sum(st_partials, axis=0)            # (8, cp)
    s, q = tot[0], tot[1]
    mean = s * inv_m
    var = jnp.maximum(q * inv_m - mean * mean, 0.0)
    g = jnp.pad(gamma.astype(jnp.float32), (0, cp - gamma.shape[0]))
    b = jnp.pad(beta.astype(jnp.float32), (0, cp - beta.shape[0]))
    scale = g * jax.lax.rsqrt(var + EPS)
    shift = b - mean * scale
    return jnp.stack([scale, shift], axis=0)      # (2, cp) f32


def _pick_block_m(block_m, m_flat):
    block_m = max(16, (block_m // 16) * 16)       # bf16 sublane packing
    block_m = min(block_m, _round_up(m_flat, 16))
    # prefer >=2 grid steps (pipelining / v7x megacore) when the problem allows
    if m_flat > 256 and _round_up(m_flat, block_m) // block_m < 2:
        block_m = _round_up(pl.cdiv(m_flat, 2), 16)
    return block_m


def basic_block(x_nchw, params, stride, *, block_m=512):
    """Forward pass of BasicBlock (training-mode BN). NCHW in / NCHW out."""
    x = jnp.transpose(x_nchw, (0, 2, 3, 1)).astype(jnp.float32)   # NHWC
    n, h, w, cin = x.shape
    cout = params["w1"].shape[0]
    ho = (h - 1) // stride + 1
    wo = (w - 1) // stride + 1
    hop, wop = ho + 2, wo + 2
    m_flat = n * hop * wop                      # flattened padded output grid
    cin_p = _round_up(cin, LANE)
    cp = _round_up(cout, LANE)

    block_m = _pick_block_m(block_m, m_flat)
    mp = _round_up(m_flat, block_m)
    halo = _round_up(wop + 1, SUBLANE)
    inv_m = 1.0 / (n * ho * wo)

    mask = _make_mask(n, hop, wop, ho, wo, mp)
    use_proj = (stride != 1) or (cin != cout)

    # ---- conv1 (pass 1: conv + global BN stat partials) ----
    flat_x = None
    if stride == 1:
        res_dtype = jnp.bfloat16 if use_proj else jnp.float32
        flat_x = _flatten_pad_grid(x, cin_p, mp, res_dtype)
        bands1 = _make_bands(flat_x, block_m, halo, jnp.bfloat16)
        w1t = _w3x3_taps(params["w1"], cin_p, cp)
        y1, st1 = conv3x3_flat(bands1, w1t, mask, wop=wop, halo=halo,
                               block_m=block_m, cp=cp)
    else:
        # TODO(synk): strided conv1 still goes through an output-grid im2col.
        kp = _round_up(9 * cin, LANE)
        a1 = _im2col_padded_grid(x, stride, hop, wop, kp, mp)
        w1m = _w3x3_mat(params["w1"], kp, cp)
        y1, st1 = matmul_stats(a1, w1m, mask, block_m=block_m, cp=cp)

    a1_fold = _fold_bn(st1, params["g1"], params["b1"], inv_m, cp)
    out1 = bn_relu_mask(y1, a1_fold, mask, block_m=block_m)   # bf16, pad rows = 0

    # ---- conv2 (always stride-1, 9-tap flattened-grid matmuls) ----
    bands2 = _make_bands(out1, block_m, halo, jnp.bfloat16)
    w2t = _w3x3_taps(params["w2"], cp, cp)
    y2, st2 = conv3x3_flat(bands2, w2t, mask, wop=wop, halo=halo,
                           block_m=block_m, cp=cp)
    a2_fold = _fold_bn(st2, params["g2"], params["b2"], inv_m, cp)

    # ---- shortcut + BN2 + add + ReLU ----
    if use_proj:
        wsm = _w1x1_mat(params["ws"], cin_p, cp)
        if stride == 1:
            xs_flat = flat_x                    # 1x1 stride-1 projection reads x
        else:
            xs_flat = _flatten_pad_grid(x[:, ::stride, ::stride, :], cin_p, mp,
                                        jnp.bfloat16)
        sts = matmul_stats_only(xs_flat, wsm, mask, block_m=block_m, cp=cp)
        as_fold = _fold_bn(sts, params["gs"], params["bs"], inv_m, cp)
        out = bn_add_proj_relu(y2, a2_fold, xs_flat, wsm, as_fold,
                               block_m=block_m)
    else:
        out = bn_add_relu(y2, a2_fold, flat_x, block_m=block_m)

    out = out[:m_flat].reshape(n, hop, wop, cp)[:, 1:ho + 1, 1:wo + 1, :cout]
    return jnp.transpose(out, (0, 3, 1, 2))        # back to NCHW


# --------------------------- pure-JAX reference -------------------------------

def _ref_conv(x_nhwc, w_oihw, stride, pad):
    w_hwio = jnp.transpose(w_oihw, (2, 3, 1, 0)).astype(jnp.bfloat16)
    return jax.lax.conv_general_dilated(
        x_nhwc.astype(jnp.bfloat16), w_hwio, (stride, stride),
        ((pad, pad), (pad, pad)),
        dimension_numbers=("NHWC", "HWIO", "NHWC"),
        preferred_element_type=jnp.float32)


def _ref_bn(y, g, b):
    m = jnp.mean(y, axis=(0, 1, 2), keepdims=True)
    v = jnp.mean(jnp.square(y - m), axis=(0, 1, 2), keepdims=True)
    return (y - m) * jax.lax.rsqrt(v + EPS) * g + b


def ref_basic_block(x_nchw, params, stride):
    x = jnp.transpose(x_nchw, (0, 2, 3, 1)).astype(jnp.float32)
    cin = x.shape[-1]
    cout = params["w1"].shape[0]
    out = jax.nn.relu(_ref_bn(_ref_conv(x, params["w1"], stride, 1),
                              params["g1"], params["b1"]))
    out = _ref_bn(_ref_conv(out, params["w2"], 1, 1), params["g2"], params["b2"])
    if stride != 1 or cin != cout:
        sc = _ref_bn(_ref_conv(x, params["ws"], stride, 0),
                     params["gs"], params["bs"])
    else:
        sc = x
    out = jax.nn.relu(out + sc)
    return jnp.transpose(out, (0, 3, 1, 2))


# --------------------------------- main ---------------------------------------

if __name__ == "__main__":
    def make_params(key, cin, cout):
        ks = jax.random.split(key, 9)
        return {
            "w1": 0.1 * jax.random.normal(ks[0], (cout, cin, 3, 3), jnp.float32),
            "g1": 1.0 + 0.1 * jax.random.normal(ks[1], (cout,), jnp.float32),
            "b1": 0.1 * jax.random.normal(ks[2], (cout,), jnp.float32),
            "w2": 0.1 * jax.random.normal(ks[3], (cout, cout, 3, 3), jnp.float32),
            "g2": 1.0 + 0.1 * jax.random.normal(ks[4], (cout,), jnp.float32),
            "b2": 0.1 * jax.random.normal(ks[5], (cout,), jnp.float32),
            "ws": 0.1 * jax.random.normal(ks[6], (cout, cin, 1, 1), jnp.float32),
            "gs": 1.0 + 0.1 * jax.random.normal(ks[7], (cout,), jnp.float32),
            "bs": 0.1 * jax.random.normal(ks[8], (cout,), jnp.float32),
        }

    key = jax.random.PRNGKey(0)
    k_par, k_x = jax.random.split(key)

    # Case 1: projection shortcut (Cin != Cout), stride 2 (im2col fallback path).
    N, Cin, H, W, Cout, stride = 2, 4, 16, 16, 8, 2
    params = make_params(k_par, Cin, Cout)
    x = jax.random.normal(k_x, (N, Cin, H, W), jnp.float32)
    fwd = jax.jit(functools.partial(basic_block, stride=stride, block_m=128))
    out = jax.block_until_ready(fwd(x, params))
    ref = jax.block_until_ready(ref_basic_block(x, params, stride))
    assert out.shape == (N, Cout, H // stride, W // stride), out.shape
    assert jnp.allclose(out, ref, atol=3e-2, rtol=3e-2), \
        float(jnp.max(jnp.abs(out - ref)))

    # Case 2: identity shortcut (Cin == Cout, stride 1) -> 9-tap flat-grid path,
    # multi-tile grid (6 tiles at block_m=128).
    N2, C2 = 2, 8
    params2 = make_params(jax.random.PRNGKey(2), C2, C2)
    x2 = jax.random.normal(jax.random.PRNGKey(3), (N2, C2, H, W), jnp.float32)
    fwd2 = jax.jit(functools.partial(basic_block, stride=1, block_m=128))
    out2 = jax.block_until_ready(fwd2(x2, params2))
    ref2 = jax.block_until_ready(ref_basic_block(x2, params2, 1))
    assert out2.shape == (N2, C2, H, W), out2.shape
    assert jnp.allclose(out2, ref2, atol=3e-2, rtol=3e-2), \
        float(jnp.max(jnp.abs(out2 - ref2)))

    print("KERNEL_OK")
</pallas_src>

<mosaic_0001>
module attributes {stable_mosaic.version = 11 : i64} {
  func.func @matmul_stats_kernel(%arg0: i32, %arg1: memref<128x128xbf16, #tpu.memory_space<vmem>>, %arg2: memref<128x128xbf16, #tpu.memory_space<vmem>>, %arg3: memref<128x1xf32, #tpu.memory_space<vmem>>, %arg4: memref<128x128xbf16, #tpu.memory_space<vmem>>, %arg5: memref<1x8x128xf32, #tpu.memory_space<vmem>>) attributes {dimension_semantics = [#tpu.dimension_semantics<parallel>], iteration_bounds = array<i64: 2>, scalar_prefetch = 0 : i64, scratch_operands = 0 : i64, tpu.core_type = #tpu.core_type<tc>, window_params = [{transform_indices = @transform_0, window_bounds = array<i64: 128, 128>}, {pipeline_mode = #tpu.pipeline_mode<synchronous>, transform_indices = @transform_1, window_bounds = array<i64: 128, 128>}, {transform_indices = @transform_2, window_bounds = array<i64: 128, 1>}, {transform_indices = @transform_3, window_bounds = array<i64: 128, 128>}, {transform_indices = @transform_4, window_bounds = array<i64: 1, 8, 128>}]} {
    %c0 = arith.constant 0 : index
    %c0_0 = arith.constant 0 : index
    %0 = vector.load %arg1[%c0, %c0_0] : memref<128x128xbf16, #tpu.memory_space<vmem>>, vector<128x128xbf16>
    %c0_1 = arith.constant 0 : index
    %c0_2 = arith.constant 0 : index
    %1 = vector.load %arg2[%c0_1, %c0_2] : memref<128x128xbf16, #tpu.memory_space<vmem>>, vector<128x128xbf16>
    %cst = arith.constant dense<0.000000e+00> : vector<128x128xf32>
    %2 = tpu.matmul %0, %1, %cst {dimension_numbers = #tpu.dot_dimension_numbers<[1], [0], [0], [1], [0, 0, 1, 1], [], []>} : vector<128x128xbf16>, vector<128x128xbf16>, vector<128x128xf32> -> vector<128x128xf32>
    %3 = arith.truncf %2 : vector<128x128xf32> to vector<128x128xbf16>
    %c0_3 = arith.constant 0 : index
    %c0_4 = arith.constant 0 : index
    %4 = vector.load %arg4[%c0_3, %c0_4] : memref<128x128xbf16, #tpu.memory_space<vmem>>, vector<128x128xbf16>
    tpu.vector_store %arg4[%c0_3, %c0_4], %3 {strides = array<i32>} : memref<128x128xbf16, #tpu.memory_space<vmem>>, vector<128x128xbf16>,
    %c0_5 = arith.constant 0 : index
    %c0_6 = arith.constant 0 : index
    %5 = vector.load %arg3[%c0_5, %c0_6] : memref<128x1xf32, #tpu.memory_space<vmem>>, vector<128x1xf32>
    %6 = vector.broadcast %5 : vector<128x1xf32> to vector<128x128xf32>
    %7 = arith.mulf %2, %6 : vector<128x128xf32>
    %cst_7 = arith.constant dense<0.000000e+00> : vector<128xf32>
    %8 = vector.multi_reduction <add>, %7, %cst_7 [0] : vector<128x128xf32> to vector<128xf32>
    %9 = vector.shape_cast %8 : vector<128xf32> to vector<1x128xf32>
    %10 = arith.mulf %7, %2 : vector<128x128xf32>
    %cst_8 = arith.constant dense<0.000000e+00> : vector<128xf32>
    %11 = vector.multi_reduction <add>, %10, %cst_8 [0] : vector<128x128xf32> to vector<128xf32>
    %12 = vector.shape_cast %11 : vector<128xf32> to vector<1x128xf32>
    %c0_9 = arith.constant 0 : index
    %c0_10 = arith.constant 0 : index
    %c0_11 = arith.constant 0 : index
    %13 = vector.load %arg5[%c0_9, %c0_10, %c0_11] : memref<1x8x128xf32, #tpu.memory_space<vmem>>, vector<1x1x128xf32>
    %14 = vector.shape_cast %13 : vector<1x1x128xf32> to vector<1x128xf32>
    %15 = vector.shape_cast %9 : vector<1x128xf32> to vector<1x1x128xf32>
    tpu.vector_store %arg5[%c0_9, %c0_10, %c0_11], %15 {strides = array<i32>} : memref<1x8x128xf32, #tpu.memory_space<vmem>>, vector<1x1x128xf32>,
    %c0_12 = arith.constant 0 : index
    %c1 = arith.constant 1 : index
    %c0_13 = arith.constant 0 : index
    %16 = vector.load %arg5[%c0_12, %c1, %c0_13] : memref<1x8x128xf32, #tpu.memory_space<vmem>>, vector<1x1x128xf32>
    %17 = vector.shape_cast %16 : vector<1x1x128xf32> to vector<1x128xf32>
    %18 = vector.shape_cast %12 : vector<1x128xf32> to vector<1x1x128xf32>
    tpu.vector_store %arg5[%c0_12, %c1, %c0_13], %18 {strides = array<i32>} : memref<1x8x128xf32, #tpu.memory_space<vmem>>, vector<1x1x128xf32>,
    %cst_14 = arith.constant 0.000000e+00 : f32
    %19 = vector.broadcast %cst_14 : f32 to vector<6x128xf32>
    %c0_15 = arith.constant 0 : index
    %c2 = arith.constant 2 : index
    %c0_16 = arith.constant 0 : index
    %20 = vector.load %arg5[%c0_15, %c2, %c0_16] : memref<1x8x128xf32, #tpu.memory_space<vmem>>, vector<1x6x128xf32>
    %21 = vector.shape_cast %20 : vector<1x6x128xf32> to vector<6x128xf32>
    %22 = vector.shape_cast %19 : vector<6x128xf32> to vector<1x6x128xf32>
    tpu.vector_store %arg5[%c0_15, %c2, %c0_16], %22 {strides = array<i32>} : memref<1x8x128xf32, #tpu.memory_space<vmem>>, vector<1x6x128xf32>,
    return
  }
  func.func @transform_0(%arg0: i32) -> (i32, i32) {
    %c0_i32 = arith.constant 0 : i32
    %c0_i32_0 = arith.constant 0 : i32
    return %arg0, %c0_i32 : i32, i32
  }
  func.func @transform_1(%arg0: i32) -> (i32, i32) {
    %c0_i32 = arith.constant 0 : i32
    %c0_i32_0 = arith.constant 0 : i32
    %c0_i32_1 = arith.constant 0 : i32
    return %c0_i32, %c0_i32_0 : i32, i32
  }
  func.func @transform_2(%arg0: i32) -> (i32, i32) {
    %c0_i32 = arith.constant 0 : i32
    %c0_i32_0 = arith.constant 0 : i32
    return %arg0, %c0_i32 : i32, i32
  }
  func.func @transform_3(%arg0: i32) -> (i32, i32) {
    %c0_i32 = arith.constant 0 : i32
    %c0_i32_0 = arith.constant 0 : i32
    return %arg0, %c0_i32 : i32, i32
  }
  func.func @transform_4(%arg0: i32) -> (i32, i32, i32) {
    %c0_i32 = arith.constant 0 : i32
    %c0_i32_0 = arith.constant 0 : i32
    %c0_i32_1 = arith.constant 0 : i32
    return %arg0, %c0_i32, %c0_i32_0 : i32, i32, i32
  }
}

module attributes {stable_mosaic.version = 11 : i64} {
  func.func @bn_relu_mask_kernel(%arg0: i32, %arg1: memref<128x128xbf16, #tpu.memory_space<vmem>>, %arg2: memref<2x128xf32, #tpu.memory_space<vmem>>, %arg3: memref<128x1xf32, #tpu.memory_space<vmem>>, %arg4: memref<128x128xbf16, #tpu.memory_space<vmem>>) attributes {dimension_semantics = [#tpu.dimension_semantics<parallel>], iteration_bounds = array<i64: 2>, scalar_prefetch = 0 : i64, scratch_operands = 0 : i64, tpu.core_type = #tpu.core_type<tc>, window_params = [{transform_indices = @transform_0, window_bounds = array<i64: 128, 128>}, {pipeline_mode = #tpu.pipeline_mode<synchronous>, transform_indices = @transform_1, window_bounds = array<i64: 2, 128>}, {transform_indices = @transform_2, window_bounds = array<i64: 128, 1>}, {transform_indices = @transform_3, window_bounds = array<i64: 128, 128>}]} {
    %c0 = arith.constant 0 : index
    %c0_0 = arith.constant 0 : index
    %0 = vector.load %arg1[%c0, %c0_0] : memref<128x128xbf16, #tpu.memory_space<vmem>>, vector<128x128xbf16>
    %1 = arith.extf %0 : vector<128x128xbf16> to vector<128x128xf32>
    %c0_1 = arith.constant 0 : index
    %c0_2 = arith.constant 0 : index
    %2 = vector.load %arg2[%c0_1, %c0_2] : memref<2x128xf32, #tpu.memory_space<vmem>>, vector<1x128xf32>
    %3 = vector.broadcast %2 : vector<1x128xf32> to vector<128x128xf32>
    %4 = arith.mulf %1, %3 : vector<128x128xf32>
    %c1 = arith.constant 1 : index
    %c0_3 = arith.constant 0 : index
    %5 = vector.load %arg2[%c1, %c0_3] : memref<2x128xf32, #tpu.memory_space<vmem>>, vector<1x128xf32>
    %6 = vector.broadcast %5 : vector<1x128xf32> to vector<128x128xf32>
    %7 = arith.addf %4, %6 : vector<128x128xf32>
    %cst = arith.constant 0.000000e+00 : f32
    %8 = vector.broadcast %cst : f32 to vector<128x128xf32>
    %9 = arith.maximumf %7, %8 : vector<128x128xf32>
    %c0_4 = arith.constant 0 : index
    %c0_5 = arith.constant 0 : index
    %10 = vector.load %arg3[%c0_4, %c0_5] : memref<128x1xf32, #tpu.memory_space<vmem>>, vector<128x1xf32>
    %11 = vector.broadcast %10 : vector<128x1xf32> to vector<128x128xf32>
    %12 = arith.mulf %9, %11 : vector<128x128xf32>
    %13 = arith.truncf %12 : vector<128x128xf32> to vector<128x128xbf16>
    %c0_6 = arith.constant 0 : index
    %c0_7 = arith.constant 0 : index
    %14 = vector.load %arg4[%c0_6, %c0_7] : memref<128x128xbf16, #tpu.memory_space<vmem>>, vector<128x128xbf16>
    tpu.vector_store %arg4[%c0_6, %c0_7], %13 {strides = array<i32>} : memref<128x128xbf16, #tpu.memory_space<vmem>>, vector<128x128xbf16>,
    return
  }
  func.func @transform_0(%arg0: i32) -> (i32, i32) {
    %c0_i32 = arith.constant 0 : i32
    %c0_i32_0 = arith.constant 0 : i32
    return %arg0, %c0_i32 : i32, i32
  }
  func.func @transform_1(%arg0: i32) -> (i32, i32) {
    %c0_i32 = arith.constant 0 : i32
    %c0_i32_0 = arith.constant 0 : i32
    %c0_i32_1 = arith.constant 0 : i32
    return %c0_i32, %c0_i32_0 : i32, i32
  }
  func.func @transform_2(%arg0: i32) -> (i32, i32) {
    %c0_i32 = arith.constant 0 : i32
    %c0_i32_0 = arith.constant 0 : i32
    return %arg0, %c0_i32 : i32, i32
  }
  func.func @transform_3(%arg0: i32) -> (i32, i32) {
    %c0_i32 = arith.constant 0 : i32
    %c0_i32_0 = arith.constant 0 : i32
    return %arg0, %c0_i32 : i32, i32
  }
}

module attributes {stable_mosaic.version = 11 : i64} {
  func.func @conv3x3_taps_stats_kernel(%arg0: i32, %arg1: memref<1x160x128xbf16, #tpu.memory_space<vmem>>, %arg2: memref<9x128x128xbf16, #tpu.memory_space<vmem>>, %arg3: memref<128x1xf32, #tpu.memory_space<vmem>>, %arg4: memref<128x128xbf16, #tpu.memory_space<vmem>>, %arg5: memref<1x8x128xf32, #tpu.memory_space<vmem>>) attributes {dimension_semantics = [#tpu.dimension_semantics<parallel>], iteration_bounds = array<i64: 2>, scalar_prefetch = 0 : i64, scratch_operands = 0 : i64, tpu.core_type = #tpu.core_type<tc>, window_params = [{transform_indices = @transform_0, window_bounds = array<i64: 1, 160, 128>}, {pipeline_mode = #tpu.pipeline_mode<synchronous>, transform_indices = @transform_1, window_bounds = array<i64: 9, 128, 128>}, {transform_indices = @transform_2, window_bounds = array<i64: 128, 1>}, {transform_indices = @transform_3, window_bounds = array<i64: 128, 128>}, {transform_indices = @transform_4, window_bounds = array<i64: 1, 8, 128>}]} {
    %c0 = arith.constant 0 : index
    %c5 = arith.constant 5 : index
    %c0_0 = arith.constant 0 : index
    %0 = vector.load %arg1[%c0, %c5, %c0_0] : memref<1x160x128xbf16, #tpu.memory_space<vmem>>, vector<1x128x128xbf16>
    %1 = vector.shape_cast %0 : vector<1x128x128xbf16> to vector<128x128xbf16>
    %c0_1 = arith.constant 0 : index
    %c0_2 = arith.constant 0 : index
    %c0_3 = arith.constant 0 : index
    %2 = vector.load %arg2[%c0_1, %c0_2, %c0_3] : memref<9x128x128xbf16, #tpu.memory_space<vmem>>, vector<1x128x128xbf16>
    %3 = vector.shape_cast %2 : vector<1x128x128xbf16> to vector<128x128xbf16>
    %cst = arith.constant dense<0.000000e+00> : vector<128x128xf32>
    %4 = tpu.matmul %1, %3, %cst {dimension_numbers = #tpu.dot_dimension_numbers<[1], [0], [0], [1], [0, 0, 1, 1], [], []>} : vector<128x128xbf16>, vector<128x128xbf16>, vector<128x128xf32> -> vector<128x128xf32>
    %c0_4 = arith.constant 0 : index
    %c6 = arith.constant 6 : index
    %c0_5 = arith.constant 0 : index
    %5 = vector.load %arg1[%c0_4, %c6, %c0_5] : memref<1x160x128xbf16, #tpu.memory_space<vmem>>, vector<1x128x128xbf16>
    %6 = vector.shape_cast %5 : vector<1x128x128xbf16> to vector<128x128xbf16>
    %c1 = arith.constant 1 : index
    %c0_6 = arith.constant 0 : index
    %c0_7 = arith.constant 0 : index
    %7 = vector.load %arg2[%c1, %c0_6, %c0_7] : memref<9x128x128xbf16, #tpu.memory_space<vmem>>, vector<1x128x128xbf16>
    %8 = vector.shape_cast %7 : vector<1x128x128xbf16> to vector<128x128xbf16>
    %cst_8 = arith.constant dense<0.000000e+00> : vector<128x128xf32>
    %9 = tpu.matmul %6, %8, %cst_8 {dimension_numbers = #tpu.dot_dimension_numbers<[1], [0], [0], [1], [0, 0, 1, 1], [], []>} : vector<128x128xbf16>, vector<128x128xbf16>, vector<128x128xf32> -> vector<128x128xf32>
    %10 = arith.addf %4, %9 : vector<128x128xf32>
    %c0_9 = arith.constant 0 : index
    %c7 = arith.constant 7 : index
    %c0_10 = arith.constant 0 : index
    %11 = vector.load %arg1[%c0_9, %c7, %c0_10] : memref<1x160x128xbf16, #tpu.memory_space<vmem>>, vector<1x128x128xbf16>
    %12 = vector.shape_cast %11 : vector<1x128x128xbf16> to vector<128x128xbf16>
    %c2 = arith.constant 2 : index
    %c0_11 = arith.constant 0 : index
    %c0_12 = arith.constant 0 : index
    %13 = vector.load %arg2[%c2, %c0_11, %c0_12] : memref<9x128x128xbf16, #tpu.memory_space<vmem>>, vector<1x128x128xbf16>
    %14 = vector.shape_cast %13 : vector<1x128x128xbf16> to vector<128x128xbf16>
    %cst_13 = arith.constant dense<0.000000e+00> : vector<128x128xf32>
    %15 = tpu.matmul %12, %14, %cst_13 {dimension_numbers = #tpu.dot_dimension_numbers<[1], [0], [0], [1], [0, 0, 1, 1], [], []>} : vector<128x128xbf16>, vector<128x128xbf16>, vector<128x128xf32> -> vector<128x128xf32>
    %16 = arith.addf %10, %15 : vector<128x128xf32>
    %c0_14 = arith.constant 0 : index
    %c15 = arith.constant 15 : index
    %c0_15 = arith.constant 0 : index
    %17 = vector.load %arg1[%c0_14, %c15, %c0_15] : memref<1x160x128xbf16, #tpu.memory_space<vmem>>, vector<1x128x128xbf16>
    %18 = vector.shape_cast %17 : vector<1x128x128xbf16> to vector<128x128xbf16>
    %c3 = arith.constant 3 : index
    %c0_16 = arith.constant 0 : index
    %c0_17 = arith.constant 0 : index
    %19 = vector.load %arg2[%c3, %c0_16, %c0_17] : memref<9x128x128xbf16, #tpu.memory_space<vmem>>, vector<1x128x128xbf16>
    %20 = vector.shape_cast %19 : vector<1x128x128xbf16> to vector<128x128xbf16>
    %cst_18 = arith.constant dense<0.000000e+00> : vector<128x128xf32>
    %21 = tpu.matmul %18, %20, %cst_18 {dimension_numbers = #tpu.dot_dimension_numbers<[1], [0], [0], [1], [0, 0, 1, 1], [], []>} : vector<128x128xbf16>, vector<128x128xbf16>, vector<128x128xf32> -> vector<128x128xf32>
    %22 = arith.addf %16, %21 : vector<128x128xf32>
    %c0_19 = arith.constant 0 : index
    %c16 = arith.constant 16 : index
    %c0_20 = arith.constant 0 : index
    %23 = vector.load %arg1[%c0_19, %c16, %c0_20] : memref<1x160x128xbf16, #tpu.memory_space<vmem>>, vector<1x128x128xbf16>
    %24 = vector.shape_cast %23 : vector<1x128x128xbf16> to vector<128x128xbf16>
    %c4 = arith.constant 4 : index
    %c0_21 = arith.constant 0 : index
    %c0_22 = arith.constant 0 : index
    %25 = vector.load %arg2[%c4, %c0_21, %c0_22] : memref<9x128x128xbf16, #tpu.memory_space<vmem>>, vector<1x128x128xbf16>
    %26 = vector.shape_cast %25 : vector<1x128x128xbf16> to vector<128x128xbf16>
    %cst_23 = arith.constant dense<0.000000e+00> : vector<128x128xf32>
    %27 = tpu.matmul %24, %26, %cst_23 {dimension_numbers = #tpu.dot_dimension_numbers<[1], [0], [0], [1], [0, 0, 1, 1], [], []>} : vector<128x128xbf16>, vector<128x128xbf16>, vector<128x128xf32> -> vector<128x128xf32>
    %28 = arith.addf %22, %27 : vector<128x128xf32>
    %c0_24 = arith.constant 0 : index
    %c17 = arith.constant 17 : index
    %c0_25 = arith.constant 0 : index
    %29 = vector.load %arg1[%c0_24, %c17, %c0_25] : memref<1x160x128xbf16, #tpu.memory_space<vmem>>, vector<1x128x128xbf16>
    %30 = vector.shape_cast %29 : vector<1x128x128xbf16> to vector<128x128xbf16>
    %c5_26 = arith.constant 5 : index
    %c0_27 = arith.constant 0 : index
    %c0_28 = arith.constant 0 : index
    %31 = vector.load %arg2[%c5_26, %c0_27, %c0_28] : memref<9x128x128xbf16, #tpu.memory_space<vmem>>, vector<1x128x128xbf16>
    %32 = vector.shape_cast %31 : vector<1x128x128xbf16> to vector<128x128xbf16>
    %cst_29 = arith.constant dense<0.000000e+00> : vector<128x128xf32>
    %33 = tpu.matmul %30, %32, %cst_29 {dimension_numbers = #tpu.dot_dimension_numbers<[1], [0], [0], [1], [0, 0, 1, 1], [], []>} : vector<128x128xbf16>, vector<128x128xbf16>, vector<128x128xf32> -> vector<128x128xf32>
    %34 = arith.addf %28, %33 : vector<128x128xf32>
    %c0_30 = arith.constant 0 : index
    %c25 = arith.constant 25 : index
    %c0_31 = arith.constant 0 : index
    %35 = vector.load %arg1[%c0_30, %c25, %c0_31] : memref<1x160x128xbf16, #tpu.memory_space<vmem>>, vector<1x128x128xbf16>
    %36 = vector.shape_cast %35 : vector<1x128x128xbf16> to vector<128x128xbf16>
    %c6_32 = arith.constant 6 : index
    %c0_33 = arith.constant 0 : index
    %c0_34 = arith.constant 0 : index
    %37 = vector.load %arg2[%c6_32, %c0_33, %c0_34] : memref<9x128x128xbf16, #tpu.memory_space<vmem>>, vector<1x128x128xbf16>
    %38 = vector.shape_cast %37 : vector<1x128x128xbf16> to vector<128x128xbf16>
    %cst_35 = arith.constant dense<0.000000e+00> : vector<128x128xf32>
    %39 = tpu.matmul %36, %38, %cst_35 {dimension_numbers = #tpu.dot_dimension_numbers<[1], [0], [0], [1], [0, 0, 1, 1], [], []>} : vector<128x128xbf16>, vector<128x128xbf16>, vector<128x128xf32> -> vector<128x128xf32>
    %40 = arith.addf %34, %39 : vector<128x128xf32>
    %c0_36 = arith.constant 0 : index
    %c26 = arith.constant 26 : index
    %c0_37 = arith.constant 0 : index
    %41 = vector.load %arg1[%c0_36, %c26, %c0_37] : memref<1x160x128xbf16, #tpu.memory_space<vmem>>, vector<1x128x128xbf16>
    %42 = vector.shape_cast %41 : vector<1x128x128xbf16> to vector<128x128xbf16>
    %c7_38 = arith.constant 7 : index
    %c0_39 = arith.constant 0 : index
    %c0_40 = arith.constant 0 : index
    %43 = vector.load %arg2[%c7_38, %c0_39, %c0_40] : memref<9x128x128xbf16, #tpu.memory_space<vmem>>, vector<1x128x128xbf16>
    %44 = vector.shape_cast %43 : vector<1x128x128xbf16> to vector<128x128xbf16>
    %cst_41 = arith.constant dense<0.000000e+00> : vector<128x128xf32>
    %45 = tpu.matmul %42, %44, %cst_41 {dimension_numbers = #tpu.dot_dimension_numbers<[1], [0], [0], [1], [0, 0, 1, 1], [], []>} : vector<128x128xbf16>, vector<128x128xbf16>, vector<128x128xf32> -> vector<128x128xf32>
    %46 = arith.addf %40, %45 : vector<128x128xf32>
    %c0_42 = arith.constant 0 : index
    %c27 = arith.constant 27 : index
    %c0_43 = arith.constant 0 : index
    %47 = vector.load %arg1[%c0_42, %c27, %c0_43] : memref<1x160x128xbf16, #tpu.memory_space<vmem>>, vector<1x128x128xbf16>
    %48 = vector.shape_cast %47 : vector<1x128x128xbf16> to vector<128x128xbf16>
    %c8 = arith.constant 8 : index
    %c0_44 = arith.constant 0 : index
    %c0_45 = arith.constant 0 : index
    %49 = vector.load %arg2[%c8, %c0_44, %c0_45] : memref<9x128x128xbf16, #tpu.memory_space<vmem>>, vector<1x128x128xbf16>
    %50 = vector.shape_cast %49 : vector<1x128x128xbf16> to vector<128x128xbf16>
    %cst_46 = arith.constant dense<0.000000e+00> : vector<128x128xf32>
    %51 = tpu.matmul %48, %50, %cst_46 {dimension_numbers = #tpu.dot_dimension_numbers<[1], [0], [0], [1], [0, 0, 1, 1], [], []>} : vector<128x128xbf16>, vector<128x128xbf16>, vector<128x128xf32> -> vector<128x128xf32>
    %52 = arith.addf %46, %51 : vector<128x128xf32>
    %53 = arith.truncf %52 : vector<128x128xf32> to vector<128x128xbf16>
    %c0_47 = arith.constant 0 : index
    %c0_48 = arith.constant 0 : index
    %54 = vector.load %arg4[%c0_47, %c0_48] : memref<128x128xbf16, #tpu.memory_space<vmem>>, vector<128x128xbf16>
    tpu.vector_store %arg4[%c0_47, %c0_48], %53 {strides = array<i32>} : memref<128x128xbf16, #tpu.memory_space<vmem>>, vector<128x128xbf16>,
    %c0_49 = arith.constant 0 : index
    %c0_50 = arith.constant 0 : index
    %55 = vector.load %arg3[%c0_49, %c0_50] : memref<128x1xf32, #tpu.memory_space<vmem>>, vector<128x1xf32>
    %56 = vector.broadcast %55 : vector<128x1xf32> to vector<128x128xf32>
    %57 = arith.mulf %52, %56 : vector<128x128xf32>
    %cst_51 = arith.constant dense<0.000000e+00> : vector<128xf32>
    %58 = vector.multi_reduction <add>, %57, %cst_51 [0] : vector<128x128xf32> to vector<128xf32>
    %59 = vector.shape_cast %58 : vector<128xf32> to vector<1x128xf32>
    %60 = arith.mulf %57, %52 : vector<128x128xf32>
    %cst_52 = arith.constant dense<0.000000e+00> : vector<128xf32>
    %61 = vector.multi_reduction <add>, %60, %cst_52 [0] : vector<128x128xf32> to vector<128xf32>
    %62 = vector.shape_cast %61 : vector<128xf32> to vector<1x128xf32>
    %c0_53 = arith.constant 0 : index
    %c0_54 = arith.constant 0 : index
    %c0_55 = arith.constant 0 : index
    %63 = vector.load %arg5[%c0_53, %c0_54, %c0_55] : memref<1x8x128xf32, #tpu.memory_space<vmem>>, vector<1x1x128xf32>
    %64 = vector.shape_cast %63 : vector<1x1x128xf32> to vector<1x128xf32>
    %65 = vector.shape_cast %59 : vector<1x128xf32> to vector<1x1x128xf32>
    tpu.vector_store %arg5[%c0_53, %c0_54, %c0_55], %65 {strides = array<i32>} : memref<1x8x128xf32, #tpu.memory_space<vmem>>, vector<1x1x128xf32>,
    %c0_56 = arith.constant 0 : index
    %c1_57 = arith.constant 1 : index
    %c0_58 = arith.constant 0 : index
    %66 = vector.load %arg5[%c0_56, %c1_57, %c0_58] : memref<1x8x128xf32, #tpu.memory_space<vmem>>, vector<1x1x128xf32>
    %67 = vector.shape_cast %66 : vector<1x1x128xf32> to vector<1x128xf32>
    %68 = vector.shape_cast %62 : vector<1x128xf32> to vector<1x1x128xf32>
    tpu.vector_store %arg5[%c0_56, %c1_57, %c0_58], %68 {strides = array<i32>} : memref<1x8x128xf32, #tpu.memory_space<vmem>>, vector<1x1x128xf32>,
    %cst_59 = arith.constant 0.000000e+00 : f32
    %69 = vector.broadcast %cst_59 : f32 to vector<6x128xf32>
    %c0_60 = arith.constant 0 : index
    %c2_61 = arith.constant 2 : index
    %c0_62 = arith.constant 0 : index
    %70 = vector.load %arg5[%c0_60, %c2_61, %c0_62] : memref<1x8x128xf32, #tpu.memory_space<vmem>>, vector<1x6x128xf32>
    %71 = vector.shape_cast %70 : vector<1x6x128xf32> to vector<6x128xf32>
    %72 = vector.shape_cast %69 : vector<6x128xf32> to vector<1x6x128xf32>
    tpu.vector_store %arg5[%c0_60, %c2_61, %c0_62], %72 {strides = array<i32>} : memref<1x8x128xf32, #tpu.memory_space<vmem>>, vector<1x6x128xf32>,
    return
  }
  func.func @transform_0(%arg0: i32) -> (i32, i32, i32) {
    %c0_i32 = arith.constant 0 : i32
    %c0_i32_0 = arith.constant 0 : i32
    %c0_i32_1 = arith.constant 0 : i32
    return %arg0, %c0_i32, %c0_i32_0 : i32, i32, i32
  }
  func.func @transform_1(%arg0: i32) -> (i32, i32, i32) {
    %c0_i32 = arith.constant 0 : i32
    %c0_i32_0 = arith.constant 0 : i32
    %c0_i32_1 = arith.constant 0 : i32
    %c0_i32_2 = arith.constant 0 : i32
    return %c0_i32, %c0_i32_0, %c0_i32_1 : i32, i32, i32
  }
  func.func @transform_2(%arg0: i32) -> (i32, i32) {
    %c0_i32 = arith.constant 0 : i32
    %c0_i32_0 = arith.constant 0 : i32
    return %arg0, %c0_i32 : i32, i32
  }
  func.func @transform_3(%arg0: i32) -> (i32, i32) {
    %c0_i32 = arith.constant 0 : i32
    %c0_i32_0 = arith.constant 0 : i32
    return %arg0, %c0_i32 : i32, i32
  }
  func.func @transform_4(%arg0: i32) -> (i32, i32, i32) {
    %c0_i32 = arith.constant 0 : i32
    %c0_i32_0 = arith.constant 0 : i32
    %c0_i32_1 = arith.constant 0 : i32
    return %arg0, %c0_i32, %c0_i32_0 : i32, i32, i32
  }
}

module attributes {stable_mosaic.version = 11 : i64} {
  func.func @matmul_stats_only_kernel(%arg0: i32, %arg1: memref<128x128xbf16, #tpu.memory_space<vmem>>, %arg2: memref<128x128xbf16, #tpu.memory_space<vmem>>, %arg3: memref<128x1xf32, #tpu.memory_space<vmem>>, %arg4: memref<1x8x128xf32, #tpu.memory_space<vmem>>) attributes {dimension_semantics = [#tpu.dimension_semantics<parallel>], iteration_bounds = array<i64: 2>, scalar_prefetch = 0 : i64, scratch_operands = 0 : i64, tpu.core_type = #tpu.core_type<tc>, window_params = [{transform_indices = @transform_0, window_bounds = array<i64: 128, 128>}, {pipeline_mode = #tpu.pipeline_mode<synchronous>, transform_indices = @transform_1, window_bounds = array<i64: 128, 128>}, {transform_indices = @transform_2, window_bounds = array<i64: 128, 1>}, {transform_indices = @transform_3, window_bounds = array<i64: 1, 8, 128>}]} {
    %c0 = arith.constant 0 : index
    %c0_0 = arith.constant 0 : index
    %0 = vector.load %arg1[%c0, %c0_0] : memref<128x128xbf16, #tpu.memory_space<vmem>>, vector<128x128xbf16>
    %c0_1 = arith.constant 0 : index
    %c0_2 = arith.constant 0 : index
    %1 = vector.load %arg2[%c0_1, %c0_2] : memref<128x128xbf16, #tpu.memory_space<vmem>>, vector<128x128xbf16>
    %cst = arith.constant dense<0.000000e+00> : vector<128x128xf32>
    %2 = tpu.matmul %0, %1, %cst {dimension_numbers = #tpu.dot_dimension_numbers<[1], [0], [0], [1], [0, 0, 1, 1], [], []>} : vector<128x128xbf16>, vector<128x128xbf16>, vector<128x128xf32> -> vector<128x128xf32>
    %c0_3 = arith.constant 0 : index
    %c0_4 = arith.constant 0 : index
    %3 = vector.load %arg3[%c0_3, %c0_4] : memref<128x1xf32, #tpu.memory_space<vmem>>, vector<128x1xf32>
    %4 = vector.broadcast %3 : vector<128x1xf32> to vector<128x128xf32>
    %5 = arith.mulf %2, %4 : vector<128x128xf32>
    %cst_5 = arith.constant dense<0.000000e+00> : vector<128xf32>
    %6 = vector.multi_reduction <add>, %5, %cst_5 [0] : vector<128x128xf32> to vector<128xf32>
    %7 = vector.shape_cast %6 : vector<128xf32> to vector<1x128xf32>
    %8 = arith.mulf %5, %2 : vector<128x128xf32>
    %cst_6 = arith.constant dense<0.000000e+00> : vector<128xf32>
    %9 = vector.multi_reduction <add>, %8, %cst_6 [0] : vector<128x128xf32> to vector<128xf32>
    %10 = vector.shape_cast %9 : vector<128xf32> to vector<1x128xf32>
    %c0_7 = arith.constant 0 : index
    %c0_8 = arith.constant 0 : index
    %c0_9 = arith.constant 0 : index
    %11 = vector.load %arg4[%c0_7, %c0_8, %c0_9] : memref<1x8x128xf32, #tpu.memory_space<vmem>>, vector<1x1x128xf32>
    %12 = vector.shape_cast %11 : vector<1x1x128xf32> to vector<1x128xf32>
    %13 = vector.shape_cast %7 : vector<1x128xf32> to vector<1x1x128xf32>
    tpu.vector_store %arg4[%c0_7, %c0_8, %c0_9], %13 {strides = array<i32>} : memref<1x8x128xf32, #tpu.memory_space<vmem>>, vector<1x1x128xf32>,
    %c0_10 = arith.constant 0 : index
    %c1 = arith.constant 1 : index
    %c0_11 = arith.constant 0 : index
    %14 = vector.load %arg4[%c0_10, %c1, %c0_11] : memref<1x8x128xf32, #tpu.memory_space<vmem>>, vector<1x1x128xf32>
    %15 = vector.shape_cast %14 : vector<1x1x128xf32> to vector<1x128xf32>
    %16 = vector.shape_cast %10 : vector<1x128xf32> to vector<1x1x128xf32>
    tpu.vector_store %arg4[%c0_10, %c1, %c0_11], %16 {strides = array<i32>} : memref<1x8x128xf32, #tpu.memory_space<vmem>>, vector<1x1x128xf32>,
    %cst_12 = arith.constant 0.000000e+00 : f32
    %17 = vector.broadcast %cst_12 : f32 to vector<6x128xf32>
    %c0_13 = arith.constant 0 : index
    %c2 = arith.constant 2 : index
    %c0_14 = arith.constant 0 : index
    %18 = vector.load %arg4[%c0_13, %c2, %c0_14] : memref<1x8x128xf32, #tpu.memory_space<vmem>>, vector<1x6x128xf32>
    %19 = vector.shape_cast %18 : vector<1x6x128xf32> to vector<6x128xf32>
    %20 = vector.shape_cast %17 : vector<6x128xf32> to vector<1x6x128xf32>
    tpu.vector_store %arg4[%c0_13, %c2, %c0_14], %20 {strides = array<i32>} : memref<1x8x128xf32, #tpu.memory_space<vmem>>, vector<1x6x128xf32>,
    return
  }
  func.func @transform_0(%arg0: i32) -> (i32, i32) {
    %c0_i32 = arith.constant 0 : i32
    %c0_i32_0 = arith.constant 0 : i32
    return %arg0, %c0_i32 : i32, i32
  }
  func.func @transform_1(%arg0: i32) -> (i32, i32) {
    %c0_i32 = arith.constant 0 : i32
    %c0_i32_0 = arith.constant 0 : i32
    %c0_i32_1 = arith.constant 0 : i32
    return %c0_i32, %c0_i32_0 : i32, i32
  }
  func.func @transform_2(%arg0: i32) -> (i32, i32) {
    %c0_i32 = arith.constant 0 : i32
    %c0_i32_0 = arith.constant 0 : i32
    return %arg0, %c0_i32 : i32, i32
  }
  func.func @transform_3(%arg0: i32) -> (i32, i32, i32) {
    %c0_i32 = arith.constant 0 : i32
    %c0_i32_0 = arith.constant 0 : i32
    %c0_i32_1 = arith.constant 0 : i32
    return %arg0, %c0_i32, %c0_i32_0 : i32, i32, i32
  }
}

module attributes {stable_mosaic.version = 11 : i64} {
  func.func @bn_add_proj_relu_kernel(%arg0: i32, %arg1: memref<128x128xbf16, #tpu.memory_space<vmem>>, %arg2: memref<2x128xf32, #tpu.memory_space<vmem>>, %arg3: memref<128x128xbf16, #tpu.memory_space<vmem>>, %arg4: memref<128x128xbf16, #tpu.memory_space<vmem>>, %arg5: memref<2x128xf32, #tpu.memory_space<vmem>>, %arg6: memref<128x128xf32, #tpu.memory_space<vmem>>) attributes {dimension_semantics = [#tpu.dimension_semantics<parallel>], iteration_bounds = array<i64: 2>, scalar_prefetch = 0 : i64, scratch_operands = 0 : i64, tpu.core_type = #tpu.core_type<tc>, window_params = [{transform_indices = @transform_0, window_bounds = array<i64: 128, 128>}, {pipeline_mode = #tpu.pipeline_mode<synchronous>, transform_indices = @transform_1, window_bounds = array<i64: 2, 128>}, {transform_indices = @transform_2, window_bounds = array<i64: 128, 128>}, {pipeline_mode = #tpu.pipeline_mode<synchronous>, transform_indices = @transform_3, window_bounds = array<i64: 128, 128>}, {pipeline_mode = #tpu.pipeline_mode<synchronous>, transform_indices = @transform_4, window_bounds = array<i64: 2, 128>}, {transform_indices = @transform_5, window_bounds = array<i64: 128, 128>}]} {
    %c0 = arith.constant 0 : index
    %c0_0 = arith.constant 0 : index
    %0 = vector.load %arg1[%c0, %c0_0] : memref<128x128xbf16, #tpu.memory_space<vmem>>, vector<128x128xbf16>
    %1 = arith.extf %0 : vector<128x128xbf16> to vector<128x128xf32>
    %c0_1 = arith.constant 0 : index
    %c0_2 = arith.constant 0 : index
    %2 = vector.load %arg3[%c0_1, %c0_2] : memref<128x128xbf16, #tpu.memory_space<vmem>>, vector<128x128xbf16>
    %c0_3 = arith.constant 0 : index
    %c0_4 = arith.constant 0 : index
    %3 = vector.load %arg4[%c0_3, %c0_4] : memref<128x128xbf16, #tpu.memory_space<vmem>>, vector<128x128xbf16>
    %cst = arith.constant dense<0.000000e+00> : vector<128x128xf32>
    %4 = tpu.matmul %2, %3, %cst {dimension_numbers = #tpu.dot_dimension_numbers<[1], [0], [0], [1], [0, 0, 1, 1], [], []>} : vector<128x128xbf16>, vector<128x128xbf16>, vector<128x128xf32> -> vector<128x128xf32>
    %c0_5 = arith.constant 0 : index
    %c0_6 = arith.constant 0 : index
    %5 = vector.load %arg2[%c0_5, %c0_6] : memref<2x128xf32, #tpu.memory_space<vmem>>, vector<1x128xf32>
    %6 = vector.broadcast %5 : vector<1x128xf32> to vector<128x128xf32>
    %7 = arith.mulf %1, %6 : vector<128x128xf32>
    %c1 = arith.constant 1 : index
    %c0_7 = arith.constant 0 : index
    %8 = vector.load %arg2[%c1, %c0_7] : memref<2x128xf32, #tpu.memory_space<vmem>>, vector<1x128xf32>
    %9 = vector.broadcast %8 : vector<1x128xf32> to vector<128x128xf32>
    %10 = arith.addf %7, %9 : vector<128x128xf32>
    %c0_8 = arith.constant 0 : index
    %c0_9 = arith.constant 0 : index
    %11 = vector.load %arg5[%c0_8, %c0_9] : memref<2x128xf32, #tpu.memory_space<vmem>>, vector<1x128xf32>
    %12 = vector.broadcast %11 : vector<1x128xf32> to vector<128x128xf32>
    %13 = arith.mulf %4, %12 : vector<128x128xf32>
    %14 = arith.addf %10, %13 : vector<128x128xf32>
    %c1_10 = arith.constant 1 : index
    %c0_11 = arith.constant 0 : index
    %15 = vector.load %arg5[%c1_10, %c0_11] : memref<2x128xf32, #tpu.memory_space<vmem>>, vector<1x128xf32>
    %16 = vector.broadcast %15 : vector<1x128xf32> to vector<128x128xf32>
    %17 = arith.addf %14, %16 : vector<128x128xf32>
    %cst_12 = arith.constant 0.000000e+00 : f32
    %18 = vector.broadcast %cst_12 : f32 to vector<128x128xf32>
    %19 = arith.maximumf %17, %18 : vector<128x128xf32>
    %c0_13 = arith.constant 0 : index
    %c0_14 = arith.constant 0 : index
    %20 = vector.load %arg6[%c0_13, %c0_14] : memref<128x128xf32, #tpu.memory_space<vmem>>, vector<128x128xf32>
    tpu.vector_store %arg6[%c0_13, %c0_14], %19 {strides = array<i32>} : memref<128x128xf32, #tpu.memory_space<vmem>>, vector<128x128xf32>,
    return
  }
  func.func @transform_0(%arg0: i32) -> (i32, i32) {
    %c0_i32 = arith.constant 0 : i32
    %c0_i32_0 = arith.constant 0 : i32
    return %arg0, %c0_i32 : i32, i32
  }
  func.func @transform_1(%arg0: i32) -> (i32, i32) {
    %c0_i32 = arith.constant 0 : i32
    %c0_i32_0 = arith.constant 0 : i32
    %c0_i32_1 = arith.constant 0 : i32
    return %c0_i32, %c0_i32_0 : i32, i32
  }
  func.func @transform_2(%arg0: i32) -> (i32, i32) {
    %c0_i32 = arith.constant 0 : i32
    %c0_i32_0 = arith.constant 0 : i32
    return %arg0, %c0_i32 : i32, i32
  }
  func.func @transform_3(%arg0: i32) -> (i32, i32) {
    %c0_i32 = arith.constant 0 : i32
    %c0_i32_0 = arith.constant 0 : i32
    %c0_i32_1 = arith.constant 0 : i32
    return %c0_i32, %c0_i32_0 : i32, i32
  }
  func.func @transform_4(%arg0: i32) -> (i32, i32) {
    %c0_i32 = arith.constant 0 : i32
    %c0_i32_0 = arith.constant 0 : i32
    %c0_i32_1 = arith.constant 0 : i32
    return %c0_i32, %c0_i32_0 : i32, i32
  }
  func.func @transform_5(%arg0: i32) -> (i32, i32) {
    %c0_i32 = arith.constant 0 : i32
    %c0_i32_0 = arith.constant 0 : i32
    return %arg0, %c0_i32 : i32, i32
  }
}

</mosaic_0001>

<llo_original>
// kernel: basic_block.6
$region0: #{basic_block.6}
  #allocation0 [shape = 'u32[]', space=smem, size = 0x4, offset = 0x4, fixed_abs, tag = 'smem constant byte address 0x4 - core index']
  #allocation1 [shape = 'u32[144,128]{1,0:T(1,128)}', space=vmem, size = 0x12000, scoped, tag = 'internal scratch']
  %s0 = inlined_call_operand.vmem [shape: bf16[256,128], index: 0, kind: input, shape index: {}]
  %s1 = inlined_call_operand.vmem [shape: f32[2,128], index: 1, kind: input, shape index: {}]
  %s2 = inlined_call_operand.vmem [shape: f32[256,1], index: 2, kind: input, shape index: {}]
  %s3 = inlined_call_operand.vmem [shape: bf16[256,128], index: 3, kind: output, shape index: {}]
  %s4 = sld [smem:[#allocation0]]
  $region45: #{basic_block.6} parent=0
    _
  %s6 = ssub.s32 1, %s4
  %s7 = scalar_select 0, %s6, %s4
  loop: start=0, step=1, limit=4
  $region2: #{basic_block.6} parent=0 // loop_pre_header
    _
  $region3: #{basic_block.6} parent=0 // loop_header
    %s9 = sphi 0, %s13
    %p10 = scmp.ge.s32.totalorder %s9, 4
    %s19 = sphi 0, %s21
    %s22 = sphi 0, %s19
    %s23 = sphi 0, %s22
    %s39 = sphi 0, %s23
    %s43 = sphi 0, %s43
    %s45 = sphi 0, %s43
    %s46 = sphi 0, %s45
    %s60 = sphi 0, %s46
    %s66 = sphi 0, %s68
    %s69 = sphi 0, %s66
    %s70 = sphi 0, %s69
    %s86 = sphi 0, %s70
    %s92 = sphi 0, %s94
    %s95 = sphi 0, %s92
    %s96 = sphi 0, %s95
    %s112 = sphi 0, %s96
  $region4: #{basic_block.6} parent=0 // loop_header_branch
    %12 = sbr.rel (%p10) target = $region8
  $region5: #{basic_block.6} parent=0 // loop_body
    %s14 = ssub.s32 %s9, 1
    %s15 = ssub.s32 %s9, 2
    %s16 = sadd.s32 %s9, 1
    %s17 = ssub.s32 %s9, %s16
    %p18 = scmp.eq.s32.totalorder %s17, 0
    %s20 = sadd.s32 %s19, 1
    %s21 = scalar_select %p18, %s19, %s20
    %p24 = pneg %p18
    %p25 = scmp.eq.s32.totalorder %s9, 1
    %p26 = por %p24, %p25
    %p27 = scmp.ne.s32.totalorder %s19, %s22
    %p28 = scmp.eq.s32.totalorder %s9, 0
    %p29 = por %p27, %p28
    %p30 = scmp.ne.s32.totalorder %s19, %s22
    %p31 = scmp.eq.s32.totalorder %s14, 1
    %p32 = por %p30, %p31
    %p33 = scmp.ne.s32.totalorder %s22, %s23
    %p34 = scmp.eq.s32.totalorder %s14, 0
    %p35 = por %p33, %p34
    %p36 = scmp.ne.s32.totalorder %s22, %s23
    %p37 = scmp.eq.s32.totalorder %s15, 1
    %p38 = por %p36, %p37
    %p40 = scmp.ne.s32.totalorder %s23, %s39
    %p41 = scmp.eq.s32.totalorder %s15, 0
    %p42 = por %p40, %p41
    %s44 = sadd.s32 %s43, 1
    %p47 = scmp.eq.s32.totalorder %s9, 1
    %p48 = scmp.ne.s32.totalorder %s43, %s45
    %p49 = scmp.eq.s32.totalorder %s9, 0
    %p50 = por %p48, %p49
    %p51 = scmp.ne.s32.totalorder %s43, %s45
    %p52 = scmp.eq.s32.totalorder %s14, 1
    %p53 = por %p51, %p52
    %p54 = scmp.ne.s32.totalorder %s45, %s46
    %p55 = scmp.eq.s32.totalorder %s14, 0
    %p56 = por %p54, %p55
    %p57 = scmp.ne.s32.totalorder %s45, %s46
    %p58 = scmp.eq.s32.totalorder %s15, 1
    %p59 = por %p57, %p58
    %p61 = scmp.ne.s32.totalorder %s46, %s60
    %p62 = scmp.eq.s32.totalorder %s15, 0
    %p63 = por %p61, %p62
    %s64 = ssub.s32 %s9, %s16
    %p65 = scmp.eq.s32.totalorder %s64, 0
    %s67 = sadd.s32 %s66, 1
    %s68 = scalar_select %p65, %s66, %s67
    %p71 = pneg %p65
    %p72 = scmp.eq.s32.totalorder %s9, 1
    %p73 = por %p71, %p72
    %p74 = scmp.ne.s32.totalorder %s66, %s69
    %p75 = scmp.eq.s32.totalorder %s9, 0
    %p76 = por %p74, %p75
    %p77 = scmp.ne.s32.totalorder %s66, %s69
    %p78 = scmp.eq.s32.totalorder %s14, 1
    %p79 = por %p77, %p78
    %p80 = scmp.ne.s32.totalorder %s69, %s70
    %p81 = scmp.eq.s32.totalorder %s14, 0
    %p82 = por %p80, %p81
    %p83 = scmp.ne.s32.totalorder %s69, %s70
    %p84 = scmp.eq.s32.totalorder %s15, 1
    %p85 = por %p83, %p84
    %p87 = scmp.ne.s32.totalorder %s70, %s86
    %p88 = scmp.eq.s32.totalorder %s15, 0
    %p89 = por %p87, %p88
    %s90 = ssub.s32 %s9, %s16
    %p91 = scmp.eq.s32.totalorder %s90, 0
    %s93 = sadd.s32 %s92, 1
    %s94 = scalar_select %p91, %s92, %s93
    %p97 = pneg %p91
    %p98 = scmp.eq.s32.totalorder %s9, 1
    %p99 = por %p97, %p98
    %p100 = scmp.ne.s32.totalorder %s92, %s95
    %p101 = scmp.eq.s32.totalorder %s9, 0
    %p102 = por %p100, %p101
    %p103 = scmp.ne.s32.totalorder %s92, %s95
    %p104 = scmp.eq.s32.totalorder %s14, 1
    %p105 = por %p103, %p104
    %p106 = scmp.ne.s32.totalorder %s95, %s96
    %p107 = scmp.eq.s32.totalorder %s14, 0
    %p108 = por %p106, %p107
    %p109 = scmp.ne.s32.totalorder %s95, %s96
    %p110 = scmp.eq.s32.totalorder %s15, 1
    %p111 = por %p109, %p110
    %p113 = scmp.ne.s32.totalorder %s96, %s112
    %p114 = scmp.eq.s32.totalorder %s15, 0
    %p115 = por %p113, %p114
    %p116 = scmp.le.s32.totalorder 1, %s9
    %p117 = scmp.lt.s32.totalorder %s9, 3
    %p118 = pnand %p116, %p117
    %p119 = pneg %p118
    // Predicated region
    $region9: #{basic_block.6} parent=5 // pred_check
      _
    $region10: #{basic_block.6} parent=5 // pred_check_branch
      %121 = sbr.rel (%p118) target = $region12
    $region11: #{basic_block.6} parent=5 // pred_region
      %s122 = ssub.s32 %s9, 1
      // Predicated region
      $region13: #{basic_block.6} parent=11 // pred_check
        %p123 = pneg %p56
      $region14: #{basic_block.6} parent=11 // pred_check_branch
        %125 = sbr.rel (%p123) target = $region16
      $region15: #{basic_block.6} parent=11 // pred_region
        _
      $region16: #{basic_block.6} parent=11 // pred_fallthru
        _
    $region12: #{basic_block.6} parent=5 // pred_fallthru
      _
    %p126 = scmp.lt.s32.totalorder %s9, 2
    // Predicated region
    $region17: #{basic_block.6} parent=5 // pred_check
      %p127 = pneg %p126
    $region18: #{basic_block.6} parent=5 // pred_check_branch
      %129 = sbr.rel (%p127) target = $region20
    $region19: #{basic_block.6} parent=5 // pred_region
      // Predicated region
      $region21: #{basic_block.6} parent=19 // pred_check
        %p130 = pneg %p29
      $region22: #{basic_block.6} parent=19 // pred_check_branch
        %132 = sbr.rel (%p130) target = $region24
      $region23: #{basic_block.6} parent=19 // pred_region
        %s133 = smul.u32 16, %s9
        %p134 = scmp.lt.s32.totalorder %s133, 31
        %s135 = scalar_select %p134, %s133, 31
        %s136 = smul.addr %s135, 4
        %s137 = scalar_lea.vmem %s0, %s136
        %s138 = smul.u32 16, %s9
      $region24: #{basic_block.6} parent=19 // pred_fallthru
        _
      // Predicated region
      $region25: #{basic_block.6} parent=19 // pred_check
        %p139 = pneg %p76
      $region26: #{basic_block.6} parent=19 // pred_check_branch
        %141 = sbr.rel (%p139) target = $region28
      $region27: #{basic_block.6} parent=19 // pred_region
        %s142 = smul.u32 16, %s9
        %p143 = scmp.lt.s32.totalorder %s142, 31
        %s144 = scalar_select %p143, %s142, 31
        %s145 = smul.addr %s144, 8
        %s146 = scalar_lea.vmem %s2, %s145
        %s147 = smul.u32 16, %s9
      $region28: #{basic_block.6} parent=19 // pred_fallthru
        _
    $region20: #{basic_block.6} parent=5 // pred_fallthru
      _
    %p148 = scmp.le.s32.totalorder 1, %s9
    %p149 = scmp.lt.s32.totalorder %s9, 3
    %p150 = pnand %p148, %p149
    %p151 = pneg %p150
    // Predicated region
    $region29: #{basic_block.6} parent=5 // pred_check
      _
    $region30: #{basic_block.6} parent=5 // pred_check_branch
      %153 = sbr.rel (%p150) target = $region32
    $region31: #{basic_block.6} parent=5 // pred_region
      %s154 = ssub.s32 %s9, 1
      %s155 = smul.u32 16, %s14
      %p156 = scmp.lt.s32.totalorder %s155, 31
      %s157 = scalar_select %p156, %s155, 31
      %s158 = smul.addr %s157, 4
      %s159 = scalar_lea.vmem %s0, %s158
      %p160 = pneg %p35
      %p161 = pneg %p32
      %p162 = pneg %p56
      %p163 = pneg %p53
      %s164 = smul.u32 16, %s14
      %p165 = scmp.lt.s32.totalorder %s164, 31
      %s166 = scalar_select %p165, %s164, 31
      %s167 = smul.addr %s166, 8
      %s168 = scalar_lea.vmem %s2, %s167
      %p169 = pneg %p82
      %p170 = pneg %p79
      %p171 = pneg %p108
      %p172 = pneg %p105
      %s173 = smul.u32 16, %s14
      %p174 = scmp.lt.s32.totalorder %s173, 31
      %s175 = scalar_select %p174, %s173, 31
      %s176 = smul.addr %s175, 4
      %s177 = scalar_lea.vmem %s3, %s176
      %s178 = smul.u32 16, %s14
      %p179 = scmp.lt.s32.totalorder %s178, 31
      %s180 = scalar_select %p179, %s178, 31
      %s181 = smul.addr %s180, 4
      %s182 = scalar_lea.vmem %s0, %s181
      %s183 = smul.u32 16, %s14
      %s184 = smul.u32 16, %s14
      %p185 = scmp.lt.s32.totalorder %s184, 31
      %s186 = scalar_select %p185, %s184, 31
      %s187 = smul.addr %s186, 8
      %s188 = scalar_lea.vmem %s2, %s187
      %s189 = smul.u32 16, %s14
      %s190 = smul.u32 16, %s14
      %p191 = scmp.lt.s32.totalorder %s190, 31
      %s192 = scalar_select %p191, %s190, 31
      %s193 = smul.addr %s192, 4
      %s194 = scalar_lea.vmem %s3, %s193
      %s195 = smul.u32 16, %s14
      %v196 = vld [vmem:[%s182] sm:$0xf]
      %v197 = vld [vmem:[%s182 + $0x4] sm:$0xf]
      %v198 = vld [vmem:[%s182 + $0x8] sm:$0xf]
      %v199 = vld [vmem:[%s182 + $0xc] sm:$0xf]
      %v200 = vld [vmem:[%s182 + $0x10] sm:$0xf]
      %v201 = vld [vmem:[%s182 + $0x14] sm:$0xf]
      %v202 = vld [vmem:[%s182 + $0x18] sm:$0xf]
      %v203 = vld [vmem:[%s182 + $0x1c] sm:$0xf]
      %v204 = vld [vmem:[%s182 + $0x20] sm:$0xf]
      %v205 = vld [vmem:[%s182 + $0x24] sm:$0xf]
      %v206 = vld [vmem:[%s182 + $0x28] sm:$0xf]
      %v207 = vld [vmem:[%s182 + $0x2c] sm:$0xf]
      %v208 = vld [vmem:[%s182 + $0x30] sm:$0xf]
      %v209 = vld [vmem:[%s182 + $0x34] sm:$0xf]
      %v210 = vld [vmem:[%s182 + $0x38] sm:$0xf]
      %v211 = vld [vmem:[%s182 + $0x3c] sm:$0xf]
      %v212 = vunpack.c.l.bf16 %v196
      %v213 = vunpack.c.l.bf16 %v197
      %v214 = vunpack.c.l.bf16 %v198
      %v215 = vunpack.c.l.bf16 %v199
      %v216 = vunpack.c.l.bf16 %v200
      %v217 = vunpack.c.l.bf16 %v201
      %v218 = vunpack.c.l.bf16 %v202
      %v219 = vunpack.c.l.bf16 %v203
      %v220 = vunpack.c.l.bf16 %v204
      %v221 = vunpack.c.l.bf16 %v205
      %v222 = vunpack.c.l.bf16 %v206
      %v223 = vunpack.c.l.bf16 %v207
      %v224 = vunpack.c.l.bf16 %v208
      %v225 = vunpack.c.l.bf16 %v209
      %v226 = vunpack.c.l.bf16 %v210
      %v227 = vunpack.c.l.bf16 %v211
      %v228 = vld [vmem:[%s1] sm:$0x1]
      %v229 = vlaneseq
      %v230 = vshrl.u32 %v229, 7
      %v231 = vsub.s32 0, %v230
      %v232 = vrot.slane %v228, %v231
      %v233 = vmul.f32 %v212, %v232
      %v234 = vmul.f32 %v213, %v232
      %v235 = vmul.f32 %v214, %v232
      %v236 = vmul.f32 %v215, %v232
      %v237 = vmul.f32 %v216, %v232
      %v238 = vmul.f32 %v217, %v232
      %v239 = vmul.f32 %v218, %v232
      %v240 = vmul.f32 %v219, %v232
      %v241 = vmul.f32 %v220, %v232
      %v242 = vmul.f32 %v221, %v232
      %v243 = vmul.f32 %v222, %v232
      %v244 = vmul.f32 %v223, %v232
      %v245 = vmul.f32 %v224, %v232
      %v246 = vmul.f32 %v225, %v232
      %v247 = vmul.f32 %v226, %v232
      %v248 = vmul.f32 %v227, %v232
      %v249 = vld [vmem:[%s1 + $0x1] sm:$0x1]
      %v250 = vlaneseq
      %v251 = vshrl.u32 %v250, 7
      %v252 = vsub.s32 0, %v251
      %v253 = vrot.slane %v249, %v252
      %v254 = vadd.f32 %v233, %v253
      %v255 = vadd.f32 %v234, %v253
      %v256 = vadd.f32 %v235, %v253
      %v257 = vadd.f32 %v236, %v253
      %v258 = vadd.f32 %v237, %v253
      %v259 = vadd.f32 %v238, %v253
      %v260 = vadd.f32 %v239, %v253
      %v261 = vadd.f32 %v240, %v253
      %v262 = vadd.f32 %v241, %v253
      %v263 = vadd.f32 %v242, %v253
      %v264 = vadd.f32 %v243, %v253
      %v265 = vadd.f32 %v244, %v253
      %v266 = vadd.f32 %v245, %v253
      %v267 = vadd.f32 %v246, %v253
      %v268 = vadd.f32 %v247, %v253
      %v269 = vadd.f32 %v248, %v253
      %v270 = vmax.f32 %v254, 0.0
      %v271 = vmax.f32 %v255, 0.0
      %v272 = vmax.f32 %v256, 0.0
      %v273 = vmax.f32 %v257, 0.0
      %v274 = vmax.f32 %v258, 0.0
      %v275 = vmax.f32 %v259, 0.0
      %v276 = vmax.f32 %v260, 0.0
      %v277 = vmax.f32 %v261, 0.0
      %v278 = vmax.f32 %v262, 0.0
      %v279 = vmax.f32 %v263, 0.0
      %v280 = vmax.f32 %v264, 0.0
      %v281 = vmax.f32 %v265, 0.0
      %v282 = vmax.f32 %v266, 0.0
      %v283 = vmax.f32 %v267, 0.0
      %v284 = vmax.f32 %v268, 0.0
      %v285 = vmax.f32 %v269, 0.0
      %v286 = vld [vmem:[%s188] sm:$0xff]
      %v287 = vld [vmem:[%s188 + $0x8] sm:$0xff]
      %v288 = vld [vmem:[%s188 + $0x10] sm:$0xff]
      %v289 = vld [vmem:[%s188 + $0x18] sm:$0xff]
      %v290 = vld [vmem:[%s188 + $0x20] sm:$0xff]
      %v291 = vld [vmem:[%s188 + $0x28] sm:$0xff]
      %v292 = vld [vmem:[%s188 + $0x30] sm:$0xff]
      %v293 = vld [vmem:[%s188 + $0x38] sm:$0xff]
      %v294 = vld [vmem:[%s188 + $0x40] sm:$0xff]
      %v295 = vld [vmem:[%s188 + $0x48] sm:$0xff]
      %v296 = vld [vmem:[%s188 + $0x50] sm:$0xff]
      %v297 = vld [vmem:[%s188 + $0x58] sm:$0xff]
      %v298 = vld [vmem:[%s188 + $0x60] sm:$0xff]
      %v299 = vld [vmem:[%s188 + $0x68] sm:$0xff]
      %v300 = vld [vmem:[%s188 + $0x70] sm:$0xff]
      %v301 = vld [vmem:[%s188 + $0x78] sm:$0xff]
      %303 = vset.pattern.permute.xlu0 0
      %304 = vperm.xlu0 %303, %v286
      %v305 = vpop.permute.xlu0 %304
      %308 = vset.pattern.permute.xlu0 0
      %309 = vperm.xlu0 %308, %v287
      %v310 = vpop.permute.xlu0 %309
      %313 = vset.pattern.permute.xlu0 0
      %314 = vperm.xlu0 %313, %v288
      %v315 = vpop.permute.xlu0 %314
      %318 = vset.pattern.permute.xlu0 0
      %319 = vperm.xlu0 %318, %v289
      %v320 = vpop.permute.xlu0 %319
      %323 = vset.pattern.permute.xlu0 0
      %324 = vperm.xlu0 %323, %v290
      %v325 = vpop.permute.xlu0 %324
      %328 = vset.pattern.permute.xlu0 0
      %329 = vperm.xlu0 %328, %v291
      %v330 = vpop.permute.xlu0 %329
      %333 = vset.pattern.permute.xlu0 0
      %334 = vperm.xlu0 %333, %v292
      %v335 = vpop.permute.xlu0 %334
      %338 = vset.pattern.permute.xlu0 0
      %339 = vperm.xlu0 %338, %v293
      %v340 = vpop.permute.xlu0 %339
      %343 = vset.pattern.permute.xlu0 0
      %344 = vperm.xlu0 %343, %v294
      %v345 = vpop.permute.xlu0 %344
      %348 = vset.pattern.permute.xlu0 0
      %349 = vperm.xlu0 %348, %v295
      %v350 = vpop.permute.xlu0 %349
      %353 = vset.pattern.permute.xlu0 0
      %354 = vperm.xlu0 %353, %v296
      %v355 = vpop.permute.xlu0 %354
      %358 = vset.pattern.permute.xlu0 0
      %359 = vperm.xlu0 %358, %v297
      %v360 = vpop.permute.xlu0 %359
      %363 = vset.pattern.permute.xlu0 0
      %364 = vperm.xlu0 %363, %v298
      %v365 = vpop.permute.xlu0 %364
      %368 = vset.pattern.permute.xlu0 0
      %369 = vperm.xlu0 %368, %v299
      %v370 = vpop.permute.xlu0 %369
      %373 = vset.pattern.permute.xlu0 0
      %374 = vperm.xlu0 %373, %v300
      %v375 = vpop.permute.xlu0 %374
      %378 = vset.pattern.permute.xlu0 0
      %379 = vperm.xlu0 %378, %v301
      %v380 = vpop.permute.xlu0 %379
      %v382 = vmul.f32 %v270, %v305
      %v383 = vmul.f32 %v271, %v310
      %v384 = vmul.f32 %v272, %v315
      %v385 = vmul.f32 %v273, %v320
      %v386 = vmul.f32 %v274, %v325
      %v387 = vmul.f32 %v275, %v330
      %v388 = vmul.f32 %v276, %v335
      %v389 = vmul.f32 %v277, %v340
      %v390 = vmul.f32 %v278, %v345
      %v391 = vmul.f32 %v279, %v350
      %v392 = vmul.f32 %v280, %v355
      %v393 = vmul.f32 %v281, %v360
      %v394 = vmul.f32 %v282, %v365
      %v395 = vmul.f32 %v283, %v370
      %v396 = vmul.f32 %v284, %v375
      %v397 = vmul.f32 %v285, %v380
      %v398 = vpack.c.bf16 %v383, %v382
      %v399 = vpack.c.bf16 %v385, %v384
      %v400 = vpack.c.bf16 %v387, %v386
      %v401 = vpack.c.bf16 %v389, %v388
      %v402 = vpack.c.bf16 %v391, %v390
      %v403 = vpack.c.bf16 %v393, %v392
      %v404 = vpack.c.bf16 %v395, %v394
      %v405 = vpack.c.bf16 %v397, %v396
      %v414 = vunpack.c.l.b16 %v398
      %v415 = vunpack.c.h.b16 %v398
      %v416 = vunpack.c.l.b16 %v399
      %v417 = vunpack.c.h.b16 %v399
      %v418 = vunpack.c.l.b16 %v400
      %v419 = vunpack.c.h.b16 %v400
      %v420 = vunpack.c.l.b16 %v401
      %v421 = vunpack.c.h.b16 %v401
      %v422 = vunpack.c.l.b16 %v402
      %v423 = vunpack.c.h.b16 %v402
      %v424 = vunpack.c.l.b16 %v403
      %v425 = vunpack.c.h.b16 %v403
      %v426 = vunpack.c.l.b16 %v404
      %v427 = vunpack.c.h.b16 %v404
      %v428 = vunpack.c.l.b16 %v405
      %v429 = vunpack.c.h.b16 %v405
      %v430 = vpack.c.b16 %v414, %v414
      %v431 = vpack.c.b16 %v415, %v415
      %v432 = vpack.c.b16 %v416, %v416
      %v433 = vpack.c.b16 %v417, %v417
      %v434 = vpack.c.b16 %v418, %v418
      %v435 = vpack.c.b16 %v419, %v419
      %v436 = vpack.c.b16 %v420, %v420
      %v437 = vpack.c.b16 %v421, %v421
      %v438 = vpack.c.b16 %v422, %v422
      %v439 = vpack.c.b16 %v423, %v423
      %v440 = vpack.c.b16 %v424, %v424
      %v441 = vpack.c.b16 %v425, %v425
      %v442 = vpack.c.b16 %v426, %v426
      %v443 = vpack.c.b16 %v427, %v427
      %v444 = vpack.c.b16 %v428, %v428
      %v445 = vpack.c.b16 %v429, %v429
      %462 = vst [vmem:[%s194] sm:$0xf] %v430
      %463 = vst [vmem:[%s194 + $0x4] sm:$0xf] %v431
      %464 = vst [vmem:[%s194 + $0x8] sm:$0xf] %v432
      %465 = vst [vmem:[%s194 + $0xc] sm:$0xf] %v433
      %466 = vst [vmem:[%s194 + $0x10] sm:$0xf] %v434
      %467 = vst [vmem:[%s194 + $0x14] sm:$0xf] %v435
      %468 = vst [vmem:[%s194 + $0x18] sm:$0xf] %v436
      %469 = vst [vmem:[%s194 + $0x1c] sm:$0xf] %v437
      %470 = vst [vmem:[%s194 + $0x20] sm:$0xf] %v438
      %471 = vst [vmem:[%s194 + $0x24] sm:$0xf] %v439
      %472 = vst [vmem:[%s194 + $0x28] sm:$0xf] %v440
      %473 = vst [vmem:[%s194 + $0x2c] sm:$0xf] %v441
      %474 = vst [vmem:[%s194 + $0x30] sm:$0xf] %v442
      %475 = vst [vmem:[%s194 + $0x34] sm:$0xf] %v443
      %476 = vst [vmem:[%s194 + $0x38] sm:$0xf] %v444
      %477 = vst [vmem:[%s194 + $0x3c] sm:$0xf] %v445
      %s478 = smul.u32 16, %s14
      %p479 = scmp.lt.s32.totalorder %s478, 31
      %s480 = scalar_select %p479, %s478, 31
      %s481 = smul.addr %s480, 4
      %s482 = scalar_lea.vmem %s3, %s481
      // Predicated region
      $region33: #{basic_block.6} parent=31 // pred_check
        %p483 = pneg %p105
      $region34: #{basic_block.6} parent=31 // pred_check_branch
        %485 = sbr.rel (%p483) target = $region36
      $region35: #{basic_block.6} parent=31 // pred_region
        %s486 = smul.u32 16, %s14
      $region36: #{basic_block.6} parent=31 // pred_fallthru
        _
    $region32: #{basic_block.6} parent=5 // pred_fallthru
      _
    %p487 = scmp.le.s32.totalorder 2, %s9
    // Predicated region
    $region37: #{basic_block.6} parent=5 // pred_check
      %p488 = pneg %p487
    $region38: #{basic_block.6} parent=5 // pred_check_branch
      %490 = sbr.rel (%p488) target = $region40
    $region39: #{basic_block.6} parent=5 // pred_region
      %s491 = ssub.s32 %s9, 2
      // Predicated region
      $region41: #{basic_block.6} parent=39 // pred_check
        %p492 = pneg %p111
      $region42: #{basic_block.6} parent=39 // pred_check_branch
        %494 = sbr.rel (%p492) target = $region44
      $region43: #{basic_block.6} parent=39 // pred_region
        %s495 = smul.u32 16, %s15
        %p496 = scmp.lt.s32.totalorder %s495, 31
        %s497 = scalar_select %p496, %s495, 31
        %s498 = smul.addr %s497, 4
        %s499 = scalar_lea.vmem %s3, %s498
      $region44: #{basic_block.6} parent=39 // pred_fallthru
        _
    $region40: #{basic_block.6} parent=5 // pred_fallthru
      _
  $region6: #{basic_block.6} parent=0 // loop_footer
    %s13 = sadd.s32 1, %s9
  $region7: #{basic_block.6} parent=0 // loop_footer_branch
    %8 = sbr.rel target = $region3
  $region8: #{basic_block.6} parent=0 // loop_exit
    _

// kernel: basic_block.5
$region0: #{basic_block.5}
  #allocation0 [shape = 'u32[]', space=smem, size = 0x4, offset = 0x4, fixed_abs, tag = 'smem constant byte address 0x4 - core index']
  #allocation1 [shape = 'u32[144,128]{1,0:T(1,128)}', space=vmem, size = 0x12000, scoped, tag = 'internal scratch']
  %s0 = inlined_call_operand.vmem [shape: bf16[256,128], index: 0, kind: input, shape index: {}]
  %s1 = inlined_call_operand.vmem [shape: bf16[128,128], index: 1, kind: input, shape index: {}]
  %s2 = inlined_call_operand.vmem [shape: f32[256,1], index: 2, kind: input, shape index: {}]
  %s3 = inlined_call_operand.vmem [shape: bf16[256,128], index: 3, kind: output, shape index: {0}]
  %s4 = inlined_call_operand.vmem [shape: f32[2,8,128], index: 4, kind: output, shape index: {1}]
  %5 = xla_tuple %s3, %s4
  %s6 = sld [smem:[#allocation0]]
  $region53: #{basic_block.5} parent=0
    _
  %s8 = ssub.s32 1, %s6
  %s9 = scalar_select 0, %s8, %s6
  loop: start=0, step=1, limit=4
  $region2: #{basic_block.5} parent=0 // loop_pre_header
    _
  $region3: #{basic_block.5} parent=0 // loop_header
    %s11 = sphi 0, %s15
    %p12 = scmp.ge.s32.totalorder %s11, 4
    %s21 = sphi 0, %s23
    %s24 = sphi 0, %s21
    %s25 = sphi 0, %s24
    %s41 = sphi 0, %s25
    %s45 = sphi 0, %s45
    %s47 = sphi 0, %s45
    %s48 = sphi 0, %s47
    %s62 = sphi 0, %s48
    %s68 = sphi 0, %s70
    %s71 = sphi 0, %s68
    %s72 = sphi 0, %s71
    %s88 = sphi 0, %s72
    %s94 = sphi 0, %s96
    %s97 = sphi 0, %s94
    %s98 = sphi 0, %s97
    %s114 = sphi 0, %s98
    %s120 = sphi 0, %s122
    %s123 = sphi 0, %s120
    %s124 = sphi 0, %s123
    %s140 = sphi 0, %s124
  $region4: #{basic_block.5} parent=0 // loop_header_branch
    %14 = sbr.rel (%p12) target = $region8
  $region5: #{basic_block.5} parent=0 // loop_body
    %s16 = ssub.s32 %s11, 1
    %s17 = ssub.s32 %s11, 2
    %s18 = sadd.s32 %s11, 1
    %s19 = ssub.s32 %s11, %s18
    %p20 = scmp.eq.s32.totalorder %s19, 0
    %s22 = sadd.s32 %s21, 1
    %s23 = scalar_select %p20, %s21, %s22
    %p26 = pneg %p20
    %p27 = scmp.eq.s32.totalorder %s11, 1
    %p28 = por %p26, %p27
    %p29 = scmp.ne.s32.totalorder %s21, %s24
    %p30 = scmp.eq.s32.totalorder %s11, 0
    %p31 = por %p29, %p30
    %p32 = scmp.ne.s32.totalorder %s21, %s24
    %p33 = scmp.eq.s32.totalorder %s16, 1
    %p34 = por %p32, %p33
    %p35 = scmp.ne.s32.totalorder %s24, %s25
    %p36 = scmp.eq.s32.totalorder %s16, 0
    %p37 = por %p35, %p36
    %p38 = scmp.ne.s32.totalorder %s24, %s25
    %p39 = scmp.eq.s32.totalorder %s17, 1
    %p40 = por %p38, %p39
    %p42 = scmp.ne.s32.totalorder %s25, %s41
    %p43 = scmp.eq.s32.totalorder %s17, 0
    %p44 = por %p42, %p43
    %s46 = sadd.s32 %s45, 1
    %p49 = scmp.eq.s32.totalorder %s11, 1
    %p50 = scmp.ne.s32.totalorder %s45, %s47
    %p51 = scmp.eq.s32.totalorder %s11, 0
    %p52 = por %p50, %p51
    %p53 = scmp.ne.s32.totalorder %s45, %s47
    %p54 = scmp.eq.s32.totalorder %s16, 1
    %p55 = por %p53, %p54
    %p56 = scmp.ne.s32.totalorder %s47, %s48
    %p57 = scmp.eq.s32.totalorder %s16, 0
    %p58 = por %p56, %p57
    %p59 = scmp.ne.s32.totalorder %s47, %s48
    %p60 = scmp.eq.s32.totalorder %s17, 1
    %p61 = por %p59, %p60
    %p63 = scmp.ne.s32.totalorder %s48, %s62
    %p64 = scmp.eq.s32.totalorder %s17, 0
    %p65 = por %p63, %p64
    %s66 = ssub.s32 %s11, %s18
    %p67 = scmp.eq.s32.totalorder %s66, 0
    %s69 = sadd.s32 %s68, 1
    %s70 = scalar_select %p67, %s68, %s69
    %p73 = pneg %p67
    %p74 = scmp.eq.s32.totalorder %s11, 1
    %p75 = por %p73, %p74
    %p76 = scmp.ne.s32.totalorder %s68, %s71
    %p77 = scmp.eq.s32.totalorder %s11, 0
    %p78 = por %p76, %p77
    %p79 = scmp.ne.s32.totalorder %s68, %s71
    %p80 = scmp.eq.s32.totalorder %s16, 1
    %p81 = por %p79, %p80
    %p82 = scmp.ne.s32.totalorder %s71, %s72
    %p83 = scmp.eq.s32.totalorder %s16, 0
    %p84 = por %p82, %p83
    %p85 = scmp.ne.s32.totalorder %s71, %s72
    %p86 = scmp.eq.s32.totalorder %s17, 1
    %p87 = por %p85, %p86
    %p89 = scmp.ne.s32.totalorder %s72, %s88
    %p90 = scmp.eq.s32.totalorder %s17, 0
    %p91 = por %p89, %p90
    %s92 = ssub.s32 %s11, %s18
    %p93 = scmp.eq.s32.totalorder %s92, 0
    %s95 = sadd.s32 %s94, 1
    %s96 = scalar_select %p93, %s94, %s95
    %p99 = pneg %p93
    %p100 = scmp.eq.s32.totalorder %s11, 1
    %p101 = por %p99, %p100
    %p102 = scmp.ne.s32.totalorder %s94, %s97
    %p103 = scmp.eq.s32.totalorder %s11, 0
    %p104 = por %p102, %p103
    %p105 = scmp.ne.s32.totalorder %s94, %s97
    %p106 = scmp.eq.s32.totalorder %s16, 1
    %p107 = por %p105, %p106
    %p108 = scmp.ne.s32.totalorder %s97, %s98
    %p109 = scmp.eq.s32.totalorder %s16, 0
    %p110 = por %p108, %p109
    %p111 = scmp.ne.s32.totalorder %s97, %s98
    %p112 = scmp.eq.s32.totalorder %s17, 1
    %p113 = por %p111, %p112
    %p115 = scmp.ne.s32.totalorder %s98, %s114
    %p116 = scmp.eq.s32.totalorder %s17, 0
    %p117 = por %p115, %p116
    %s118 = ssub.s32 %s11, %s18
    %p119 = scmp.eq.s32.totalorder %s118, 0
    %s121 = sadd.s32 %s120, 1
    %s122 = scalar_select %p119, %s120, %s121
    %p125 = pneg %p119
    %p126 = scmp.eq.s32.totalorder %s11, 1
    %p127 = por %p125, %p126
    %p128 = scmp.ne.s32.totalorder %s120, %s123
    %p129 = scmp.eq.s32.totalorder %s11, 0
    %p130 = por %p128, %p129
    %p131 = scmp.ne.s32.totalorder %s120, %s123
    %p132 = scmp.eq.s32.totalorder %s16, 1
    %p133 = por %p131, %p132
    %p134 = scmp.ne.s32.totalorder %s123, %s124
    %p135 = scmp.eq.s32.totalorder %s16, 0
    %p136 = por %p134, %p135
    %p137 = scmp.ne.s32.totalorder %s123, %s124
    %p138 = scmp.eq.s32.totalorder %s17, 1
    %p139 = por %p137, %p138
    %p141 = scmp.ne.s32.totalorder %s124, %s140
    %p142 = scmp.eq.s32.totalorder %s17, 0
    %p143 = por %p141, %p142
    %p144 = scmp.le.s32.totalorder 1, %s11
    %p145 = scmp.lt.s32.totalorder %s11, 3
    %p146 = pnand %p144, %p145
    %p147 = pneg %p146
    // Predicated region
    $region9: #{basic_block.5} parent=5 // pred_check
      _
    $region10: #{basic_block.5} parent=5 // pred_check_branch
      %149 = sbr.rel (%p146) target = $region12
    $region11: #{basic_block.5} parent=5 // pred_region
      %s150 = ssub.s32 %s11, 1
      // Predicated region
      $region13: #{basic_block.5} parent=11 // pred_check
        %p151 = pneg %p58
      $region14: #{basic_block.5} parent=11 // pred_check_branch
        %153 = sbr.rel (%p151) target = $region16
      $region15: #{basic_block.5} parent=11 // pred_region
        _
      $region16: #{basic_block.5} parent=11 // pred_fallthru
        _
    $region12: #{basic_block.5} parent=5 // pred_fallthru
      _
    %p154 = scmp.lt.s32.totalorder %s11, 2
    // Predicated region
    $region17: #{basic_block.5} parent=5 // pred_check
      %p155 = pneg %p154
    $region18: #{basic_block.5} parent=5 // pred_check_branch
      %157 = sbr.rel (%p155) target = $region20
    $region19: #{basic_block.5} parent=5 // pred_region
      // Predicated region
      $region21: #{basic_block.5} parent=19 // pred_check
        %p158 = pneg %p31
      $region22: #{basic_block.5} parent=19 // pred_check_branch
        %160 = sbr.rel (%p158) target = $region24
      $region23: #{basic_block.5} parent=19 // pred_region
        %s161 = smul.u32 16, %s11
        %p162 = scmp.lt.s32.totalorder %s161, 31
        %s163 = scalar_select %p162, %s161, 31
        %s164 = smul.addr %s163, 4
        %s165 = scalar_lea.vmem %s0, %s164
        %s166 = smul.u32 16, %s11
      $region24: #{basic_block.5} parent=19 // pred_fallthru
        _
      // Predicated region
      $region25: #{basic_block.5} parent=19 // pred_check
        %p167 = pneg %p78
      $region26: #{basic_block.5} parent=19 // pred_check_branch
        %169 = sbr.rel (%p167) target = $region28
      $region27: #{basic_block.5} parent=19 // pred_region
        %s170 = smul.u32 16, %s11
        %p171 = scmp.lt.s32.totalorder %s170, 31
        %s172 = scalar_select %p171, %s170, 31
        %s173 = smul.addr %s172, 8
        %s174 = scalar_lea.vmem %s2, %s173
        %s175 = smul.u32 16, %s11
      $region28: #{basic_block.5} parent=19 // pred_fallthru
        _
    $region20: #{basic_block.5} parent=5 // pred_fallthru
      _
    %p176 = scmp.le.s32.totalorder 1, %s11
    %p177 = scmp.lt.s32.totalorder %s11, 3
    %p178 = pnand %p176, %p177
    %p179 = pneg %p178
    // Predicated region
    $region29: #{basic_block.5} parent=5 // pred_check
      _
    $region30: #{basic_block.5} parent=5 // pred_check_branch
      %181 = sbr.rel (%p178) target = $region32
    $region31: #{basic_block.5} parent=5 // pred_region
      %s182 = ssub.s32 %s11, 1
      %s183 = smul.u32 16, %s16
      %p184 = scmp.lt.s32.totalorder %s183, 31
      %s185 = scalar_select %p184, %s183, 31
      %s186 = smul.addr %s185, 4
      %s187 = scalar_lea.vmem %s0, %s186
      %p188 = pneg %p37
      %p189 = pneg %p34
      %p190 = pneg %p58
      %p191 = pneg %p55
      %s192 = smul.u32 16, %s16
      %p193 = scmp.lt.s32.totalorder %s192, 31
      %s194 = scalar_select %p193, %s192, 31
      %s195 = smul.addr %s194, 8
      %s196 = scalar_lea.vmem %s2, %s195
      %p197 = pneg %p84
      %p198 = pneg %p81
      %p199 = pneg %p110
      %p200 = pneg %p107
      %s201 = smul.u32 16, %s16
      %p202 = scmp.lt.s32.totalorder %s201, 31
      %s203 = scalar_select %p202, %s201, 31
      %s204 = smul.addr %s203, 4
      %s205 = scalar_lea.vmem %s3, %s204
      %p206 = pneg %p136
      %p207 = pneg %p133
      %p208 = scmp.lt.s32.totalorder %s16, 1
      %s209 = scalar_select %p208, %s16, 1
      %s210 = smul.addr %s209, 8
      %s211 = scalar_lea.vmem %s4, %s210
      %s212 = smul.u32 16, %s16
      %p213 = scmp.lt.s32.totalorder %s212, 31
      %s214 = scalar_select %p213, %s212, 31
      %s215 = smul.addr %s214, 4
      %s216 = scalar_lea.vmem %s0, %s215
      %s217 = smul.u32 16, %s16
      %s218 = smul.u32 16, %s16
      %p219 = scmp.lt.s32.totalorder %s218, 31
      %s220 = scalar_select %p219, %s218, 31
      %s221 = smul.addr %s220, 8
      %s222 = scalar_lea.vmem %s2, %s221
      %s223 = smul.u32 16, %s16
      %s224 = smul.u32 16, %s16
      %p225 = scmp.lt.s32.totalorder %s224, 31
      %s226 = scalar_select %p225, %s224, 31
      %s227 = smul.addr %s226, 4
      %s228 = scalar_lea.vmem %s3, %s227
      %s229 = smul.u32 16, %s16
      %p230 = scmp.lt.s32.totalorder %s16, 1
      %s231 = scalar_select %p230, %s16, 1
      %s232 = smul.addr %s231, 8
      %s233 = scalar_lea.vmem %s4, %s232
      %v235 = vld [vmem:[%s216] sm:$0xf]
      %v236 = vld [vmem:[%s216 + $0x4] sm:$0xf]
      %v237 = vld [vmem:[%s216 + $0x8] sm:$0xf]
      %v238 = vld [vmem:[%s216 + $0xc] sm:$0xf]
      %v239 = vld [vmem:[%s216 + $0x10] sm:$0xf]
      %v240 = vld [vmem:[%s216 + $0x14] sm:$0xf]
      %v241 = vld [vmem:[%s216 + $0x18] sm:$0xf]
      %v242 = vld [vmem:[%s216 + $0x1c] sm:$0xf]
      %v243 = vld [vmem:[%s216 + $0x20] sm:$0xf]
      %v244 = vld [vmem:[%s216 + $0x24] sm:$0xf]
      %v245 = vld [vmem:[%s216 + $0x28] sm:$0xf]
      %v246 = vld [vmem:[%s216 + $0x2c] sm:$0xf]
      %v247 = vld [vmem:[%s216 + $0x30] sm:$0xf]
      %v248 = vld [vmem:[%s216 + $0x34] sm:$0xf]
      %v249 = vld [vmem:[%s216 + $0x38] sm:$0xf]
      %v250 = vld [vmem:[%s216 + $0x3c] sm:$0xf]
      %v251 = vld [vmem:[%s1] sm:$0xf]
      %v252 = vld [vmem:[%s1 + $0x4] sm:$0xf]
      %v253 = vld [vmem:[%s1 + $0x8] sm:$0xf]
      %v254 = vld [vmem:[%s1 + $0xc] sm:$0xf]
      %v255 = vld [vmem:[%s1 + $0x10] sm:$0xf]
      %v256 = vld [vmem:[%s1 + $0x14] sm:$0xf]
      %v257 = vld [vmem:[%s1 + $0x18] sm:$0xf]
      %v258 = vld [vmem:[%s1 + $0x1c] sm:$0xf]
      %v259 = vld [vmem:[%s1 + $0x20] sm:$0xf]
      %v260 = vld [vmem:[%s1 + $0x24] sm:$0xf]
      %v261 = vld [vmem:[%s1 + $0x28] sm:$0xf]
      %v262 = vld [vmem:[%s1 + $0x2c] sm:$0xf]
      %v263 = vld [vmem:[%s1 + $0x30] sm:$0xf]
      %v264 = vld [vmem:[%s1 + $0x34] sm:$0xf]
      %v265 = vld [vmem:[%s1 + $0x38] sm:$0xf]
      %v266 = vld [vmem:[%s1 + $0x3c] sm:$0xf]
      %v283 = vunpack.c.l.b16 %v235
      %v284 = vunpack.c.l.b16 %v236
      %v285 = vunpack.c.l.b16 %v237
      %v286 = vunpack.c.l.b16 %v238
      %v287 = vunpack.c.l.b16 %v239
      %v288 = vunpack.c.l.b16 %v240
      %v289 = vunpack.c.l.b16 %v241
      %v290 = vunpack.c.l.b16 %v242
      %v291 = vunpack.c.l.b16 %v243
      %v292 = vunpack.c.l.b16 %v244
      %v293 = vunpack.c.l.b16 %v245
      %v294 = vunpack.c.l.b16 %v246
      %v295 = vunpack.c.l.b16 %v247
      %v296 = vunpack.c.l.b16 %v248
      %v297 = vunpack.c.l.b16 %v249
      %v298 = vunpack.c.l.b16 %v250
      %v299 = vpack.c.b16 %v284, %v283
      %v300 = vpack.c.b16 %v286, %v285
      %v301 = vpack.c.b16 %v288, %v287
      %v302 = vpack.c.b16 %v290, %v289
      %v303 = vpack.c.b16 %v292, %v291
      %v304 = vpack.c.b16 %v294, %v293
      %v305 = vpack.c.b16 %v296, %v295
      %v306 = vpack.c.b16 %v298, %v297
      %v331 = vunpack.c.l.b16 %v251
      %v332 = vunpack.c.l.b16 %v252
      %v333 = vunpack.c.l.b16 %v253
      %v334 = vunpack.c.l.b16 %v254
      %v335 = vunpack.c.l.b16 %v255
      %v336 = vunpack.c.l.b16 %v256
      %v337 = vunpack.c.l.b16 %v257
      %v338 = vunpack.c.l.b16 %v258
      %v339 = vunpack.c.l.b16 %v259
      %v340 = vunpack.c.l.b16 %v260
      %v341 = vunpack.c.l.b16 %v261
      %v342 = vunpack.c.l.b16 %v262
      %v343 = vunpack.c.l.b16 %v263
      %v344 = vunpack.c.l.b16 %v264
      %v345 = vunpack.c.l.b16 %v265
      %v346 = vunpack.c.l.b16 %v266
      %v347 = vpack.c.b16 %v332, %v331
      %v348 = vpack.c.b16 %v334, %v333
      %v349 = vpack.c.b16 %v336, %v335
      %v350 = vpack.c.b16 %v338, %v337
      %v351 = vpack.c.b16 %v340, %v339
      %v352 = vpack.c.b16 %v342, %v341
      %v353 = vpack.c.b16 %v344, %v343
      %v354 = vpack.c.b16 %v346, %v345
      %363 = vmatprep.subr.bf16.mxu0 0
      %364 = vmatpush1.bf16.msra.mxu0 %v347
      %365 = vmatprep.subr.bf16.mxu0 0
      %366 = vmatpush1.bf16.msra.mxu0 %v348
      %367 = vmatprep.subr.bf16.mxu0 0
      %368 = vmatpush1.bf16.msra.mxu0 %v349
      %369 = vmatprep.subr.bf16.mxu0 0
      %370 = vmatpush1.bf16.msra.mxu0 %v350
      %371 = vmatprep.subr.bf16.mxu0 0
      %372 = vmatpush1.bf16.msra.mxu0 %v351
      %373 = vmatprep.subr.bf16.mxu0 0
      %374 = vmatpush1.bf16.msra.mxu0 %v352
      %375 = vmatprep.subr.bf16.mxu0 0
      %376 = vmatpush1.bf16.msra.mxu0 %v353
      %377 = vmatprep.subr.bf16.mxu0 0
      %378 = vmatpush1.bf16.msra.mxu0 %v354
      %379 = vmatprep.subr.bf16.mxu0 0
      %380 = vmatpush1.bf16.msra.mxu0 0
      %381 = vmatprep.subr.bf16.mxu0 0
      %382 = vmatpush1.bf16.msra.mxu0 0
      %383 = vmatprep.subr.bf16.mxu0 0
      %384 = vmatpush1.bf16.msra.mxu0 0
      %385 = vmatprep.subr.bf16.mxu0 0
      %386 = vmatpush1.bf16.msra.mxu0 0
      %387 = vmatprep.subr.bf16.mxu0 0
      %388 = vmatpush1.bf16.msra.mxu0 0
      %389 = vmatprep.subr.bf16.mxu0 0
      %390 = vmatpush1.bf16.msra.mxu0 0
      %391 = vmatprep.subr.bf16.mxu0 0
      %392 = vmatpush1.bf16.msra.mxu0 0
      %393 = vmatprep.subr.bf16.mxu0 0
      %394 = vmatpush1.bf16.msra.mxu0 0
      %395 = vmatprep.mubr.bf16.mxu0 0
      %396 = vmatmul.mubr.bf16.gmra.mrb[0].mxu0 %v299
      %v397 = vpop.f32.mrb[0].mxu0
      %v398 = vadd.f32 0.0, %v397
      %v399 = vpop.f32.mrb[0].mxu0
      %v400 = vpop.f32.mrb[0].mxu0
      %v401 = vadd.f32 0.0, %v400
      %v402 = vpop.f32.mrb[0].mxu0
      %403 = vmatprep.mubr.bf16.mxu0 0
      %404 = vmatmul.mubr.bf16.gmra.mrb[0].mxu0 %v300
      %v405 = vpop.f32.mrb[0].mxu0
      %v406 = vadd.f32 0.0, %v405
      %v407 = vpop.f32.mrb[0].mxu0
      %v408 = vpop.f32.mrb[0].mxu0
      %v409 = vadd.f32 0.0, %v408
      %v410 = vpop.f32.mrb[0].mxu0
      %411 = vmatprep.mubr.bf16.mxu0 0
      %412 = vmatmul.mubr.bf16.gmra.mrb[0].mxu0 %v301
      %v413 = vpop.f32.mrb[0].mxu0
      %v414 = vadd.f32 0.0, %v413
      %v415 = vpop.f32.mrb[0].mxu0
      %v416 = vpop.f32.mrb[0].mxu0
      %v417 = vadd.f32 0.0, %v416
      %v418 = vpop.f32.mrb[0].mxu0
      %419 = vmatprep.mubr.bf16.mxu0 0
      %420 = vmatmul.mubr.bf16.gmra.mrb[0].mxu0 %v302
      %v421 = vpop.f32.mrb[0].mxu0
      %v422 = vadd.f32 0.0, %v421
      %v423 = vpop.f32.mrb[0].mxu0
      %v424 = vpop.f32.mrb[0].mxu0
      %v425 = vadd.f32 0.0, %v424
      %v426 = vpop.f32.mrb[0].mxu0
      %427 = vmatprep.mubr.bf16.mxu0 0
      %428 = vmatmul.mubr.bf16.gmra.mrb[0].mxu0 %v303
      %v429 = vpop.f32.mrb[0].mxu0
      %v430 = vadd.f32 0.0, %v429
      %v431 = vpop.f32.mrb[0].mxu0
      %v432 = vpop.f32.mrb[0].mxu0
      %v433 = vadd.f32 0.0, %v432
      %v434 = vpop.f32.mrb[0].mxu0
      %435 = vmatprep.mubr.bf16.mxu0 0
      %436 = vmatmul.mubr.bf16.gmra.mrb[0].mxu0 %v304
      %v437 = vpop.f32.mrb[0].mxu0
      %v438 = vadd.f32 0.0, %v437
      %v439 = vpop.f32.mrb[0].mxu0
      %v440 = vpop.f32.mrb[0].mxu0
      %v441 = vadd.f32 0.0, %v440
      %v442 = vpop.f32.mrb[0].mxu0
      %443 = vmatprep.mubr.bf16.mxu0 0
      %444 = vmatmul.mubr.bf16.gmra.mrb[0].mxu0 %v305
      %v445 = vpop.f32.mrb[0].mxu0
      %v446 = vadd.f32 0.0, %v445
      %v447 = vpop.f32.mrb[0].mxu0
      %v448 = vpop.f32.mrb[0].mxu0
      %v449 = vadd.f32 0.0, %v448
      %v450 = vpop.f32.mrb[0].mxu0
      %451 = vmatprep.mubr.bf16.mxu0 0
      %452 = vmatmul.mubr.bf16.gmra.mrb[0].mxu0 %v306
      %v453 = vpop.f32.mrb[0].mxu0
      %v454 = vadd.f32 0.0, %v453
      %v455 = vpop.f32.mrb[0].mxu0
      %v456 = vpop.f32.mrb[0].mxu0
      %v457 = vadd.f32 0.0, %v456
      %v458 = vpop.f32.mrb[0].mxu0
      %459 = vdwg.mxu0
      %v460 = vpack.c.bf16 %v401, %v398
      %v461 = vpack.c.bf16 %v409, %v406
      %v462 = vpack.c.bf16 %v417, %v414
      %v463 = vpack.c.bf16 %v425, %v422
      %v464 = vpack.c.bf16 %v433, %v430
      %v465 = vpack.c.bf16 %v441, %v438
      %v466 = vpack.c.bf16 %v449, %v446
      %v467 = vpack.c.bf16 %v457, %v454
      %v476 = vunpack.c.l.b16 %v460
      %v477 = vunpack.c.h.b16 %v460
      %v478 = vunpack.c.l.b16 %v461
      %v479 = vunpack.c.h.b16 %v461
      %v480 = vunpack.c.l.b16 %v462
      %v481 = vunpack.c.h.b16 %v462
      %v482 = vunpack.c.l.b16 %v463
      %v483 = vunpack.c.h.b16 %v463
      %v484 = vunpack.c.l.b16 %v464
      %v485 = vunpack.c.h.b16 %v464
      %v486 = vunpack.c.l.b16 %v465
      %v487 = vunpack.c.h.b16 %v465
      %v488 = vunpack.c.l.b16 %v466
      %v489 = vunpack.c.h.b16 %v466
      %v490 = vunpack.c.l.b16 %v467
      %v491 = vunpack.c.h.b16 %v467
      %v492 = vpack.c.b16 %v476, %v476
      %v493 = vpack.c.b16 %v477, %v477
      %v494 = vpack.c.b16 %v478, %v478
      %v495 = vpack.c.b16 %v479, %v479
      %v496 = vpack.c.b16 %v480, %v480
      %v497 = vpack.c.b16 %v481, %v481
      %v498 = vpack.c.b16 %v482, %v482
      %v499 = vpack.c.b16 %v483, %v483
      %v500 = vpack.c.b16 %v484, %v484
      %v501 = vpack.c.b16 %v485, %v485
      %v502 = vpack.c.b16 %v486, %v486
      %v503 = vpack.c.b16 %v487, %v487
      %v504 = vpack.c.b16 %v488, %v488
      %v505 = vpack.c.b16 %v489, %v489
      %v506 = vpack.c.b16 %v490, %v490
      %v507 = vpack.c.b16 %v491, %v491
      %524 = vst [vmem:[%s228] sm:$0xf] %v492
      %525 = vst [vmem:[%s228 + $0x4] sm:$0xf] %v493
      %526 = vst [vmem:[%s228 + $0x8] sm:$0xf] %v494
      %527 = vst [vmem:[%s228 + $0xc] sm:$0xf] %v495
      %528 = vst [vmem:[%s228 + $0x10] sm:$0xf] %v496
      %529 = vst [vmem:[%s228 + $0x14] sm:$0xf] %v497
      %530 = vst [vmem:[%s228 + $0x18] sm:$0xf] %v498
      %531 = vst [vmem:[%s228 + $0x1c] sm:$0xf] %v499
      %532 = vst [vmem:[%s228 + $0x20] sm:$0xf] %v500
      %533 = vst [vmem:[%s228 + $0x24] sm:$0xf] %v501
      %534 = vst [vmem:[%s228 + $0x28] sm:$0xf] %v502
      %535 = vst [vmem:[%s228 + $0x2c] sm:$0xf] %v503
      %536 = vst [vmem:[%s228 + $0x30] sm:$0xf] %v504
      %537 = vst [vmem:[%s228 + $0x34] sm:$0xf] %v505
      %538 = vst [vmem:[%s228 + $0x38] sm:$0xf] %v506
      %539 = vst [vmem:[%s228 + $0x3c] sm:$0xf] %v507
      %v540 = vld [vmem:[%s222] sm:$0xff]
      %v541 = vld [vmem:[%s222 + $0x8] sm:$0xff]
      %v542 = vld [vmem:[%s222 + $0x10] sm:$0xff]
      %v543 = vld [vmem:[%s222 + $0x18] sm:$0xff]
      %v544 = vld [vmem:[%s222 + $0x20] sm:$0xff]
      %v545 = vld [vmem:[%s222 + $0x28] sm:$0xff]
      %v546 = vld [vmem:[%s222 + $0x30] sm:$0xff]
      %v547 = vld [vmem:[%s222 + $0x38] sm:$0xff]
      %v548 = vld [vmem:[%s222 + $0x40] sm:$0xff]
      %v549 = vld [vmem:[%s222 + $0x48] sm:$0xff]
      %v550 = vld [vmem:[%s222 + $0x50] sm:$0xff]
      %v551 = vld [vmem:[%s222 + $0x58] sm:$0xff]
      %v552 = vld [vmem:[%s222 + $0x60] sm:$0xff]
      %v553 = vld [vmem:[%s222 + $0x68] sm:$0xff]
      %v554 = vld [vmem:[%s222 + $0x70] sm:$0xff]
      %v555 = vld [vmem:[%s222 + $0x78] sm:$0xff]
      %557 = vset.pattern.permute.xlu0 0
      %558 = vperm.xlu0 %557, %v540
      %v559 = vpop.permute.xlu0 %558
      %562 = vset.pattern.permute.xlu0 0
      %563 = vperm.xlu0 %562, %v541
      %v564 = vpop.permute.xlu0 %563
      %567 = vset.pattern.permute.xlu0 0
      %568 = vperm.xlu0 %567, %v542
      %v569 = vpop.permute.xlu0 %568
      %572 = vset.pattern.permute.xlu0 0
      %573 = vperm.xlu0 %572, %v543
      %v574 = vpop.permute.xlu0 %573
      %577 = vset.pattern.permute.xlu0 0
      %578 = vperm.xlu0 %577, %v544
      %v579 = vpop.permute.xlu0 %578
      %582 = vset.pattern.permute.xlu0 0
      %583 = vperm.xlu0 %582, %v545
      %v584 = vpop.permute.xlu0 %583
      %587 = vset.pattern.permute.xlu0 0
      %588 = vperm.xlu0 %587, %v546
      %v589 = vpop.permute.xlu0 %588
      %592 = vset.pattern.permute.xlu0 0
      %593 = vperm.xlu0 %592, %v547
      %v594 = vpop.permute.xlu0 %593
      %597 = vset.pattern.permute.xlu0 0
      %598 = vperm.xlu0 %597, %v548
      %v599 = vpop.permute.xlu0 %598
      %602 = vset.pattern.permute.xlu0 0
      %603 = vperm.xlu0 %602, %v549
      %v604 = vpop.permute.xlu0 %603
      %607 = vset.pattern.permute.xlu0 0
      %608 = vperm.xlu0 %607, %v550
      %v609 = vpop.permute.xlu0 %608
      %612 = vset.pattern.permute.xlu0 0
      %613 = vperm.xlu0 %612, %v551
      %v614 = vpop.permute.xlu0 %613
      %617 = vset.pattern.permute.xlu0 0
      %618 = vperm.xlu0 %617, %v552
      %v619 = vpop.permute.xlu0 %618
      %622 = vset.pattern.permute.xlu0 0
      %623 = vperm.xlu0 %622, %v553
      %v624 = vpop.permute.xlu0 %623
      %627 = vset.pattern.permute.xlu0 0
      %628 = vperm.xlu0 %627, %v554
      %v629 = vpop.permute.xlu0 %628
      %632 = vset.pattern.permute.xlu0 0
      %633 = vperm.xlu0 %632, %v555
      %v634 = vpop.permute.xlu0 %633
      %v636 = vmul.f32 %v398, %v559
      %v637 = vmul.f32 %v401, %v564
      %v638 = vmul.f32 %v406, %v569
      %v639 = vmul.f32 %v409, %v574
      %v640 = vmul.f32 %v414, %v579
      %v641 = vmul.f32 %v417, %v584
      %v642 = vmul.f32 %v422, %v589
      %v643 = vmul.f32 %v425, %v594
      %v644 = vmul.f32 %v430, %v599
      %v645 = vmul.f32 %v433, %v604
      %v646 = vmul.f32 %v438, %v609
      %v647 = vmul.f32 %v441, %v614
      %v648 = vmul.f32 %v446, %v619
      %v649 = vmul.f32 %v449, %v624
      %v650 = vmul.f32 %v454, %v629
      %v651 = vmul.f32 %v457, %v634
      %v652 = vadd.f32 %v636, %v637
      %v653 = vadd.f32 %v652, %v638
      %v654 = vadd.f32 %v653, %v639
      %v655 = vadd.f32 %v654, %v640
      %v656 = vadd.f32 %v655, %v641
      %v657 = vadd.f32 %v656, %v642
      %v658 = vadd.f32 %v657, %v643
      %v659 = vadd.f32 %v658, %v644
      %v660 = vadd.f32 %v659, %v645
      %v661 = vadd.f32 %v660, %v646
      %v662 = vadd.f32 %v661, %v647
      %v663 = vadd.f32 %v662, %v648
      %v664 = vadd.f32 %v663, %v649
      %v665 = vadd.f32 %v664, %v650
      %v666 = vadd.f32 %v665, %v651
      %v667 = vrot.slane %v666, 4
      %v668 = vadd.f32 %v666, %v667
      %v669 = vrot.slane %v668, 2
      %v670 = vadd.f32 %v668, %v669
      %v671 = vrot.slane %v670, 1
      %v672 = vadd.f32 %v670, %v671
      %v673 = vmul.f32 %v636, %v398
      %v674 = vmul.f32 %v637, %v401
      %v675 = vmul.f32 %v638, %v406
      %v676 = vmul.f32 %v639, %v409
      %v677 = vmul.f32 %v640, %v414
      %v678 = vmul.f32 %v641, %v417
      %v679 = vmul.f32 %v642, %v422
      %v680 = vmul.f32 %v643, %v425
      %v681 = vmul.f32 %v644, %v430
      %v682 = vmul.f32 %v645, %v433
      %v683 = vmul.f32 %v646, %v438
      %v684 = vmul.f32 %v647, %v441
      %v685 = vmul.f32 %v648, %v446
      %v686 = vmul.f32 %v649, %v449
      %v687 = vmul.f32 %v650, %v454
      %v688 = vmul.f32 %v651, %v457
      %v689 = vadd.f32 %v673, %v674
      %v690 = vadd.f32 %v689, %v675
      %v691 = vadd.f32 %v690, %v676
      %v692 = vadd.f32 %v691, %v677
      %v693 = vadd.f32 %v692, %v678
      %v694 = vadd.f32 %v693, %v679
      %v695 = vadd.f32 %v694, %v680
      %v696 = vadd.f32 %v695, %v681
      %v697 = vadd.f32 %v696, %v682
      %v698 = vadd.f32 %v697, %v683
      %v699 = vadd.f32 %v698, %v684
      %v700 = vadd.f32 %v699, %v685
      %v701 = vadd.f32 %v700, %v686
      %v702 = vadd.f32 %v701, %v687
      %v703 = vadd.f32 %v702, %v688
      %v704 = vrot.slane %v703, 4
      %v705 = vadd.f32 %v703, %v704
      %v706 = vrot.slane %v705, 2
      %v707 = vadd.f32 %v705, %v706
      %v708 = vrot.slane %v707, 1
      %v709 = vadd.f32 %v707, %v708
      %710 = vst [vmem:[%s233] sm:$0x1] %v672
      %711 = vst [vmem:[%s233 + $0x1] sm:$0x1] %v709
      %712 = vst [vmem:[%s233 + $0x2] sm:$0x3f] 0.0
      %s713 = smul.u32 16, %s16
      %p714 = scmp.lt.s32.totalorder %s713, 31
      %s715 = scalar_select %p714, %s713, 31
      %s716 = smul.addr %s715, 4
      %s717 = scalar_lea.vmem %s3, %s716
      %p718 = scmp.lt.s32.totalorder %s16, 1
      %s719 = scalar_select %p718, %s16, 1
      %s720 = smul.addr %s719, 8
      %s721 = scalar_lea.vmem %s4, %s720
      // Predicated region
      $region33: #{basic_block.5} parent=31 // pred_check
        %p722 = pneg %p107
      $region34: #{basic_block.5} parent=31 // pred_check_branch
        %724 = sbr.rel (%p722) target = $region36
      $region35: #{basic_block.5} parent=31 // pred_region
        %s725 = smul.u32 16, %s16
      $region36: #{basic_block.5} parent=31 // pred_fallthru
        _
      // Predicated region
      $region37: #{basic_block.5} parent=31 // pred_check
        %p726 = pneg %p133
      $region38: #{basic_block.5} parent=31 // pred_check_branch
        %728 = sbr.rel (%p726) target = $region40
      $region39: #{basic_block.5} parent=31 // pred_region
        _
      $region40: #{basic_block.5} parent=31 // pred_fallthru
        _
    $region32: #{basic_block.5} parent=5 // pred_fallthru
      _
    %p729 = scmp.le.s32.totalorder 2, %s11
    // Predicated region
    $region41: #{basic_block.5} parent=5 // pred_check
      %p730 = pneg %p729
    $region42: #{basic_block.5} parent=5 // pred_check_branch
      %732 = sbr.rel (%p730) target = $region44
    $region43: #{basic_block.5} parent=5 // pred_region
      %s733 = ssub.s32 %s11, 2
      // Predicated region
      $region45: #{basic_block.5} parent=43 // pred_check
        %p734 = pneg %p113
      $region46: #{basic_block.5} parent=43 // pred_check_branch
        %736 = sbr.rel (%p734) target = $region48
      $region47: #{basic_block.5} parent=43 // pred_region
        %s737 = smul.u32 16, %s17
        %p738 = scmp.lt.s32.totalorder %s737, 31
        %s739 = scalar_select %p738, %s737, 31
        %s740 = smul.addr %s739, 4
        %s741 = scalar_lea.vmem %s3, %s740
      $region48: #{basic_block.5} parent=43 // pred_fallthru
        _
      // Predicated region
      $region49: #{basic_block.5} parent=43 // pred_check
        %p742 = pneg %p139
      $region50: #{basic_block.5} parent=43 // pred_check_branch
        %744 = sbr.rel (%p742) target = $region52
      $region51: #{basic_block.5} parent=43 // pred_region
        %p745 = scmp.lt.s32.totalorder %s17, 1
        %s746 = scalar_select %p745, %s17, 1
        %s747 = smul.addr %s746, 8
        %s748 = scalar_lea.vmem %s4, %s747
      $region52: #{basic_block.5} parent=43 // pred_fallthru
        _
    $region44: #{basic_block.5} parent=5 // pred_fallthru
      _
  $region6: #{basic_block.5} parent=0 // loop_footer
    %s15 = sadd.s32 1, %s11
  $region7: #{basic_block.5} parent=0 // loop_footer_branch
    %10 = sbr.rel target = $region3
  $region8: #{basic_block.5} parent=0 // loop_exit
    _

// kernel: basic_block.8
$region0: #{basic_block.8}
  #allocation0 [shape = 'u32[]', space=smem, size = 0x4, offset = 0x4, fixed_abs, tag = 'smem constant byte address 0x4 - core index']
  #allocation1 [shape = 'u32[144,128]{1,0:T(1,128)}', space=vmem, size = 0x12000, scoped, tag = 'internal scratch']
  %s0 = inlined_call_operand.vmem [shape: bf16[256,128], index: 0, kind: input, shape index: {}]
  %s1 = inlined_call_operand.vmem [shape: bf16[128,128], index: 1, kind: input, shape index: {}]
  %s2 = inlined_call_operand.vmem [shape: f32[256,1], index: 2, kind: input, shape index: {}]
  %s3 = inlined_call_operand.vmem [shape: f32[2,8,128], index: 3, kind: output, shape index: {}]
  %s4 = sld [smem:[#allocation0]]
  $region45: #{basic_block.8} parent=0
    _
  %s6 = ssub.s32 1, %s4
  %s7 = scalar_select 0, %s6, %s4
  loop: start=0, step=1, limit=4
  $region2: #{basic_block.8} parent=0 // loop_pre_header
    _
  $region3: #{basic_block.8} parent=0 // loop_header
    %s9 = sphi 0, %s13
    %p10 = scmp.ge.s32.totalorder %s9, 4
    %s19 = sphi 0, %s21
    %s22 = sphi 0, %s19
    %s23 = sphi 0, %s22
    %s39 = sphi 0, %s23
    %s43 = sphi 0, %s43
    %s45 = sphi 0, %s43
    %s46 = sphi 0, %s45
    %s60 = sphi 0, %s46
    %s66 = sphi 0, %s68
    %s69 = sphi 0, %s66
    %s70 = sphi 0, %s69
    %s86 = sphi 0, %s70
    %s92 = sphi 0, %s94
    %s95 = sphi 0, %s92
    %s96 = sphi 0, %s95
    %s112 = sphi 0, %s96
  $region4: #{basic_block.8} parent=0 // loop_header_branch
    %12 = sbr.rel (%p10) target = $region8
  $region5: #{basic_block.8} parent=0 // loop_body
    %s14 = ssub.s32 %s9, 1
    %s15 = ssub.s32 %s9, 2
    %s16 = sadd.s32 %s9, 1
    %s17 = ssub.s32 %s9, %s16
    %p18 = scmp.eq.s32.totalorder %s17, 0
    %s20 = sadd.s32 %s19, 1
    %s21 = scalar_select %p18, %s19, %s20
    %p24 = pneg %p18
    %p25 = scmp.eq.s32.totalorder %s9, 1
    %p26 = por %p24, %p25
    %p27 = scmp.ne.s32.totalorder %s19, %s22
    %p28 = scmp.eq.s32.totalorder %s9, 0
    %p29 = por %p27, %p28
    %p30 = scmp.ne.s32.totalorder %s19, %s22
    %p31 = scmp.eq.s32.totalorder %s14, 1
    %p32 = por %p30, %p31
    %p33 = scmp.ne.s32.totalorder %s22, %s23
    %p34 = scmp.eq.s32.totalorder %s14, 0
    %p35 = por %p33, %p34
    %p36 = scmp.ne.s32.totalorder %s22, %s23
    %p37 = scmp.eq.s32.totalorder %s15, 1
    %p38 = por %p36, %p37
    %p40 = scmp.ne.s32.totalorder %s23, %s39
    %p41 = scmp.eq.s32.totalorder %s15, 0
    %p42 = por %p40, %p41
    %s44 = sadd.s32 %s43, 1
    %p47 = scmp.eq.s32.totalorder %s9, 1
    %p48 = scmp.ne.s32.totalorder %s43, %s45
    %p49 = scmp.eq.s32.totalorder %s9, 0
    %p50 = por %p48, %p49
    %p51 = scmp.ne.s32.totalorder %s43, %s45
    %p52 = scmp.eq.s32.totalorder %s14, 1
    %p53 = por %p51, %p52
    %p54 = scmp.ne.s32.totalorder %s45, %s46
    %p55 = scmp.eq.s32.totalorder %s14, 0
    %p56 = por %p54, %p55
    %p57 = scmp.ne.s32.totalorder %s45, %s46
    %p58 = scmp.eq.s32.totalorder %s15, 1
    %p59 = por %p57, %p58
    %p61 = scmp.ne.s32.totalorder %s46, %s60
    %p62 = scmp.eq.s32.totalorder %s15, 0
    %p63 = por %p61, %p62
    %s64 = ssub.s32 %s9, %s16
    %p65 = scmp.eq.s32.totalorder %s64, 0
    %s67 = sadd.s32 %s66, 1
    %s68 = scalar_select %p65, %s66, %s67
    %p71 = pneg %p65
    %p72 = scmp.eq.s32.totalorder %s9, 1
    %p73 = por %p71, %p72
    %p74 = scmp.ne.s32.totalorder %s66, %s69
    %p75 = scmp.eq.s32.totalorder %s9, 0
    %p76 = por %p74, %p75
    %p77 = scmp.ne.s32.totalorder %s66, %s69
    %p78 = scmp.eq.s32.totalorder %s14, 1
    %p79 = por %p77, %p78
    %p80 = scmp.ne.s32.totalorder %s69, %s70
    %p81 = scmp.eq.s32.totalorder %s14, 0
    %p82 = por %p80, %p81
    %p83 = scmp.ne.s32.totalorder %s69, %s70
    %p84 = scmp.eq.s32.totalorder %s15, 1
    %p85 = por %p83, %p84
    %p87 = scmp.ne.s32.totalorder %s70, %s86
    %p88 = scmp.eq.s32.totalorder %s15, 0
    %p89 = por %p87, %p88
    %s90 = ssub.s32 %s9, %s16
    %p91 = scmp.eq.s32.totalorder %s90, 0
    %s93 = sadd.s32 %s92, 1
    %s94 = scalar_select %p91, %s92, %s93
    %p97 = pneg %p91
    %p98 = scmp.eq.s32.totalorder %s9, 1
    %p99 = por %p97, %p98
    %p100 = scmp.ne.s32.totalorder %s92, %s95
    %p101 = scmp.eq.s32.totalorder %s9, 0
    %p102 = por %p100, %p101
    %p103 = scmp.ne.s32.totalorder %s92, %s95
    %p104 = scmp.eq.s32.totalorder %s14, 1
    %p105 = por %p103, %p104
    %p106 = scmp.ne.s32.totalorder %s95, %s96
    %p107 = scmp.eq.s32.totalorder %s14, 0
    %p108 = por %p106, %p107
    %p109 = scmp.ne.s32.totalorder %s95, %s96
    %p110 = scmp.eq.s32.totalorder %s15, 1
    %p111 = por %p109, %p110
    %p113 = scmp.ne.s32.totalorder %s96, %s112
    %p114 = scmp.eq.s32.totalorder %s15, 0
    %p115 = por %p113, %p114
    %p116 = scmp.le.s32.totalorder 1, %s9
    %p117 = scmp.lt.s32.totalorder %s9, 3
    %p118 = pnand %p116, %p117
    %p119 = pneg %p118
    // Predicated region
    $region9: #{basic_block.8} parent=5 // pred_check
      _
    $region10: #{basic_block.8} parent=5 // pred_check_branch
      %121 = sbr.rel (%p118) target = $region12
    $region11: #{basic_block.8} parent=5 // pred_region
      %s122 = ssub.s32 %s9, 1
      // Predicated region
      $region13: #{basic_block.8} parent=11 // pred_check
        %p123 = pneg %p56
      $region14: #{basic_block.8} parent=11 // pred_check_branch
        %125 = sbr.rel (%p123) target = $region16
      $region15: #{basic_block.8} parent=11 // pred_region
        _
      $region16: #{basic_block.8} parent=11 // pred_fallthru
        _
    $region12: #{basic_block.8} parent=5 // pred_fallthru
      _
    %p126 = scmp.lt.s32.totalorder %s9, 2
    // Predicated region
    $region17: #{basic_block.8} parent=5 // pred_check
      %p127 = pneg %p126
    $region18: #{basic_block.8} parent=5 // pred_check_branch
      %129 = sbr.rel (%p127) target = $region20
    $region19: #{basic_block.8} parent=5 // pred_region
      // Predicated region
      $region21: #{basic_block.8} parent=19 // pred_check
        %p130 = pneg %p29
      $region22: #{basic_block.8} parent=19 // pred_check_branch
        %132 = sbr.rel (%p130) target = $region24
      $region23: #{basic_block.8} parent=19 // pred_region
        %s133 = smul.u32 16, %s9
        %p134 = scmp.lt.s32.totalorder %s133, 31
        %s135 = scalar_select %p134, %s133, 31
        %s136 = smul.addr %s135, 4
        %s137 = scalar_lea.vmem %s0, %s136
        %s138 = smul.u32 16, %s9
      $region24: #{basic_block.8} parent=19 // pred_fallthru
        _
      // Predicated region
      $region25: #{basic_block.8} parent=19 // pred_check
        %p139 = pneg %p76
      $region26: #{basic_block.8} parent=19 // pred_check_branch
        %141 = sbr.rel (%p139) target = $region28
      $region27: #{basic_block.8} parent=19 // pred_region
        %s142 = smul.u32 16, %s9
        %p143 = scmp.lt.s32.totalorder %s142, 31
        %s144 = scalar_select %p143, %s142, 31
        %s145 = smul.addr %s144, 8
        %s146 = scalar_lea.vmem %s2, %s145
        %s147 = smul.u32 16, %s9
      $region28: #{basic_block.8} parent=19 // pred_fallthru
        _
    $region20: #{basic_block.8} parent=5 // pred_fallthru
      _
    %p148 = scmp.le.s32.totalorder 1, %s9
    %p149 = scmp.lt.s32.totalorder %s9, 3
    %p150 = pnand %p148, %p149
    %p151 = pneg %p150
    // Predicated region
    $region29: #{basic_block.8} parent=5 // pred_check
      _
    $region30: #{basic_block.8} parent=5 // pred_check_branch
      %153 = sbr.rel (%p150) target = $region32
    $region31: #{basic_block.8} parent=5 // pred_region
      %s154 = ssub.s32 %s9, 1
      %s155 = smul.u32 16, %s14
      %p156 = scmp.lt.s32.totalorder %s155, 31
      %s157 = scalar_select %p156, %s155, 31
      %s158 = smul.addr %s157, 4
      %s159 = scalar_lea.vmem %s0, %s158
      %p160 = pneg %p35
      %p161 = pneg %p32
      %p162 = pneg %p56
      %p163 = pneg %p53
      %s164 = smul.u32 16, %s14
      %p165 = scmp.lt.s32.totalorder %s164, 31
      %s166 = scalar_select %p165, %s164, 31
      %s167 = smul.addr %s166, 8
      %s168 = scalar_lea.vmem %s2, %s167
      %p169 = pneg %p82
      %p170 = pneg %p79
      %p171 = pneg %p108
      %p172 = pneg %p105
      %p173 = scmp.lt.s32.totalorder %s14, 1
      %s174 = scalar_select %p173, %s14, 1
      %s175 = smul.addr %s174, 8
      %s176 = scalar_lea.vmem %s3, %s175
      %s177 = smul.u32 16, %s14
      %p178 = scmp.lt.s32.totalorder %s177, 31
      %s179 = scalar_select %p178, %s177, 31
      %s180 = smul.addr %s179, 4
      %s181 = scalar_lea.vmem %s0, %s180
      %s182 = smul.u32 16, %s14
      %s183 = smul.u32 16, %s14
      %p184 = scmp.lt.s32.totalorder %s183, 31
      %s185 = scalar_select %p184, %s183, 31
      %s186 = smul.addr %s185, 8
      %s187 = scalar_lea.vmem %s2, %s186
      %s188 = smul.u32 16, %s14
      %p189 = scmp.lt.s32.totalorder %s14, 1
      %s190 = scalar_select %p189, %s14, 1
      %s191 = smul.addr %s190, 8
      %s192 = scalar_lea.vmem %s3, %s191
      %v194 = vld [vmem:[%s181] sm:$0xf]
      %v195 = vld [vmem:[%s181 + $0x4] sm:$0xf]
      %v196 = vld [vmem:[%s181 + $0x8] sm:$0xf]
      %v197 = vld [vmem:[%s181 + $0xc] sm:$0xf]
      %v198 = vld [vmem:[%s181 + $0x10] sm:$0xf]
      %v199 = vld [vmem:[%s181 + $0x14] sm:$0xf]
      %v200 = vld [vmem:[%s181 + $0x18] sm:$0xf]
      %v201 = vld [vmem:[%s181 + $0x1c] sm:$0xf]
      %v202 = vld [vmem:[%s181 + $0x20] sm:$0xf]
      %v203 = vld [vmem:[%s181 + $0x24] sm:$0xf]
      %v204 = vld [vmem:[%s181 + $0x28] sm:$0xf]
      %v205 = vld [vmem:[%s181 + $0x2c] sm:$0xf]
      %v206 = vld [vmem:[%s181 + $0x30] sm:$0xf]
      %v207 = vld [vmem:[%s181 + $0x34] sm:$0xf]
      %v208 = vld [vmem:[%s181 + $0x38] sm:$0xf]
      %v209 = vld [vmem:[%s181 + $0x3c] sm:$0xf]
      %v210 = vld [vmem:[%s1] sm:$0xf]
      %v211 = vld [vmem:[%s1 + $0x4] sm:$0xf]
      %v212 = vld [vmem:[%s1 + $0x8] sm:$0xf]
      %v213 = vld [vmem:[%s1 + $0xc] sm:$0xf]
      %v214 = vld [vmem:[%s1 + $0x10] sm:$0xf]
      %v215 = vld [vmem:[%s1 + $0x14] sm:$0xf]
      %v216 = vld [vmem:[%s1 + $0x18] sm:$0xf]
      %v217 = vld [vmem:[%s1 + $0x1c] sm:$0xf]
      %v218 = vld [vmem:[%s1 + $0x20] sm:$0xf]
      %v219 = vld [vmem:[%s1 + $0x24] sm:$0xf]
      %v220 = vld [vmem:[%s1 + $0x28] sm:$0xf]
      %v221 = vld [vmem:[%s1 + $0x2c] sm:$0xf]
      %v222 = vld [vmem:[%s1 + $0x30] sm:$0xf]
      %v223 = vld [vmem:[%s1 + $0x34] sm:$0xf]
      %v224 = vld [vmem:[%s1 + $0x38] sm:$0xf]
      %v225 = vld [vmem:[%s1 + $0x3c] sm:$0xf]
      %v242 = vunpack.c.l.b16 %v194
      %v243 = vunpack.c.l.b16 %v195
      %v244 = vunpack.c.l.b16 %v196
      %v245 = vunpack.c.l.b16 %v197
      %v246 = vunpack.c.l.b16 %v198
      %v247 = vunpack.c.l.b16 %v199
      %v248 = vunpack.c.l.b16 %v200
      %v249 = vunpack.c.l.b16 %v201
      %v250 = vunpack.c.l.b16 %v202
      %v251 = vunpack.c.l.b16 %v203
      %v252 = vunpack.c.l.b16 %v204
      %v253 = vunpack.c.l.b16 %v205
      %v254 = vunpack.c.l.b16 %v206
      %v255 = vunpack.c.l.b16 %v207
      %v256 = vunpack.c.l.b16 %v208
      %v257 = vunpack.c.l.b16 %v209
      %v258 = vpack.c.b16 %v243, %v242
      %v259 = vpack.c.b16 %v245, %v244
      %v260 = vpack.c.b16 %v247, %v246
      %v261 = vpack.c.b16 %v249, %v248
      %v262 = vpack.c.b16 %v251, %v250
      %v263 = vpack.c.b16 %v253, %v252
      %v264 = vpack.c.b16 %v255, %v254
      %v265 = vpack.c.b16 %v257, %v256
      %v290 = vunpack.c.l.b16 %v210
      %v291 = vunpack.c.l.b16 %v211
      %v292 = vunpack.c.l.b16 %v212
      %v293 = vunpack.c.l.b16 %v213
      %v294 = vunpack.c.l.b16 %v214
      %v295 = vunpack.c.l.b16 %v215
      %v296 = vunpack.c.l.b16 %v216
      %v297 = vunpack.c.l.b16 %v217
      %v298 = vunpack.c.l.b16 %v218
      %v299 = vunpack.c.l.b16 %v219
      %v300 = vunpack.c.l.b16 %v220
      %v301 = vunpack.c.l.b16 %v221
      %v302 = vunpack.c.l.b16 %v222
      %v303 = vunpack.c.l.b16 %v223
      %v304 = vunpack.c.l.b16 %v224
      %v305 = vunpack.c.l.b16 %v225
      %v306 = vpack.c.b16 %v291, %v290
      %v307 = vpack.c.b16 %v293, %v292
      %v308 = vpack.c.b16 %v295, %v294
      %v309 = vpack.c.b16 %v297, %v296
      %v310 = vpack.c.b16 %v299, %v298
      %v311 = vpack.c.b16 %v301, %v300
      %v312 = vpack.c.b16 %v303, %v302
      %v313 = vpack.c.b16 %v305, %v304
      %322 = vmatprep.subr.bf16.mxu0 0
      %323 = vmatpush1.bf16.msra.mxu0 %v306
      %324 = vmatprep.subr.bf16.mxu0 0
      %325 = vmatpush1.bf16.msra.mxu0 %v307
      %326 = vmatprep.subr.bf16.mxu0 0
      %327 = vmatpush1.bf16.msra.mxu0 %v308
      %328 = vmatprep.subr.bf16.mxu0 0
      %329 = vmatpush1.bf16.msra.mxu0 %v309
      %330 = vmatprep.subr.bf16.mxu0 0
      %331 = vmatpush1.bf16.msra.mxu0 %v310
      %332 = vmatprep.subr.bf16.mxu0 0
      %333 = vmatpush1.bf16.msra.mxu0 %v311
      %334 = vmatprep.subr.bf16.mxu0 0
      %335 = vmatpush1.bf16.msra.mxu0 %v312
      %336 = vmatprep.subr.bf16.mxu0 0
      %337 = vmatpush1.bf16.msra.mxu0 %v313
      %338 = vmatprep.subr.bf16.mxu0 0
      %339 = vmatpush1.bf16.msra.mxu0 0
      %340 = vmatprep.subr.bf16.mxu0 0
      %341 = vmatpush1.bf16.msra.mxu0 0
      %342 = vmatprep.subr.bf16.mxu0 0
      %343 = vmatpush1.bf16.msra.mxu0 0
      %344 = vmatprep.subr.bf16.mxu0 0
      %345 = vmatpush1.bf16.msra.mxu0 0
      %346 = vmatprep.subr.bf16.mxu0 0
      %347 = vmatpush1.bf16.msra.mxu0 0
      %348 = vmatprep.subr.bf16.mxu0 0
      %349 = vmatpush1.bf16.msra.mxu0 0
      %350 = vmatprep.subr.bf16.mxu0 0
      %351 = vmatpush1.bf16.msra.mxu0 0
      %352 = vmatprep.subr.bf16.mxu0 0
      %353 = vmatpush1.bf16.msra.mxu0 0
      %354 = vmatprep.mubr.bf16.mxu0 0
      %355 = vmatmul.mubr.bf16.gmra.mrb[0].mxu0 %v258
      %v356 = vpop.f32.mrb[0].mxu0
      %v357 = vadd.f32 0.0, %v356
      %v358 = vpop.f32.mrb[0].mxu0
      %v359 = vpop.f32.mrb[0].mxu0
      %v360 = vadd.f32 0.0, %v359
      %v361 = vpop.f32.mrb[0].mxu0
      %362 = vmatprep.mubr.bf16.mxu0 0
      %363 = vmatmul.mubr.bf16.gmra.mrb[0].mxu0 %v259
      %v364 = vpop.f32.mrb[0].mxu0
      %v365 = vadd.f32 0.0, %v364
      %v366 = vpop.f32.mrb[0].mxu0
      %v367 = vpop.f32.mrb[0].mxu0
      %v368 = vadd.f32 0.0, %v367
      %v369 = vpop.f32.mrb[0].mxu0
      %370 = vmatprep.mubr.bf16.mxu0 0
      %371 = vmatmul.mubr.bf16.gmra.mrb[0].mxu0 %v260
      %v372 = vpop.f32.mrb[0].mxu0
      %v373 = vadd.f32 0.0, %v372
      %v374 = vpop.f32.mrb[0].mxu0
      %v375 = vpop.f32.mrb[0].mxu0
      %v376 = vadd.f32 0.0, %v375
      %v377 = vpop.f32.mrb[0].mxu0
      %378 = vmatprep.mubr.bf16.mxu0 0
      %379 = vmatmul.mubr.bf16.gmra.mrb[0].mxu0 %v261
      %v380 = vpop.f32.mrb[0].mxu0
      %v381 = vadd.f32 0.0, %v380
      %v382 = vpop.f32.mrb[0].mxu0
      %v383 = vpop.f32.mrb[0].mxu0
      %v384 = vadd.f32 0.0, %v383
      %v385 = vpop.f32.mrb[0].mxu0
      %386 = vmatprep.mubr.bf16.mxu0 0
      %387 = vmatmul.mubr.bf16.gmra.mrb[0].mxu0 %v262
      %v388 = vpop.f32.mrb[0].mxu0
      %v389 = vadd.f32 0.0, %v388
      %v390 = vpop.f32.mrb[0].mxu0
      %v391 = vpop.f32.mrb[0].mxu0
      %v392 = vadd.f32 0.0, %v391
      %v393 = vpop.f32.mrb[0].mxu0
      %394 = vmatprep.mubr.bf16.mxu0 0
      %395 = vmatmul.mubr.bf16.gmra.mrb[0].mxu0 %v263
      %v396 = vpop.f32.mrb[0].mxu0
      %v397 = vadd.f32 0.0, %v396
      %v398 = vpop.f32.mrb[0].mxu0
      %v399 = vpop.f32.mrb[0].mxu0
      %v400 = vadd.f32 0.0, %v399
      %v401 = vpop.f32.mrb[0].mxu0
      %402 = vmatprep.mubr.bf16.mxu0 0
      %403 = vmatmul.mubr.bf16.gmra.mrb[0].mxu0 %v264
      %v404 = vpop.f32.mrb[0].mxu0
      %v405 = vadd.f32 0.0, %v404
      %v406 = vpop.f32.mrb[0].mxu0
      %v407 = vpop.f32.mrb[0].mxu0
      %v408 = vadd.f32 0.0, %v407
      %v409 = vpop.f32.mrb[0].mxu0
      %410 = vmatprep.mubr.bf16.mxu0 0
      %411 = vmatmul.mubr.bf16.gmra.mrb[0].mxu0 %v265
      %v412 = vpop.f32.mrb[0].mxu0
      %v413 = vadd.f32 0.0, %v412
      %v414 = vpop.f32.mrb[0].mxu0
      %v415 = vpop.f32.mrb[0].mxu0
      %v416 = vadd.f32 0.0, %v415
      %v417 = vpop.f32.mrb[0].mxu0
      %418 = vdwg.mxu0
      %v419 = vld [vmem:[%s187] sm:$0xff]
      %v420 = vld [vmem:[%s187 + $0x8] sm:$0xff]
      %v421 = vld [vmem:[%s187 + $0x10] sm:$0xff]
      %v422 = vld [vmem:[%s187 + $0x18] sm:$0xff]
      %v423 = vld [vmem:[%s187 + $0x20] sm:$0xff]
      %v424 = vld [vmem:[%s187 + $0x28] sm:$0xff]
      %v425 = vld [vmem:[%s187 + $0x30] sm:$0xff]
      %v426 = vld [vmem:[%s187 + $0x38] sm:$0xff]
      %v427 = vld [vmem:[%s187 + $0x40] sm:$0xff]
      %v428 = vld [vmem:[%s187 + $0x48] sm:$0xff]
      %v429 = vld [vmem:[%s187 + $0x50] sm:$0xff]
      %v430 = vld [vmem:[%s187 + $0x58] sm:$0xff]
      %v431 = vld [vmem:[%s187 + $0x60] sm:$0xff]
      %v432 = vld [vmem:[%s187 + $0x68] sm:$0xff]
      %v433 = vld [vmem:[%s187 + $0x70] sm:$0xff]
      %v434 = vld [vmem:[%s187 + $0x78] sm:$0xff]
      %436 = vset.pattern.permute.xlu0 0
      %437 = vperm.xlu0 %436, %v419
      %v438 = vpop.permute.xlu0 %437
      %441 = vset.pattern.permute.xlu0 0
      %442 = vperm.xlu0 %441, %v420
      %v443 = vpop.permute.xlu0 %442
      %446 = vset.pattern.permute.xlu0 0
      %447 = vperm.xlu0 %446, %v421
      %v448 = vpop.permute.xlu0 %447
      %451 = vset.pattern.permute.xlu0 0
      %452 = vperm.xlu0 %451, %v422
      %v453 = vpop.permute.xlu0 %452
      %456 = vset.pattern.permute.xlu0 0
      %457 = vperm.xlu0 %456, %v423
      %v458 = vpop.permute.xlu0 %457
      %461 = vset.pattern.permute.xlu0 0
      %462 = vperm.xlu0 %461, %v424
      %v463 = vpop.permute.xlu0 %462
      %466 = vset.pattern.permute.xlu0 0
      %467 = vperm.xlu0 %466, %v425
      %v468 = vpop.permute.xlu0 %467
      %471 = vset.pattern.permute.xlu0 0
      %472 = vperm.xlu0 %471, %v426
      %v473 = vpop.permute.xlu0 %472
      %476 = vset.pattern.permute.xlu0 0
      %477 = vperm.xlu0 %476, %v427
      %v478 = vpop.permute.xlu0 %477
      %481 = vset.pattern.permute.xlu0 0
      %482 = vperm.xlu0 %481, %v428
      %v483 = vpop.permute.xlu0 %482
      %486 = vset.pattern.permute.xlu0 0
      %487 = vperm.xlu0 %486, %v429
      %v488 = vpop.permute.xlu0 %487
      %491 = vset.pattern.permute.xlu0 0
      %492 = vperm.xlu0 %491, %v430
      %v493 = vpop.permute.xlu0 %492
      %496 = vset.pattern.permute.xlu0 0
      %497 = vperm.xlu0 %496, %v431
      %v498 = vpop.permute.xlu0 %497
      %501 = vset.pattern.permute.xlu0 0
      %502 = vperm.xlu0 %501, %v432
      %v503 = vpop.permute.xlu0 %502
      %506 = vset.pattern.permute.xlu0 0
      %507 = vperm.xlu0 %506, %v433
      %v508 = vpop.permute.xlu0 %507
      %511 = vset.pattern.permute.xlu0 0
      %512 = vperm.xlu0 %511, %v434
      %v513 = vpop.permute.xlu0 %512
      %v515 = vmul.f32 %v357, %v438
      %v516 = vmul.f32 %v360, %v443
      %v517 = vmul.f32 %v365, %v448
      %v518 = vmul.f32 %v368, %v453
      %v519 = vmul.f32 %v373, %v458
      %v520 = vmul.f32 %v376, %v463
      %v521 = vmul.f32 %v381, %v468
      %v522 = vmul.f32 %v384, %v473
      %v523 = vmul.f32 %v389, %v478
      %v524 = vmul.f32 %v392, %v483
      %v525 = vmul.f32 %v397, %v488
      %v526 = vmul.f32 %v400, %v493
      %v527 = vmul.f32 %v405, %v498
      %v528 = vmul.f32 %v408, %v503
      %v529 = vmul.f32 %v413, %v508
      %v530 = vmul.f32 %v416, %v513
      %v531 = vadd.f32 %v515, %v516
      %v532 = vadd.f32 %v531, %v517
      %v533 = vadd.f32 %v532, %v518
      %v534 = vadd.f32 %v533, %v519
      %v535 = vadd.f32 %v534, %v520
      %v536 = vadd.f32 %v535, %v521
      %v537 = vadd.f32 %v536, %v522
      %v538 = vadd.f32 %v537, %v523
      %v539 = vadd.f32 %v538, %v524
      %v540 = vadd.f32 %v539, %v525
      %v541 = vadd.f32 %v540, %v526
      %v542 = vadd.f32 %v541, %v527
      %v543 = vadd.f32 %v542, %v528
      %v544 = vadd.f32 %v543, %v529
      %v545 = vadd.f32 %v544, %v530
      %v546 = vrot.slane %v545, 4
      %v547 = vadd.f32 %v545, %v546
      %v548 = vrot.slane %v547, 2
      %v549 = vadd.f32 %v547, %v548
      %v550 = vrot.slane %v549, 1
      %v551 = vadd.f32 %v549, %v550
      %v552 = vmul.f32 %v515, %v357
      %v553 = vmul.f32 %v516, %v360
      %v554 = vmul.f32 %v517, %v365
      %v555 = vmul.f32 %v518, %v368
      %v556 = vmul.f32 %v519, %v373
      %v557 = vmul.f32 %v520, %v376
      %v558 = vmul.f32 %v521, %v381
      %v559 = vmul.f32 %v522, %v384
      %v560 = vmul.f32 %v523, %v389
      %v561 = vmul.f32 %v524, %v392
      %v562 = vmul.f32 %v525, %v397
      %v563 = vmul.f32 %v526, %v400
      %v564 = vmul.f32 %v527, %v405
      %v565 = vmul.f32 %v528, %v408
      %v566 = vmul.f32 %v529, %v413
      %v567 = vmul.f32 %v530, %v416
      %v568 = vadd.f32 %v552, %v553
      %v569 = vadd.f32 %v568, %v554
      %v570 = vadd.f32 %v569, %v555
      %v571 = vadd.f32 %v570, %v556
      %v572 = vadd.f32 %v571, %v557
      %v573 = vadd.f32 %v572, %v558
      %v574 = vadd.f32 %v573, %v559
      %v575 = vadd.f32 %v574, %v560
      %v576 = vadd.f32 %v575, %v561
      %v577 = vadd.f32 %v576, %v562
      %v578 = vadd.f32 %v577, %v563
      %v579 = vadd.f32 %v578, %v564
      %v580 = vadd.f32 %v579, %v565
      %v581 = vadd.f32 %v580, %v566
      %v582 = vadd.f32 %v581, %v567
      %v583 = vrot.slane %v582, 4
      %v584 = vadd.f32 %v582, %v583
      %v585 = vrot.slane %v584, 2
      %v586 = vadd.f32 %v584, %v585
      %v587 = vrot.slane %v586, 1
      %v588 = vadd.f32 %v586, %v587
      %589 = vst [vmem:[%s192] sm:$0x1] %v551
      %590 = vst [vmem:[%s192 + $0x1] sm:$0x1] %v588
      %591 = vst [vmem:[%s192 + $0x2] sm:$0x3f] 0.0
      %p592 = scmp.lt.s32.totalorder %s14, 1
      %s593 = scalar_select %p592, %s14, 1
      %s594 = smul.addr %s593, 8
      %s595 = scalar_lea.vmem %s3, %s594
      // Predicated region
      $region33: #{basic_block.8} parent=31 // pred_check
        %p596 = pneg %p105
      $region34: #{basic_block.8} parent=31 // pred_check_branch
        %598 = sbr.rel (%p596) target = $region36
      $region35: #{basic_block.8} parent=31 // pred_region
        _
      $region36: #{basic_block.8} parent=31 // pred_fallthru
        _
    $region32: #{basic_block.8} parent=5 // pred_fallthru
      _
    %p599 = scmp.le.s32.totalorder 2, %s9
    // Predicated region
    $region37: #{basic_block.8} parent=5 // pred_check
      %p600 = pneg %p599
    $region38: #{basic_block.8} parent=5 // pred_check_branch
      %602 = sbr.rel (%p600) target = $region40
    $region39: #{basic_block.8} parent=5 // pred_region
      %s603 = ssub.s32 %s9, 2
      // Predicated region
      $region41: #{basic_block.8} parent=39 // pred_check
        %p604 = pneg %p111
      $region42: #{basic_block.8} parent=39 // pred_check_branch
        %606 = sbr.rel (%p604) target = $region44
      $region43: #{basic_block.8} parent=39 // pred_region
        %p607 = scmp.lt.s32.totalorder %s15, 1
        %s608 = scalar_select %p607, %s15, 1
        %s609 = smul.addr %s608, 8
        %s610 = scalar_lea.vmem %s3, %s609
      $region44: #{basic_block.8} parent=39 // pred_fallthru
        _
    $region40: #{basic_block.8} parent=5 // pred_fallthru
      _
  $region6: #{basic_block.8} parent=0 // loop_footer
    %s13 = sadd.s32 1, %s9
  $region7: #{basic_block.8} parent=0 // loop_footer_branch
    %8 = sbr.rel target = $region3
  $region8: #{basic_block.8} parent=0 // loop_exit
    _

// kernel: basic_block.9
$region0: #{basic_block.9}
  #allocation0 [shape = 'u32[]', space=smem, size = 0x4, offset = 0x4, fixed_abs, tag = 'smem constant byte address 0x4 - core index']
  #allocation1 [shape = 'u32[144,128]{1,0:T(1,128)}', space=vmem, size = 0x12000, scoped, tag = 'internal scratch']
  %s0 = inlined_call_operand.vmem [shape: bf16[256,128], index: 0, kind: input, shape index: {}]
  %s1 = inlined_call_operand.vmem [shape: f32[2,128], index: 1, kind: input, shape index: {}]
  %s2 = inlined_call_operand.vmem [shape: bf16[256,128], index: 2, kind: input, shape index: {}]
  %s3 = inlined_call_operand.vmem [shape: bf16[128,128], index: 3, kind: input, shape index: {}]
  %s4 = inlined_call_operand.vmem [shape: f32[2,128], index: 4, kind: input, shape index: {}]
  %s5 = inlined_call_operand.vmem [shape: f32[256,128], index: 5, kind: output, shape index: {}]
  %s6 = sld [smem:[#allocation0]]
  $region53: #{basic_block.9} parent=0
    _
  %s8 = ssub.s32 1, %s6
  %s9 = scalar_select 0, %s8, %s6
  loop: start=0, step=1, limit=4
  $region2: #{basic_block.9} parent=0 // loop_pre_header
    _
  $region3: #{basic_block.9} parent=0 // loop_header
    %s11 = sphi 0, %s15
    %p12 = scmp.ge.s32.totalorder %s11, 4
    %s21 = sphi 0, %s23
    %s24 = sphi 0, %s21
    %s25 = sphi 0, %s24
    %s41 = sphi 0, %s25
    %s45 = sphi 0, %s45
    %s47 = sphi 0, %s45
    %s48 = sphi 0, %s47
    %s62 = sphi 0, %s48
    %s68 = sphi 0, %s70
    %s71 = sphi 0, %s68
    %s72 = sphi 0, %s71
    %s88 = sphi 0, %s72
    %s92 = sphi 0, %s92
    %s94 = sphi 0, %s92
    %s95 = sphi 0, %s94
    %s109 = sphi 0, %s95
    %s113 = sphi 0, %s113
    %s115 = sphi 0, %s113
    %s116 = sphi 0, %s115
    %s130 = sphi 0, %s116
    %s136 = sphi 0, %s138
    %s139 = sphi 0, %s136
    %s140 = sphi 0, %s139
    %s156 = sphi 0, %s140
  $region4: #{basic_block.9} parent=0 // loop_header_branch
    %14 = sbr.rel (%p12) target = $region8
  $region5: #{basic_block.9} parent=0 // loop_body
    %s16 = ssub.s32 %s11, 1
    %s17 = ssub.s32 %s11, 2
    %s18 = sadd.s32 %s11, 1
    %s19 = ssub.s32 %s11, %s18
    %p20 = scmp.eq.s32.totalorder %s19, 0
    %s22 = sadd.s32 %s21, 1
    %s23 = scalar_select %p20, %s21, %s22
    %p26 = pneg %p20
    %p27 = scmp.eq.s32.totalorder %s11, 1
    %p28 = por %p26, %p27
    %p29 = scmp.ne.s32.totalorder %s21, %s24
    %p30 = scmp.eq.s32.totalorder %s11, 0
    %p31 = por %p29, %p30
    %p32 = scmp.ne.s32.totalorder %s21, %s24
    %p33 = scmp.eq.s32.totalorder %s16, 1
    %p34 = por %p32, %p33
    %p35 = scmp.ne.s32.totalorder %s24, %s25
    %p36 = scmp.eq.s32.totalorder %s16, 0
    %p37 = por %p35, %p36
    %p38 = scmp.ne.s32.totalorder %s24, %s25
    %p39 = scmp.eq.s32.totalorder %s17, 1
    %p40 = por %p38, %p39
    %p42 = scmp.ne.s32.totalorder %s25, %s41
    %p43 = scmp.eq.s32.totalorder %s17, 0
    %p44 = por %p42, %p43
    %s46 = sadd.s32 %s45, 1
    %p49 = scmp.eq.s32.totalorder %s11, 1
    %p50 = scmp.ne.s32.totalorder %s45, %s47
    %p51 = scmp.eq.s32.totalorder %s11, 0
    %p52 = por %p50, %p51
    %p53 = scmp.ne.s32.totalorder %s45, %s47
    %p54 = scmp.eq.s32.totalorder %s16, 1
    %p55 = por %p53, %p54
    %p56 = scmp.ne.s32.totalorder %s47, %s48
    %p57 = scmp.eq.s32.totalorder %s16, 0
    %p58 = por %p56, %p57
    %p59 = scmp.ne.s32.totalorder %s47, %s48
    %p60 = scmp.eq.s32.totalorder %s17, 1
    %p61 = por %p59, %p60
    %p63 = scmp.ne.s32.totalorder %s48, %s62
    %p64 = scmp.eq.s32.totalorder %s17, 0
    %p65 = por %p63, %p64
    %s66 = ssub.s32 %s11, %s18
    %p67 = scmp.eq.s32.totalorder %s66, 0
    %s69 = sadd.s32 %s68, 1
    %s70 = scalar_select %p67, %s68, %s69
    %p73 = pneg %p67
    %p74 = scmp.eq.s32.totalorder %s11, 1
    %p75 = por %p73, %p74
    %p76 = scmp.ne.s32.totalorder %s68, %s71
    %p77 = scmp.eq.s32.totalorder %s11, 0
    %p78 = por %p76, %p77
    %p79 = scmp.ne.s32.totalorder %s68, %s71
    %p80 = scmp.eq.s32.totalorder %s16, 1
    %p81 = por %p79, %p80
    %p82 = scmp.ne.s32.totalorder %s71, %s72
    %p83 = scmp.eq.s32.totalorder %s16, 0
    %p84 = por %p82, %p83
    %p85 = scmp.ne.s32.totalorder %s71, %s72
    %p86 = scmp.eq.s32.totalorder %s17, 1
    %p87 = por %p85, %p86
    %p89 = scmp.ne.s32.totalorder %s72, %s88
    %p90 = scmp.eq.s32.totalorder %s17, 0
    %p91 = por %p89, %p90
    %s93 = sadd.s32 %s92, 1
    %p96 = scmp.eq.s32.totalorder %s11, 1
    %p97 = scmp.ne.s32.totalorder %s92, %s94
    %p98 = scmp.eq.s32.totalorder %s11, 0
    %p99 = por %p97, %p98
    %p100 = scmp.ne.s32.totalorder %s92, %s94
    %p101 = scmp.eq.s32.totalorder %s16, 1
    %p102 = por %p100, %p101
    %p103 = scmp.ne.s32.totalorder %s94, %s95
    %p104 = scmp.eq.s32.totalorder %s16, 0
    %p105 = por %p103, %p104
    %p106 = scmp.ne.s32.totalorder %s94, %s95
    %p107 = scmp.eq.s32.totalorder %s17, 1
    %p108 = por %p106, %p107
    %p110 = scmp.ne.s32.totalorder %s95, %s109
    %p111 = scmp.eq.s32.totalorder %s17, 0
    %p112 = por %p110, %p111
    %s114 = sadd.s32 %s113, 1
    %p117 = scmp.eq.s32.totalorder %s11, 1
    %p118 = scmp.ne.s32.totalorder %s113, %s115
    %p119 = scmp.eq.s32.totalorder %s11, 0
    %p120 = por %p118, %p119
    %p121 = scmp.ne.s32.totalorder %s113, %s115
    %p122 = scmp.eq.s32.totalorder %s16, 1
    %p123 = por %p121, %p122
    %p124 = scmp.ne.s32.totalorder %s115, %s116
    %p125 = scmp.eq.s32.totalorder %s16, 0
    %p126 = por %p124, %p125
    %p127 = scmp.ne.s32.totalorder %s115, %s116
    %p128 = scmp.eq.s32.totalorder %s17, 1
    %p129 = por %p127, %p128
    %p131 = scmp.ne.s32.totalorder %s116, %s130
    %p132 = scmp.eq.s32.totalorder %s17, 0
    %p133 = por %p131, %p132
    %s134 = ssub.s32 %s11, %s18
    %p135 = scmp.eq.s32.totalorder %s134, 0
    %s137 = sadd.s32 %s136, 1
    %s138 = scalar_select %p135, %s136, %s137
    %p141 = pneg %p135
    %p142 = scmp.eq.s32.totalorder %s11, 1
    %p143 = por %p141, %p142
    %p144 = scmp.ne.s32.totalorder %s136, %s139
    %p145 = scmp.eq.s32.totalorder %s11, 0
    %p146 = por %p144, %p145
    %p147 = scmp.ne.s32.totalorder %s136, %s139
    %p148 = scmp.eq.s32.totalorder %s16, 1
    %p149 = por %p147, %p148
    %p150 = scmp.ne.s32.totalorder %s139, %s140
    %p151 = scmp.eq.s32.totalorder %s16, 0
    %p152 = por %p150, %p151
    %p153 = scmp.ne.s32.totalorder %s139, %s140
    %p154 = scmp.eq.s32.totalorder %s17, 1
    %p155 = por %p153, %p154
    %p157 = scmp.ne.s32.totalorder %s140, %s156
    %p158 = scmp.eq.s32.totalorder %s17, 0
    %p159 = por %p157, %p158
    %p160 = scmp.le.s32.totalorder 1, %s11
    %p161 = scmp.lt.s32.totalorder %s11, 3
    %p162 = pnand %p160, %p161
    %p163 = pneg %p162
    // Predicated region
    $region9: #{basic_block.9} parent=5 // pred_check
      _
    $region10: #{basic_block.9} parent=5 // pred_check_branch
      %165 = sbr.rel (%p162) target = $region12
    $region11: #{basic_block.9} parent=5 // pred_region
      %s166 = ssub.s32 %s11, 1
      // Predicated region
      $region13: #{basic_block.9} parent=11 // pred_check
        %p167 = pneg %p58
      $region14: #{basic_block.9} parent=11 // pred_check_branch
        %169 = sbr.rel (%p167) target = $region16
      $region15: #{basic_block.9} parent=11 // pred_region
        _
      $region16: #{basic_block.9} parent=11 // pred_fallthru
        _
      // Predicated region
      $region17: #{basic_block.9} parent=11 // pred_check
        %p170 = pneg %p105
      $region18: #{basic_block.9} parent=11 // pred_check_branch
        %172 = sbr.rel (%p170) target = $region20
      $region19: #{basic_block.9} parent=11 // pred_region
        _
      $region20: #{basic_block.9} parent=11 // pred_fallthru
        _
      // Predicated region
      $region21: #{basic_block.9} parent=11 // pred_check
        %p173 = pneg %p126
      $region22: #{basic_block.9} parent=11 // pred_check_branch
        %175 = sbr.rel (%p173) target = $region24
      $region23: #{basic_block.9} parent=11 // pred_region
        _
      $region24: #{basic_block.9} parent=11 // pred_fallthru
        _
    $region12: #{basic_block.9} parent=5 // pred_fallthru
      _
    %p176 = scmp.lt.s32.totalorder %s11, 2
    // Predicated region
    $region25: #{basic_block.9} parent=5 // pred_check
      %p177 = pneg %p176
    $region26: #{basic_block.9} parent=5 // pred_check_branch
      %179 = sbr.rel (%p177) target = $region28
    $region27: #{basic_block.9} parent=5 // pred_region
      // Predicated region
      $region29: #{basic_block.9} parent=27 // pred_check
        %p180 = pneg %p31
      $region30: #{basic_block.9} parent=27 // pred_check_branch
        %182 = sbr.rel (%p180) target = $region32
      $region31: #{basic_block.9} parent=27 // pred_region
        %s183 = smul.u32 16, %s11
        %p184 = scmp.lt.s32.totalorder %s183, 31
        %s185 = scalar_select %p184, %s183, 31
        %s186 = smul.addr %s185, 4
        %s187 = scalar_lea.vmem %s0, %s186
        %s188 = smul.u32 16, %s11
      $region32: #{basic_block.9} parent=27 // pred_fallthru
        _
      // Predicated region
      $region33: #{basic_block.9} parent=27 // pred_check
        %p189 = pneg %p78
      $region34: #{basic_block.9} parent=27 // pred_check_branch
        %191 = sbr.rel (%p189) target = $region36
      $region35: #{basic_block.9} parent=27 // pred_region
        %s192 = smul.u32 16, %s11
        %p193 = scmp.lt.s32.totalorder %s192, 31
        %s194 = scalar_select %p193, %s192, 31
        %s195 = smul.addr %s194, 4
        %s196 = scalar_lea.vmem %s2, %s195
        %s197 = smul.u32 16, %s11
      $region36: #{basic_block.9} parent=27 // pred_fallthru
        _
    $region28: #{basic_block.9} parent=5 // pred_fallthru
      _
    %p198 = scmp.le.s32.totalorder 1, %s11
    %p199 = scmp.lt.s32.totalorder %s11, 3
    %p200 = pnand %p198, %p199
    %p201 = pneg %p200
    // Predicated region
    $region37: #{basic_block.9} parent=5 // pred_check
      _
    $region38: #{basic_block.9} parent=5 // pred_check_branch
      %203 = sbr.rel (%p200) target = $region40
    $region39: #{basic_block.9} parent=5 // pred_region
      %s204 = ssub.s32 %s11, 1
      %s205 = smul.u32 16, %s16
      %p206 = scmp.lt.s32.totalorder %s205, 31
      %s207 = scalar_select %p206, %s205, 31
      %s208 = smul.addr %s207, 4
      %s209 = scalar_lea.vmem %s0, %s208
      %p210 = pneg %p37
      %p211 = pneg %p34
      %p212 = pneg %p58
      %p213 = pneg %p55
      %s214 = smul.u32 16, %s16
      %p215 = scmp.lt.s32.totalorder %s214, 31
      %s216 = scalar_select %p215, %s214, 31
      %s217 = smul.addr %s216, 4
      %s218 = scalar_lea.vmem %s2, %s217
      %p219 = pneg %p84
      %p220 = pneg %p81
      %p221 = pneg %p105
      %p222 = pneg %p102
      %p223 = pneg %p126
      %p224 = pneg %p123
      %p225 = pneg %p152
      %p226 = pneg %p149
      %s227 = smul.u32 16, %s16
      %p228 = scmp.lt.s32.totalorder %s227, 31
      %s229 = scalar_select %p228, %s227, 31
      %s230 = smul.addr %s229, 8
      %s231 = scalar_lea.vmem %s5, %s230
      %s232 = smul.u32 16, %s16
      %p233 = scmp.lt.s32.totalorder %s232, 31
      %s234 = scalar_select %p233, %s232, 31
      %s235 = smul.addr %s234, 4
      %s236 = scalar_lea.vmem %s0, %s235
      %s237 = smul.u32 16, %s16
      %s238 = smul.u32 16, %s16
      %p239 = scmp.lt.s32.totalorder %s238, 31
      %s240 = scalar_select %p239, %s238, 31
      %s241 = smul.addr %s240, 4
      %s242 = scalar_lea.vmem %s2, %s241
      %s243 = smul.u32 16, %s16
      %s244 = smul.u32 16, %s16
      %p245 = scmp.lt.s32.totalorder %s244, 31
      %s246 = scalar_select %p245, %s244, 31
      %s247 = smul.addr %s246, 8
      %s248 = scalar_lea.vmem %s5, %s247
      %s249 = smul.u32 16, %s16
      %v251 = vld [vmem:[%s236] sm:$0xf]
      %v252 = vld [vmem:[%s236 + $0x4] sm:$0xf]
      %v253 = vld [vmem:[%s236 + $0x8] sm:$0xf]
      %v254 = vld [vmem:[%s236 + $0xc] sm:$0xf]
      %v255 = vld [vmem:[%s236 + $0x10] sm:$0xf]
      %v256 = vld [vmem:[%s236 + $0x14] sm:$0xf]
      %v257 = vld [vmem:[%s236 + $0x18] sm:$0xf]
      %v258 = vld [vmem:[%s236 + $0x1c] sm:$0xf]
      %v259 = vld [vmem:[%s236 + $0x20] sm:$0xf]
      %v260 = vld [vmem:[%s236 + $0x24] sm:$0xf]
      %v261 = vld [vmem:[%s236 + $0x28] sm:$0xf]
      %v262 = vld [vmem:[%s236 + $0x2c] sm:$0xf]
      %v263 = vld [vmem:[%s236 + $0x30] sm:$0xf]
      %v264 = vld [vmem:[%s236 + $0x34] sm:$0xf]
      %v265 = vld [vmem:[%s236 + $0x38] sm:$0xf]
      %v266 = vld [vmem:[%s236 + $0x3c] sm:$0xf]
      %v267 = vunpack.c.l.bf16 %v251
      %v268 = vunpack.c.l.bf16 %v252
      %v269 = vunpack.c.l.bf16 %v253
      %v270 = vunpack.c.l.bf16 %v254
      %v271 = vunpack.c.l.bf16 %v255
      %v272 = vunpack.c.l.bf16 %v256
      %v273 = vunpack.c.l.bf16 %v257
      %v274 = vunpack.c.l.bf16 %v258
      %v275 = vunpack.c.l.bf16 %v259
      %v276 = vunpack.c.l.bf16 %v260
      %v277 = vunpack.c.l.bf16 %v261
      %v278 = vunpack.c.l.bf16 %v262
      %v279 = vunpack.c.l.bf16 %v263
      %v280 = vunpack.c.l.bf16 %v264
      %v281 = vunpack.c.l.bf16 %v265
      %v282 = vunpack.c.l.bf16 %v266
      %v283 = vld [vmem:[%s242] sm:$0xf]
      %v284 = vld [vmem:[%s242 + $0x4] sm:$0xf]
      %v285 = vld [vmem:[%s242 + $0x8] sm:$0xf]
      %v286 = vld [vmem:[%s242 + $0xc] sm:$0xf]
      %v287 = vld [vmem:[%s242 + $0x10] sm:$0xf]
      %v288 = vld [vmem:[%s242 + $0x14] sm:$0xf]
      %v289 = vld [vmem:[%s242 + $0x18] sm:$0xf]
      %v290 = vld [vmem:[%s242 + $0x1c] sm:$0xf]
      %v291 = vld [vmem:[%s242 + $0x20] sm:$0xf]
      %v292 = vld [vmem:[%s242 + $0x24] sm:$0xf]
      %v293 = vld [vmem:[%s242 + $0x28] sm:$0xf]
      %v294 = vld [vmem:[%s242 + $0x2c] sm:$0xf]
      %v295 = vld [vmem:[%s242 + $0x30] sm:$0xf]
      %v296 = vld [vmem:[%s242 + $0x34] sm:$0xf]
      %v297 = vld [vmem:[%s242 + $0x38] sm:$0xf]
      %v298 = vld [vmem:[%s242 + $0x3c] sm:$0xf]
      %v299 = vld [vmem:[%s3] sm:$0xf]
      %v300 = vld [vmem:[%s3 + $0x4] sm:$0xf]
      %v301 = vld [vmem:[%s3 + $0x8] sm:$0xf]
      %v302 = vld [vmem:[%s3 + $0xc] sm:$0xf]
      %v303 = vld [vmem:[%s3 + $0x10] sm:$0xf]
      %v304 = vld [vmem:[%s3 + $0x14] sm:$0xf]
      %v305 = vld [vmem:[%s3 + $0x18] sm:$0xf]
      %v306 = vld [vmem:[%s3 + $0x1c] sm:$0xf]
      %v307 = vld [vmem:[%s3 + $0x20] sm:$0xf]
      %v308 = vld [vmem:[%s3 + $0x24] sm:$0xf]
      %v309 = vld [vmem:[%s3 + $0x28] sm:$0xf]
      %v310 = vld [vmem:[%s3 + $0x2c] sm:$0xf]
      %v311 = vld [vmem:[%s3 + $0x30] sm:$0xf]
      %v312 = vld [vmem:[%s3 + $0x34] sm:$0xf]
      %v313 = vld [vmem:[%s3 + $0x38] sm:$0xf]
      %v314 = vld [vmem:[%s3 + $0x3c] sm:$0xf]
      %v331 = vunpack.c.l.b16 %v283
      %v332 = vunpack.c.l.b16 %v284
      %v333 = vunpack.c.l.b16 %v285
      %v334 = vunpack.c.l.b16 %v286
      %v335 = vunpack.c.l.b16 %v287
      %v336 = vunpack.c.l.b16 %v288
      %v337 = vunpack.c.l.b16 %v289
      %v338 = vunpack.c.l.b16 %v290
      %v339 = vunpack.c.l.b16 %v291
      %v340 = vunpack.c.l.b16 %v292
      %v341 = vunpack.c.l.b16 %v293
      %v342 = vunpack.c.l.b16 %v294
      %v343 = vunpack.c.l.b16 %v295
      %v344 = vunpack.c.l.b16 %v296
      %v345 = vunpack.c.l.b16 %v297
      %v346 = vunpack.c.l.b16 %v298
      %v347 = vpack.c.b16 %v332, %v331
      %v348 = vpack.c.b16 %v334, %v333
      %v349 = vpack.c.b16 %v336, %v335
      %v350 = vpack.c.b16 %v338, %v337
      %v351 = vpack.c.b16 %v340, %v339
      %v352 = vpack.c.b16 %v342, %v341
      %v353 = vpack.c.b16 %v344, %v343
      %v354 = vpack.c.b16 %v346, %v345
      %v379 = vunpack.c.l.b16 %v299
      %v380 = vunpack.c.l.b16 %v300
      %v381 = vunpack.c.l.b16 %v301
      %v382 = vunpack.c.l.b16 %v302
      %v383 = vunpack.c.l.b16 %v303
      %v384 = vunpack.c.l.b16 %v304
      %v385 = vunpack.c.l.b16 %v305
      %v386 = vunpack.c.l.b16 %v306
      %v387 = vunpack.c.l.b16 %v307
      %v388 = vunpack.c.l.b16 %v308
      %v389 = vunpack.c.l.b16 %v309
      %v390 = vunpack.c.l.b16 %v310
      %v391 = vunpack.c.l.b16 %v311
      %v392 = vunpack.c.l.b16 %v312
      %v393 = vunpack.c.l.b16 %v313
      %v394 = vunpack.c.l.b16 %v314
      %v395 = vpack.c.b16 %v380, %v379
      %v396 = vpack.c.b16 %v382, %v381
      %v397 = vpack.c.b16 %v384, %v383
      %v398 = vpack.c.b16 %v386, %v385
      %v399 = vpack.c.b16 %v388, %v387
      %v400 = vpack.c.b16 %v390, %v389
      %v401 = vpack.c.b16 %v392, %v391
      %v402 = vpack.c.b16 %v394, %v393
      %411 = vmatprep.subr.bf16.mxu0 0
      %412 = vmatpush1.bf16.msra.mxu0 %v395
      %413 = vmatprep.subr.bf16.mxu0 0
      %414 = vmatpush1.bf16.msra.mxu0 %v396
      %415 = vmatprep.subr.bf16.mxu0 0
      %416 = vmatpush1.bf16.msra.mxu0 %v397
      %417 = vmatprep.subr.bf16.mxu0 0
      %418 = vmatpush1.bf16.msra.mxu0 %v398
      %419 = vmatprep.subr.bf16.mxu0 0
      %420 = vmatpush1.bf16.msra.mxu0 %v399
      %421 = vmatprep.subr.bf16.mxu0 0
      %422 = vmatpush1.bf16.msra.mxu0 %v400
      %423 = vmatprep.subr.bf16.mxu0 0
      %424 = vmatpush1.bf16.msra.mxu0 %v401
      %425 = vmatprep.subr.bf16.mxu0 0
      %426 = vmatpush1.bf16.msra.mxu0 %v402
      %427 = vmatprep.subr.bf16.mxu0 0
      %428 = vmatpush1.bf16.msra.mxu0 0
      %429 = vmatprep.subr.bf16.mxu0 0
      %430 = vmatpush1.bf16.msra.mxu0 0
      %431 = vmatprep.subr.bf16.mxu0 0
      %432 = vmatpush1.bf16.msra.mxu0 0
      %433 = vmatprep.subr.bf16.mxu0 0
      %434 = vmatpush1.bf16.msra.mxu0 0
      %435 = vmatprep.subr.bf16.mxu0 0
      %436 = vmatpush1.bf16.msra.mxu0 0
      %437 = vmatprep.subr.bf16.mxu0 0
      %438 = vmatpush1.bf16.msra.mxu0 0
      %439 = vmatprep.subr.bf16.mxu0 0
      %440 = vmatpush1.bf16.msra.mxu0 0
      %441 = vmatprep.subr.bf16.mxu0 0
      %442 = vmatpush1.bf16.msra.mxu0 0
      %443 = vmatprep.mubr.bf16.mxu0 0
      %444 = vmatmul.mubr.bf16.gmra.mrb[0].mxu0 %v347
      %v445 = vpop.f32.mrb[0].mxu0
      %v446 = vadd.f32 0.0, %v445
      %v447 = vpop.f32.mrb[0].mxu0
      %v448 = vpop.f32.mrb[0].mxu0
      %v449 = vadd.f32 0.0, %v448
      %v450 = vpop.f32.mrb[0].mxu0
      %451 = vmatprep.mubr.bf16.mxu0 0
      %452 = vmatmul.mubr.bf16.gmra.mrb[0].mxu0 %v348
      %v453 = vpop.f32.mrb[0].mxu0
      %v454 = vadd.f32 0.0, %v453
      %v455 = vpop.f32.mrb[0].mxu0
      %v456 = vpop.f32.mrb[0].mxu0
      %v457 = vadd.f32 0.0, %v456
      %v458 = vpop.f32.mrb[0].mxu0
      %459 = vmatprep.mubr.bf16.mxu0 0
      %460 = vmatmul.mubr.bf16.gmra.mrb[0].mxu0 %v349
      %v461 = vpop.f32.mrb[0].mxu0
      %v462 = vadd.f32 0.0, %v461
      %v463 = vpop.f32.mrb[0].mxu0
      %v464 = vpop.f32.mrb[0].mxu0
      %v465 = vadd.f32 0.0, %v464
      %v466 = vpop.f32.mrb[0].mxu0
      %467 = vmatprep.mubr.bf16.mxu0 0
      %468 = vmatmul.mubr.bf16.gmra.mrb[0].mxu0 %v350
      %v469 = vpop.f32.mrb[0].mxu0
      %v470 = vadd.f32 0.0, %v469
      %v471 = vpop.f32.mrb[0].mxu0
      %v472 = vpop.f32.mrb[0].mxu0
      %v473 = vadd.f32 0.0, %v472
      %v474 = vpop.f32.mrb[0].mxu0
      %475 = vmatprep.mubr.bf16.mxu0 0
      %476 = vmatmul.mubr.bf16.gmra.mrb[0].mxu0 %v351
      %v477 = vpop.f32.mrb[0].mxu0
      %v478 = vadd.f32 0.0, %v477
      %v479 = vpop.f32.mrb[0].mxu0
      %v480 = vpop.f32.mrb[0].mxu0
      %v481 = vadd.f32 0.0, %v480
      %v482 = vpop.f32.mrb[0].mxu0
      %483 = vmatprep.mubr.bf16.mxu0 0
      %484 = vmatmul.mubr.bf16.gmra.mrb[0].mxu0 %v352
      %v485 = vpop.f32.mrb[0].mxu0
      %v486 = vadd.f32 0.0, %v485
      %v487 = vpop.f32.mrb[0].mxu0
      %v488 = vpop.f32.mrb[0].mxu0
      %v489 = vadd.f32 0.0, %v488
      %v490 = vpop.f32.mrb[0].mxu0
      %491 = vmatprep.mubr.bf16.mxu0 0
      %492 = vmatmul.mubr.bf16.gmra.mrb[0].mxu0 %v353
      %v493 = vpop.f32.mrb[0].mxu0
      %v494 = vadd.f32 0.0, %v493
      %v495 = vpop.f32.mrb[0].mxu0
      %v496 = vpop.f32.mrb[0].mxu0
      %v497 = vadd.f32 0.0, %v496
      %v498 = vpop.f32.mrb[0].mxu0
      %499 = vmatprep.mubr.bf16.mxu0 0
      %500 = vmatmul.mubr.bf16.gmra.mrb[0].mxu0 %v354
      %v501 = vpop.f32.mrb[0].mxu0
      %v502 = vadd.f32 0.0, %v501
      %v503 = vpop.f32.mrb[0].mxu0
      %v504 = vpop.f32.mrb[0].mxu0
      %v505 = vadd.f32 0.0, %v504
      %v506 = vpop.f32.mrb[0].mxu0
      %507 = vdwg.mxu0
      %v508 = vld [vmem:[%s1] sm:$0x1]
      %v509 = vlaneseq
      %v510 = vshrl.u32 %v509, 7
      %v511 = vsub.s32 0, %v510
      %v512 = vrot.slane %v508, %v511
      %v513 = vmul.f32 %v267, %v512
      %v514 = vmul.f32 %v268, %v512
      %v515 = vmul.f32 %v269, %v512
      %v516 = vmul.f32 %v270, %v512
      %v517 = vmul.f32 %v271, %v512
      %v518 = vmul.f32 %v272, %v512
      %v519 = vmul.f32 %v273, %v512
      %v520 = vmul.f32 %v274, %v512
      %v521 = vmul.f32 %v275, %v512
      %v522 = vmul.f32 %v276, %v512
      %v523 = vmul.f32 %v277, %v512
      %v524 = vmul.f32 %v278, %v512
      %v525 = vmul.f32 %v279, %v512
      %v526 = vmul.f32 %v280, %v512
      %v527 = vmul.f32 %v281, %v512
      %v528 = vmul.f32 %v282, %v512
      %v529 = vld [vmem:[%s1 + $0x1] sm:$0x1]
      %v530 = vlaneseq
      %v531 = vshrl.u32 %v530, 7
      %v532 = vsub.s32 0, %v531
      %v533 = vrot.slane %v529, %v532
      %v534 = vadd.f32 %v513, %v533
      %v535 = vadd.f32 %v514, %v533
      %v536 = vadd.f32 %v515, %v533
      %v537 = vadd.f32 %v516, %v533
      %v538 = vadd.f32 %v517, %v533
      %v539 = vadd.f32 %v518, %v533
      %v540 = vadd.f32 %v519, %v533
      %v541 = vadd.f32 %v520, %v533
      %v542 = vadd.f32 %v521, %v533
      %v543 = vadd.f32 %v522, %v533
      %v544 = vadd.f32 %v523, %v533
      %v545 = vadd.f32 %v524, %v533
      %v546 = vadd.f32 %v525, %v533
      %v547 = vadd.f32 %v526, %v533
      %v548 = vadd.f32 %v527, %v533
      %v549 = vadd.f32 %v528, %v533
      %v550 = vld [vmem:[%s4] sm:$0x1]
      %v551 = vlaneseq
      %v552 = vshrl.u32 %v551, 7
      %v553 = vsub.s32 0, %v552
      %v554 = vrot.slane %v550, %v553
      %v555 = vmul.f32 %v446, %v554
      %v556 = vmul.f32 %v449, %v554
      %v557 = vmul.f32 %v454, %v554
      %v558 = vmul.f32 %v457, %v554
      %v559 = vmul.f32 %v462, %v554
      %v560 = vmul.f32 %v465, %v554
      %v561 = vmul.f32 %v470, %v554
      %v562 = vmul.f32 %v473, %v554
      %v563 = vmul.f32 %v478, %v554
      %v564 = vmul.f32 %v481, %v554
      %v565 = vmul.f32 %v486, %v554
      %v566 = vmul.f32 %v489, %v554
      %v567 = vmul.f32 %v494, %v554
      %v568 = vmul.f32 %v497, %v554
      %v569 = vmul.f32 %v502, %v554
      %v570 = vmul.f32 %v505, %v554
      %v571 = vadd.f32 %v534, %v555
      %v572 = vadd.f32 %v535, %v556
      %v573 = vadd.f32 %v536, %v557
      %v574 = vadd.f32 %v537, %v558
      %v575 = vadd.f32 %v538, %v559
      %v576 = vadd.f32 %v539, %v560
      %v577 = vadd.f32 %v540, %v561
      %v578 = vadd.f32 %v541, %v562
      %v579 = vadd.f32 %v542, %v563
      %v580 = vadd.f32 %v543, %v564
      %v581 = vadd.f32 %v544, %v565
      %v582 = vadd.f32 %v545, %v566
      %v583 = vadd.f32 %v546, %v567
      %v584 = vadd.f32 %v547, %v568
      %v585 = vadd.f32 %v548, %v569
      %v586 = vadd.f32 %v549, %v570
      %v587 = vld [vmem:[%s4 + $0x1] sm:$0x1]
      %v588 = vlaneseq
      %v589 = vshrl.u32 %v588, 7
      %v590 = vsub.s32 0, %v589
      %v591 = vrot.slane %v587, %v590
      %v592 = vadd.f32 %v571, %v591
      %v593 = vadd.f32 %v572, %v591
      %v594 = vadd.f32 %v573, %v591
      %v595 = vadd.f32 %v574, %v591
      %v596 = vadd.f32 %v575, %v591
      %v597 = vadd.f32 %v576, %v591
      %v598 = vadd.f32 %v577, %v591
      %v599 = vadd.f32 %v578, %v591
      %v600 = vadd.f32 %v579, %v591
      %v601 = vadd.f32 %v580, %v591
      %v602 = vadd.f32 %v581, %v591
      %v603 = vadd.f32 %v582, %v591
      %v604 = vadd.f32 %v583, %v591
      %v605 = vadd.f32 %v584, %v591
      %v606 = vadd.f32 %v585, %v591
      %v607 = vadd.f32 %v586, %v591
      %v608 = vmax.f32 %v592, 0.0
      %v609 = vmax.f32 %v593, 0.0
      %v610 = vmax.f32 %v594, 0.0
      %v611 = vmax.f32 %v595, 0.0
      %v612 = vmax.f32 %v596, 0.0
      %v613 = vmax.f32 %v597, 0.0
      %v614 = vmax.f32 %v598, 0.0
      %v615 = vmax.f32 %v599, 0.0
      %v616 = vmax.f32 %v600, 0.0
      %v617 = vmax.f32 %v601, 0.0
      %v618 = vmax.f32 %v602, 0.0
      %v619 = vmax.f32 %v603, 0.0
      %v620 = vmax.f32 %v604, 0.0
      %v621 = vmax.f32 %v605, 0.0
      %v622 = vmax.f32 %v606, 0.0
      %v623 = vmax.f32 %v607, 0.0
      %624 = vst [vmem:[%s248] sm:$0xff] %v608
      %625 = vst [vmem:[%s248 + $0x8] sm:$0xff] %v609
      %626 = vst [vmem:[%s248 + $0x10] sm:$0xff] %v610
      %627 = vst [vmem:[%s248 + $0x18] sm:$0xff] %v611
      %628 = vst [vmem:[%s248 + $0x20] sm:$0xff] %v612
      %629 = vst [vmem:[%s248 + $0x28] sm:$0xff] %v613
      %630 = vst [vmem:[%s248 + $0x30] sm:$0xff] %v614
      %631 = vst [vmem:[%s248 + $0x38] sm:$0xff] %v615
      %632 = vst [vmem:[%s248 + $0x40] sm:$0xff] %v616
      %633 = vst [vmem:[%s248 + $0x48] sm:$0xff] %v617
      %634 = vst [vmem:[%s248 + $0x50] sm:$0xff] %v618
      %635 = vst [vmem:[%s248 + $0x58] sm:$0xff] %v619
      %636 = vst [vmem:[%s248 + $0x60] sm:$0xff] %v620
      %637 = vst [vmem:[%s248 + $0x68] sm:$0xff] %v621
      %638 = vst [vmem:[%s248 + $0x70] sm:$0xff] %v622
      %639 = vst [vmem:[%s248 + $0x78] sm:$0xff] %v623
      %s640 = smul.u32 16, %s16
      %p641 = scmp.lt.s32.totalorder %s640, 31
      %s642 = scalar_select %p641, %s640, 31
      %s643 = smul.addr %s642, 8
      %s644 = scalar_lea.vmem %s5, %s643
      // Predicated region
      $region41: #{basic_block.9} parent=39 // pred_check
        %p645 = pneg %p149
      $region42: #{basic_block.9} parent=39 // pred_check_branch
        %647 = sbr.rel (%p645) target = $region44
      $region43: #{basic_block.9} parent=39 // pred_region
        %s648 = smul.u32 16, %s16
      $region44: #{basic_block.9} parent=39 // pred_fallthru
        _
    $region40: #{basic_block.9} parent=5 // pred_fallthru
      _
    %p649 = scmp.le.s32.totalorder 2, %s11
    // Predicated region
    $region45: #{basic_block.9} parent=5 // pred_check
      %p650 = pneg %p649
    $region46: #{basic_block.9} parent=5 // pred_check_branch
      %652 = sbr.rel (%p650) target = $region48
    $region47: #{basic_block.9} parent=5 // pred_region
      %s653 = ssub.s32 %s11, 2
      // Predicated region
      $region49: #{basic_block.9} parent=47 // pred_check
        %p654 = pneg %p155
      $region50: #{basic_block.9} parent=47 // pred_check_branch
        %656 = sbr.rel (%p654) target = $region52
      $region51: #{basic_block.9} parent=47 // pred_region
        %s657 = smul.u32 16, %s17
        %p658 = scmp.lt.s32.totalorder %s657, 31
        %s659 = scalar_select %p658, %s657, 31
        %s660 = smul.addr %s659, 8
        %s661 = scalar_lea.vmem %s5, %s660
      $region52: #{basic_block.9} parent=47 // pred_fallthru
        _
    $region48: #{basic_block.9} parent=5 // pred_fallthru
      _
  $region6: #{basic_block.9} parent=0 // loop_footer
    %s15 = sadd.s32 1, %s11
  $region7: #{basic_block.9} parent=0 // loop_footer_branch
    %10 = sbr.rel target = $region3
  $region8: #{basic_block.9} parent=0 // loop_exit
    _

// kernel: basic_block.7
$region0: #{basic_block.7}
  #allocation0 [shape = 'u32[]', space=smem, size = 0x4, offset = 0x4, fixed_abs, tag = 'smem constant byte address 0x4 - core index']
  #allocation1 [shape = 'u32[144,128]{1,0:T(1,128)}', space=vmem, size = 0x12000, scoped, tag = 'internal scratch']
  %s0 = inlined_call_operand.vmem [shape: bf16[2,160,128], index: 0, kind: input, shape index: {}]
  %s1 = inlined_call_operand.vmem [shape: bf16[9,128,128], index: 1, kind: input, shape index: {}]
  %s2 = inlined_call_operand.vmem [shape: f32[256,1], index: 2, kind: input, shape index: {}]
  %s3 = inlined_call_operand.vmem [shape: bf16[256,128], index: 3, kind: output, shape index: {0}]
  %s4 = inlined_call_operand.vmem [shape: f32[2,8,128], index: 4, kind: output, shape index: {1}]
  %5 = xla_tuple %s3, %s4
  %s6 = sld [smem:[#allocation0]]
  $region53: #{basic_block.7} parent=0
    _
  %s8 = ssub.s32 1, %s6
  %s9 = scalar_select 0, %s8, %s6
  loop: start=0, step=1, limit=4
  $region2: #{basic_block.7} parent=0 // loop_pre_header
    _
  $region3: #{basic_block.7} parent=0 // loop_header
    %s11 = sphi 0, %s15
    %p12 = scmp.ge.s32.totalorder %s11, 4
    %s21 = sphi 0, %s23
    %s24 = sphi 0, %s21
    %s25 = sphi 0, %s24
    %s41 = sphi 0, %s25
    %s45 = sphi 0, %s45
    %s47 = sphi 0, %s45
    %s48 = sphi 0, %s47
    %s62 = sphi 0, %s48
    %s68 = sphi 0, %s70
    %s71 = sphi 0, %s68
    %s72 = sphi 0, %s71
    %s88 = sphi 0, %s72
    %s94 = sphi 0, %s96
    %s97 = sphi 0, %s94
    %s98 = sphi 0, %s97
    %s114 = sphi 0, %s98
    %s120 = sphi 0, %s122
    %s123 = sphi 0, %s120
    %s124 = sphi 0, %s123
    %s140 = sphi 0, %s124
  $region4: #{basic_block.7} parent=0 // loop_header_branch
    %14 = sbr.rel (%p12) target = $region8
  $region5: #{basic_block.7} parent=0 // loop_body
    %s16 = ssub.s32 %s11, 1
    %s17 = ssub.s32 %s11, 2
    %s18 = sadd.s32 %s11, 1
    %s19 = ssub.s32 %s11, %s18
    %p20 = scmp.eq.s32.totalorder %s19, 0
    %s22 = sadd.s32 %s21, 1
    %s23 = scalar_select %p20, %s21, %s22
    %p26 = pneg %p20
    %p27 = scmp.eq.s32.totalorder %s11, 1
    %p28 = por %p26, %p27
    %p29 = scmp.ne.s32.totalorder %s21, %s24
    %p30 = scmp.eq.s32.totalorder %s11, 0
    %p31 = por %p29, %p30
    %p32 = scmp.ne.s32.totalorder %s21, %s24
    %p33 = scmp.eq.s32.totalorder %s16, 1
    %p34 = por %p32, %p33
    %p35 = scmp.ne.s32.totalorder %s24, %s25
    %p36 = scmp.eq.s32.totalorder %s16, 0
    %p37 = por %p35, %p36
    %p38 = scmp.ne.s32.totalorder %s24, %s25
    %p39 = scmp.eq.s32.totalorder %s17, 1
    %p40 = por %p38, %p39
    %p42 = scmp.ne.s32.totalorder %s25, %s41
    %p43 = scmp.eq.s32.totalorder %s17, 0
    %p44 = por %p42, %p43
    %s46 = sadd.s32 %s45, 1
    %p49 = scmp.eq.s32.totalorder %s11, 1
    %p50 = scmp.ne.s32.totalorder %s45, %s47
    %p51 = scmp.eq.s32.totalorder %s11, 0
    %p52 = por %p50, %p51
    %p53 = scmp.ne.s32.totalorder %s45, %s47
    %p54 = scmp.eq.s32.totalorder %s16, 1
    %p55 = por %p53, %p54
    %p56 = scmp.ne.s32.totalorder %s47, %s48
    %p57 = scmp.eq.s32.totalorder %s16, 0
    %p58 = por %p56, %p57
    %p59 = scmp.ne.s32.totalorder %s47, %s48
    %p60 = scmp.eq.s32.totalorder %s17, 1
    %p61 = por %p59, %p60
    %p63 = scmp.ne.s32.totalorder %s48, %s62
    %p64 = scmp.eq.s32.totalorder %s17, 0
    %p65 = por %p63, %p64
    %s66 = ssub.s32 %s11, %s18
    %p67 = scmp.eq.s32.totalorder %s66, 0
    %s69 = sadd.s32 %s68, 1
    %s70 = scalar_select %p67, %s68, %s69
    %p73 = pneg %p67
    %p74 = scmp.eq.s32.totalorder %s11, 1
    %p75 = por %p73, %p74
    %p76 = scmp.ne.s32.totalorder %s68, %s71
    %p77 = scmp.eq.s32.totalorder %s11, 0
    %p78 = por %p76, %p77
    %p79 = scmp.ne.s32.totalorder %s68, %s71
    %p80 = scmp.eq.s32.totalorder %s16, 1
    %p81 = por %p79, %p80
    %p82 = scmp.ne.s32.totalorder %s71, %s72
    %p83 = scmp.eq.s32.totalorder %s16, 0
    %p84 = por %p82, %p83
    %p85 = scmp.ne.s32.totalorder %s71, %s72
    %p86 = scmp.eq.s32.totalorder %s17, 1
    %p87 = por %p85, %p86
    %p89 = scmp.ne.s32.totalorder %s72, %s88
    %p90 = scmp.eq.s32.totalorder %s17, 0
    %p91 = por %p89, %p90
    %s92 = ssub.s32 %s11, %s18
    %p93 = scmp.eq.s32.totalorder %s92, 0
    %s95 = sadd.s32 %s94, 1
    %s96 = scalar_select %p93, %s94, %s95
    %p99 = pneg %p93
    %p100 = scmp.eq.s32.totalorder %s11, 1
    %p101 = por %p99, %p100
    %p102 = scmp.ne.s32.totalorder %s94, %s97
    %p103 = scmp.eq.s32.totalorder %s11, 0
    %p104 = por %p102, %p103
    %p105 = scmp.ne.s32.totalorder %s94, %s97
    %p106 = scmp.eq.s32.totalorder %s16, 1
    %p107 = por %p105, %p106
    %p108 = scmp.ne.s32.totalorder %s97, %s98
    %p109 = scmp.eq.s32.totalorder %s16, 0
    %p110 = por %p108, %p109
    %p111 = scmp.ne.s32.totalorder %s97, %s98
    %p112 = scmp.eq.s32.totalorder %s17, 1
    %p113 = por %p111, %p112
    %p115 = scmp.ne.s32.totalorder %s98, %s114
    %p116 = scmp.eq.s32.totalorder %s17, 0
    %p117 = por %p115, %p116
    %s118 = ssub.s32 %s11, %s18
    %p119 = scmp.eq.s32.totalorder %s118, 0
    %s121 = sadd.s32 %s120, 1
    %s122 = scalar_select %p119, %s120, %s121
    %p125 = pneg %p119
    %p126 = scmp.eq.s32.totalorder %s11, 1
    %p127 = por %p125, %p126
    %p128 = scmp.ne.s32.totalorder %s120, %s123
    %p129 = scmp.eq.s32.totalorder %s11, 0
    %p130 = por %p128, %p129
    %p131 = scmp.ne.s32.totalorder %s120, %s123
    %p132 = scmp.eq.s32.totalorder %s16, 1
    %p133 = por %p131, %p132
    %p134 = scmp.ne.s32.totalorder %s123, %s124
    %p135 = scmp.eq.s32.totalorder %s16, 0
    %p136 = por %p134, %p135
    %p137 = scmp.ne.s32.totalorder %s123, %s124
    %p138 = scmp.eq.s32.totalorder %s17, 1
    %p139 = por %p137, %p138
    %p141 = scmp.ne.s32.totalorder %s124, %s140
    %p142 = scmp.eq.s32.totalorder %s17, 0
    %p143 = por %p141, %p142
    %p144 = scmp.le.s32.totalorder 1, %s11
    %p145 = scmp.lt.s32.totalorder %s11, 3
    %p146 = pnand %p144, %p145
    %p147 = pneg %p146
    // Predicated region
    $region9: #{basic_block.7} parent=5 // pred_check
      _
    $region10: #{basic_block.7} parent=5 // pred_check_branch
      %149 = sbr.rel (%p146) target = $region12
    $region11: #{basic_block.7} parent=5 // pred_region
      %s150 = ssub.s32 %s11, 1
      // Predicated region
      $region13: #{basic_block.7} parent=11 // pred_check
        %p151 = pneg %p58
      $region14: #{basic_block.7} parent=11 // pred_check_branch
        %153 = sbr.rel (%p151) target = $region16
      $region15: #{basic_block.7} parent=11 // pred_region
        _
      $region16: #{basic_block.7} parent=11 // pred_fallthru
        _
    $region12: #{basic_block.7} parent=5 // pred_fallthru
      _
    %p154 = scmp.lt.s32.totalorder %s11, 2
    // Predicated region
    $region17: #{basic_block.7} parent=5 // pred_check
      %p155 = pneg %p154
    $region18: #{basic_block.7} parent=5 // pred_check_branch
      %157 = sbr.rel (%p155) target = $region20
    $region19: #{basic_block.7} parent=5 // pred_region
      // Predicated region
      $region21: #{basic_block.7} parent=19 // pred_check
        %p158 = pneg %p31
      $region22: #{basic_block.7} parent=19 // pred_check_branch
        %160 = sbr.rel (%p158) target = $region24
      $region23: #{basic_block.7} parent=19 // pred_region
        %p161 = scmp.lt.s32.totalorder %s11, 1
        %s162 = scalar_select %p161, %s11, 1
        %s163 = smul.addr %s162, 20
        %s164 = smul.addr %s163, 4
        %s165 = scalar_lea.vmem %s0, %s164
      $region24: #{basic_block.7} parent=19 // pred_fallthru
        _
      // Predicated region
      $region25: #{basic_block.7} parent=19 // pred_check
        %p166 = pneg %p78
      $region26: #{basic_block.7} parent=19 // pred_check_branch
        %168 = sbr.rel (%p166) target = $region28
      $region27: #{basic_block.7} parent=19 // pred_region
        %s169 = smul.u32 16, %s11
        %p170 = scmp.lt.s32.totalorder %s169, 31
        %s171 = scalar_select %p170, %s169, 31
        %s172 = smul.addr %s171, 8
        %s173 = scalar_lea.vmem %s2, %s172
        %s174 = smul.u32 16, %s11
      $region28: #{basic_block.7} parent=19 // pred_fallthru
        _
    $region20: #{basic_block.7} parent=5 // pred_fallthru
      _
    %p175 = scmp.le.s32.totalorder 1, %s11
    %p176 = scmp.lt.s32.totalorder %s11, 3
    %p177 = pnand %p175, %p176
    %p178 = pneg %p177
    // Predicated region
    $region29: #{basic_block.7} parent=5 // pred_check
      _
    $region30: #{basic_block.7} parent=5 // pred_check_branch
      %180 = sbr.rel (%p177) target = $region32
    $region31: #{basic_block.7} parent=5 // pred_region
      %s181 = ssub.s32 %s11, 1
      %p182 = scmp.lt.s32.totalorder %s16, 1
      %s183 = scalar_select %p182, %s16, 1
      %s184 = smul.addr %s183, 20
      %s185 = smul.addr %s184, 4
      %s186 = scalar_lea.vmem %s0, %s185
      %p187 = pneg %p37
      %p188 = pneg %p34
      %p189 = pneg %p58
      %p190 = pneg %p55
      %s191 = smul.u32 16, %s16
      %p192 = scmp.lt.s32.totalorder %s191, 31
      %s193 = scalar_select %p192, %s191, 31
      %s194 = smul.addr %s193, 8
      %s195 = scalar_lea.vmem %s2, %s194
      %p196 = pneg %p84
      %p197 = pneg %p81
      %p198 = pneg %p110
      %p199 = pneg %p107
      %s200 = smul.u32 16, %s16
      %p201 = scmp.lt.s32.totalorder %s200, 31
      %s202 = scalar_select %p201, %s200, 31
      %s203 = smul.addr %s202, 4
      %s204 = scalar_lea.vmem %s3, %s203
      %p205 = pneg %p136
      %p206 = pneg %p133
      %p207 = scmp.lt.s32.totalorder %s16, 1
      %s208 = scalar_select %p207, %s16, 1
      %s209 = smul.addr %s208, 8
      %s210 = scalar_lea.vmem %s4, %s209
      %p211 = scmp.lt.s32.totalorder %s16, 1
      %s212 = scalar_select %p211, %s16, 1
      %s213 = smul.addr %s212, 20
      %s214 = smul.addr %s213, 4
      %s215 = scalar_lea.vmem %s0, %s214
      %s216 = smul.u32 16, %s16
      %p217 = scmp.lt.s32.totalorder %s216, 31
      %s218 = scalar_select %p217, %s216, 31
      %s219 = smul.addr %s218, 8
      %s220 = scalar_lea.vmem %s2, %s219
      %s221 = smul.u32 16, %s16
      %s222 = smul.u32 16, %s16
      %p223 = scmp.lt.s32.totalorder %s222, 31
      %s224 = scalar_select %p223, %s222, 31
      %s225 = smul.addr %s224, 4
      %s226 = scalar_lea.vmem %s3, %s225
      %s227 = smul.u32 16, %s16
      %p228 = scmp.lt.s32.totalorder %s16, 1
      %s229 = scalar_select %p228, %s16, 1
      %s230 = smul.addr %s229, 8
      %s231 = scalar_lea.vmem %s4, %s230
      %v233 = vld [vmem:[%s215] sm:$0xc]
      %v234 = vld [vmem:[%s215 + $0x4] sm:$0xf]
      %v235 = vld [vmem:[%s215 + $0x8] sm:$0xf]
      %v236 = vld [vmem:[%s215 + $0xc] sm:$0xf]
      %v237 = vld [vmem:[%s215 + $0x10] sm:$0xf]
      %v238 = vld [vmem:[%s215 + $0x14] sm:$0xf]
      %v239 = vld [vmem:[%s215 + $0x18] sm:$0xf]
      %v240 = vld [vmem:[%s215 + $0x1c] sm:$0xf]
      %v241 = vld [vmem:[%s215 + $0x20] sm:$0xf]
      %v242 = vld [vmem:[%s215 + $0x24] sm:$0xf]
      %v243 = vld [vmem:[%s215 + $0x28] sm:$0xf]
      %v244 = vld [vmem:[%s215 + $0x2c] sm:$0xf]
      %v245 = vld [vmem:[%s215 + $0x30] sm:$0xf]
      %v246 = vld [vmem:[%s215 + $0x34] sm:$0xf]
      %v247 = vld [vmem:[%s215 + $0x38] sm:$0xf]
      %v248 = vld [vmem:[%s215 + $0x3c] sm:$0xf]
      %v249 = vld [vmem:[%s215 + $0x40] sm:$0x7]
      %v250 = vld [vmem:[%s1] sm:$0xf]
      %v251 = vld [vmem:[%s1 + $0x4] sm:$0xf]
      %v252 = vld [vmem:[%s1 + $0x8] sm:$0xf]
      %v253 = vld [vmem:[%s1 + $0xc] sm:$0xf]
      %v254 = vld [vmem:[%s1 + $0x10] sm:$0xf]
      %v255 = vld [vmem:[%s1 + $0x14] sm:$0xf]
      %v256 = vld [vmem:[%s1 + $0x18] sm:$0xf]
      %v257 = vld [vmem:[%s1 + $0x1c] sm:$0xf]
      %v258 = vld [vmem:[%s1 + $0x20] sm:$0xf]
      %v259 = vld [vmem:[%s1 + $0x24] sm:$0xf]
      %v260 = vld [vmem:[%s1 + $0x28] sm:$0xf]
      %v261 = vld [vmem:[%s1 + $0x2c] sm:$0xf]
      %v262 = vld [vmem:[%s1 + $0x30] sm:$0xf]
      %v263 = vld [vmem:[%s1 + $0x34] sm:$0xf]
      %v264 = vld [vmem:[%s1 + $0x38] sm:$0xf]
      %v265 = vld [vmem:[%s1 + $0x3c] sm:$0xf]
      %v266 = vld [vmem:[%s215] sm:$0x8]
      %s267 = scalar_lea.vmem %s1, 64
      %v268 = vld [vmem:[%s267] sm:$0xf]
      %v269 = vld [vmem:[%s267 + $0x4] sm:$0xf]
      %v270 = vld [vmem:[%s267 + $0x8] sm:$0xf]
      %v271 = vld [vmem:[%s267 + $0xc] sm:$0xf]
      %v272 = vld [vmem:[%s267 + $0x10] sm:$0xf]
      %v273 = vld [vmem:[%s267 + $0x14] sm:$0xf]
      %v274 = vld [vmem:[%s267 + $0x18] sm:$0xf]
      %v275 = vld [vmem:[%s267 + $0x1c] sm:$0xf]
      %v276 = vld [vmem:[%s267 + $0x20] sm:$0xf]
      %v277 = vld [vmem:[%s267 + $0x24] sm:$0xf]
      %v278 = vld [vmem:[%s267 + $0x28] sm:$0xf]
      %v279 = vld [vmem:[%s267 + $0x2c] sm:$0xf]
      %v280 = vld [vmem:[%s267 + $0x30] sm:$0xf]
      %v281 = vld [vmem:[%s267 + $0x34] sm:$0xf]
      %v282 = vld [vmem:[%s267 + $0x38] sm:$0xf]
      %v283 = vld [vmem:[%s267 + $0x3c] sm:$0xf]
      %v301 = vunpack.c.l.b16 %v266
      %v302 = vunpack.c.l.b16 %v234
      %v303 = vunpack.c.l.b16 %v235
      %v304 = vunpack.c.l.b16 %v236
      %v305 = vunpack.c.l.b16 %v237
      %v306 = vunpack.c.l.b16 %v238
      %v307 = vunpack.c.l.b16 %v239
      %v308 = vunpack.c.l.b16 %v240
      %v309 = vunpack.c.l.b16 %v241
      %v310 = vunpack.c.l.b16 %v242
      %v311 = vunpack.c.l.b16 %v243
      %v312 = vunpack.c.l.b16 %v244
      %v313 = vunpack.c.l.b16 %v245
      %v314 = vunpack.c.l.b16 %v246
      %v315 = vunpack.c.l.b16 %v247
      %v316 = vunpack.c.l.b16 %v248
      %v317 = vunpack.c.l.b16 %v249
      %v318 = vpack.c.b16 %v302, %v301
      %v319 = vpack.c.b16 %v304, %v303
      %v320 = vpack.c.b16 %v306, %v305
      %v321 = vpack.c.b16 %v308, %v307
      %v322 = vpack.c.b16 %v310, %v309
      %v323 = vpack.c.b16 %v312, %v311
      %v324 = vpack.c.b16 %v314, %v313
      %v325 = vpack.c.b16 %v316, %v315
      %v326 = vpack.c.b16 %v317, %v317
      %vm327 = vcmask 1044480
      %v328 = vrot.slane %v318, 3
      %v329 = vrot.slane %v319, 3
      %v330 = vsel %vm327, %v328, %v329
      %v331 = vrot.slane %v320, 3
      %v332 = vsel %vm327, %v329, %v331
      %v333 = vrot.slane %v321, 3
      %v334 = vsel %vm327, %v331, %v333
      %v335 = vrot.slane %v322, 3
      %v336 = vsel %vm327, %v333, %v335
      %v337 = vrot.slane %v323, 3
      %v338 = vsel %vm327, %v335, %v337
      %v339 = vrot.slane %v324, 3
      %v340 = vsel %vm327, %v337, %v339
      %v341 = vrot.slane %v325, 3
      %v342 = vsel %vm327, %v339, %v341
      %v343 = vrot.slane %v326, 3
      %v344 = vsel %vm327, %v341, %v343
      %v369 = vunpack.c.l.b16 %v268
      %v370 = vunpack.c.l.b16 %v269
      %v371 = vunpack.c.l.b16 %v270
      %v372 = vunpack.c.l.b16 %v271
      %v373 = vunpack.c.l.b16 %v272
      %v374 = vunpack.c.l.b16 %v273
      %v375 = vunpack.c.l.b16 %v274
      %v376 = vunpack.c.l.b16 %v275
      %v377 = vunpack.c.l.b16 %v276
      %v378 = vunpack.c.l.b16 %v277
      %v379 = vunpack.c.l.b16 %v278
      %v380 = vunpack.c.l.b16 %v279
      %v381 = vunpack.c.l.b16 %v280
      %v382 = vunpack.c.l.b16 %v281
      %v383 = vunpack.c.l.b16 %v282
      %v384 = vunpack.c.l.b16 %v283
      %v385 = vpack.c.b16 %v370, %v369
      %v386 = vpack.c.b16 %v372, %v371
      %v387 = vpack.c.b16 %v374, %v373
      %v388 = vpack.c.b16 %v376, %v375
      %v389 = vpack.c.b16 %v378, %v377
      %v390 = vpack.c.b16 %v380, %v379
      %v391 = vpack.c.b16 %v382, %v381
      %v392 = vpack.c.b16 %v384, %v383
      %401 = vmatprep.subr.bf16.mxu0 0
      %402 = vmatpush1.bf16.msra.mxu0 %v385
      %403 = vmatprep.subr.bf16.mxu0 0
      %404 = vmatpush1.bf16.msra.mxu0 %v386
      %405 = vmatprep.subr.bf16.mxu0 0
      %406 = vmatpush1.bf16.msra.mxu0 %v387
      %407 = vmatprep.subr.bf16.mxu0 0
      %408 = vmatpush1.bf16.msra.mxu0 %v388
      %409 = vmatprep.subr.bf16.mxu0 0
      %410 = vmatpush1.bf16.msra.mxu0 %v389
      %411 = vmatprep.subr.bf16.mxu0 0
      %412 = vmatpush1.bf16.msra.mxu0 %v390
      %413 = vmatprep.subr.bf16.mxu0 0
      %414 = vmatpush1.bf16.msra.mxu0 %v391
      %415 = vmatprep.subr.bf16.mxu0 0
      %416 = vmatpush1.bf16.msra.mxu0 %v392
      %417 = vmatprep.subr.bf16.mxu0 0
      %418 = vmatpush1.bf16.msra.mxu0 0
      %419 = vmatprep.subr.bf16.mxu0 0
      %420 = vmatpush1.bf16.msra.mxu0 0
      %421 = vmatprep.subr.bf16.mxu0 0
      %422 = vmatpush1.bf16.msra.mxu0 0
      %423 = vmatprep.subr.bf16.mxu0 0
      %424 = vmatpush1.bf16.msra.mxu0 0
      %425 = vmatprep.subr.bf16.mxu0 0
      %426 = vmatpush1.bf16.msra.mxu0 0
      %427 = vmatprep.subr.bf16.mxu0 0
      %428 = vmatpush1.bf16.msra.mxu0 0
      %429 = vmatprep.subr.bf16.mxu0 0
      %430 = vmatpush1.bf16.msra.mxu0 0
      %431 = vmatprep.subr.bf16.mxu0 0
      %432 = vmatpush1.bf16.msra.mxu0 0
      %433 = vmatprep.mubr.bf16.mxu0 0
      %434 = vmatmul.mubr.bf16.gmra.mrb[0].mxu0 %v330
      %v435 = vpop.f32.mrb[0].mxu0
      %v436 = vadd.f32 0.0, %v435
      %v437 = vpop.f32.mrb[0].mxu0
      %v438 = vpop.f32.mrb[0].mxu0
      %v439 = vadd.f32 0.0, %v438
      %v440 = vpop.f32.mrb[0].mxu0
      %441 = vmatprep.mubr.bf16.mxu0 0
      %442 = vmatmul.mubr.bf16.gmra.mrb[0].mxu0 %v332
      %v443 = vpop.f32.mrb[0].mxu0
      %v444 = vadd.f32 0.0, %v443
      %v445 = vpop.f32.mrb[0].mxu0
      %v446 = vpop.f32.mrb[0].mxu0
      %v447 = vadd.f32 0.0, %v446
      %v448 = vpop.f32.mrb[0].mxu0
      %449 = vmatprep.mubr.bf16.mxu0 0
      %450 = vmatmul.mubr.bf16.gmra.mrb[0].mxu0 %v334
      %v451 = vpop.f32.mrb[0].mxu0
      %v452 = vadd.f32 0.0, %v451
      %v453 = vpop.f32.mrb[0].mxu0
      %v454 = vpop.f32.mrb[0].mxu0
      %v455 = vadd.f32 0.0, %v454
      %v456 = vpop.f32.mrb[0].mxu0
      %457 = vmatprep.mubr.bf16.mxu0 0
      %458 = vmatmul.mubr.bf16.gmra.mrb[0].mxu0 %v336
      %v459 = vpop.f32.mrb[0].mxu0
      %v460 = vadd.f32 0.0, %v459
      %v461 = vpop.f32.mrb[0].mxu0
      %v462 = vpop.f32.mrb[0].mxu0
      %v463 = vadd.f32 0.0, %v462
      %v464 = vpop.f32.mrb[0].mxu0
      %465 = vmatprep.mubr.bf16.mxu0 0
      %466 = vmatmul.mubr.bf16.gmra.mrb[0].mxu0 %v338
      %v467 = vpop.f32.mrb[0].mxu0
      %v468 = vadd.f32 0.0, %v467
      %v469 = vpop.f32.mrb[0].mxu0
      %v470 = vpop.f32.mrb[0].mxu0
      %v471 = vadd.f32 0.0, %v470
      %v472 = vpop.f32.mrb[0].mxu0
      %473 = vmatprep.mubr.bf16.mxu0 0
      %474 = vmatmul.mubr.bf16.gmra.mrb[0].mxu0 %v340
      %v475 = vpop.f32.mrb[0].mxu0
      %v476 = vadd.f32 0.0, %v475
      %v477 = vpop.f32.mrb[0].mxu0
      %v478 = vpop.f32.mrb[0].mxu0
      %v479 = vadd.f32 0.0, %v478
      %v480 = vpop.f32.mrb[0].mxu0
      %481 = vmatprep.mubr.bf16.mxu0 0
      %482 = vmatmul.mubr.bf16.gmra.mrb[0].mxu0 %v342
      %v483 = vpop.f32.mrb[0].mxu0
      %v484 = vadd.f32 0.0, %v483
      %v485 = vpop.f32.mrb[0].mxu0
      %v486 = vpop.f32.mrb[0].mxu0
      %v487 = vadd.f32 0.0, %v486
      %v488 = vpop.f32.mrb[0].mxu0
      %489 = vmatprep.mubr.bf16.mxu0 0
      %490 = vmatmul.mubr.bf16.gmra.mrb[0].mxu0 %v344
      %v491 = vpop.f32.mrb[0].mxu0
      %v492 = vadd.f32 0.0, %v491
      %v493 = vpop.f32.mrb[0].mxu0
      %v494 = vpop.f32.mrb[0].mxu0
      %v495 = vadd.f32 0.0, %v494
      %v496 = vpop.f32.mrb[0].mxu0
      %497 = vdwg.mxu0
      %v499 = vunpack.c.l.b16 %v233
      %v500 = vpack.c.b16 %v302, %v499
      %vm501 = vsmask.f32 5376
      %v503 = vshrl.u32 %v500, 16
      %v505 = vrot.slane %v503, 2
      %v506 = vshll.u32 %v500, 16
      %v508 = vrot.slane %v506, 3
      %v509 = vor.u32 %v505, %v508
      %v511 = vshrl.u32 %v319, 16
      %v513 = vrot.slane %v511, 2
      %v514 = vshll.u32 %v319, 16
      %v516 = vrot.slane %v514, 3
      %v517 = vor.u32 %v513, %v516
      %v518 = vsel %vm501, %v509, %v517
      %v520 = vshrl.u32 %v320, 16
      %v522 = vrot.slane %v520, 2
      %v523 = vshll.u32 %v320, 16
      %v525 = vrot.slane %v523, 3
      %v526 = vor.u32 %v522, %v525
      %v527 = vsel %vm501, %v517, %v526
      %v529 = vshrl.u32 %v321, 16
      %v531 = vrot.slane %v529, 2
      %v532 = vshll.u32 %v321, 16
      %v534 = vrot.slane %v532, 3
      %v535 = vor.u32 %v531, %v534
      %v536 = vsel %vm501, %v526, %v535
      %v538 = vshrl.u32 %v322, 16
      %v540 = vrot.slane %v538, 2
      %v541 = vshll.u32 %v322, 16
      %v543 = vrot.slane %v541, 3
      %v544 = vor.u32 %v540, %v543
      %v545 = vsel %vm501, %v535, %v544
      %v547 = vshrl.u32 %v323, 16
      %v549 = vrot.slane %v547, 2
      %v550 = vshll.u32 %v323, 16
      %v552 = vrot.slane %v550, 3
      %v553 = vor.u32 %v549, %v552
      %v554 = vsel %vm501, %v544, %v553
      %v556 = vshrl.u32 %v324, 16
      %v558 = vrot.slane %v556, 2
      %v559 = vshll.u32 %v324, 16
      %v561 = vrot.slane %v559, 3
      %v562 = vor.u32 %v558, %v561
      %v563 = vsel %vm501, %v553, %v562
      %v565 = vshrl.u32 %v325, 16
      %v567 = vrot.slane %v565, 2
      %v568 = vshll.u32 %v325, 16
      %v570 = vrot.slane %v568, 3
      %v571 = vor.u32 %v567, %v570
      %v572 = vsel %vm501, %v562, %v571
      %v574 = vshrl.u32 %v326, 16
      %v576 = vrot.slane %v574, 2
      %v577 = vshll.u32 %v326, 16
      %v579 = vrot.slane %v577, 3
      %v580 = vor.u32 %v576, %v579
      %v581 = vsel %vm501, %v571, %v580
      %v606 = vunpack.c.l.b16 %v250
      %v607 = vunpack.c.l.b16 %v251
      %v608 = vunpack.c.l.b16 %v252
      %v609 = vunpack.c.l.b16 %v253
      %v610 = vunpack.c.l.b16 %v254
      %v611 = vunpack.c.l.b16 %v255
      %v612 = vunpack.c.l.b16 %v256
      %v613 = vunpack.c.l.b16 %v257
      %v614 = vunpack.c.l.b16 %v258
      %v615 = vunpack.c.l.b16 %v259
      %v616 = vunpack.c.l.b16 %v260
      %v617 = vunpack.c.l.b16 %v261
      %v618 = vunpack.c.l.b16 %v262
      %v619 = vunpack.c.l.b16 %v263
      %v620 = vunpack.c.l.b16 %v264
      %v621 = vunpack.c.l.b16 %v265
      %v622 = vpack.c.b16 %v607, %v606
      %v623 = vpack.c.b16 %v609, %v608
      %v624 = vpack.c.b16 %v611, %v610
      %v625 = vpack.c.b16 %v613, %v612
      %v626 = vpack.c.b16 %v615, %v614
      %v627 = vpack.c.b16 %v617, %v616
      %v628 = vpack.c.b16 %v619, %v618
      %v629 = vpack.c.b16 %v621, %v620
      %638 = vmatprep.subr.bf16.mxu0 0
      %639 = vmatpush1.bf16.msra.mxu0 %v622
      %640 = vmatprep.subr.bf16.mxu0 0
      %641 = vmatpush1.bf16.msra.mxu0 %v623
      %642 = vmatprep.subr.bf16.mxu0 0
      %643 = vmatpush1.bf16.msra.mxu0 %v624
      %644 = vmatprep.subr.bf16.mxu0 0
      %645 = vmatpush1.bf16.msra.mxu0 %v625
      %646 = vmatprep.subr.bf16.mxu0 0
      %647 = vmatpush1.bf16.msra.mxu0 %v626
      %648 = vmatprep.subr.bf16.mxu0 0
      %649 = vmatpush1.bf16.msra.mxu0 %v627
      %650 = vmatprep.subr.bf16.mxu0 0
      %651 = vmatpush1.bf16.msra.mxu0 %v628
      %652 = vmatprep.subr.bf16.mxu0 0
      %653 = vmatpush1.bf16.msra.mxu0 %v629
      %654 = vmatprep.subr.bf16.mxu0 0
      %655 = vmatpush1.bf16.msra.mxu0 0
      %656 = vmatprep.subr.bf16.mxu0 0
      %657 = vmatpush1.bf16.msra.mxu0 0
      %658 = vmatprep.subr.bf16.mxu0 0
      %659 = vmatpush1.bf16.msra.mxu0 0
      %660 = vmatprep.subr.bf16.mxu0 0
      %661 = vmatpush1.bf16.msra.mxu0 0
      %662 = vmatprep.subr.bf16.mxu0 0
      %663 = vmatpush1.bf16.msra.mxu0 0
      %664 = vmatprep.subr.bf16.mxu0 0
      %665 = vmatpush1.bf16.msra.mxu0 0
      %666 = vmatprep.subr.bf16.mxu0 0
      %667 = vmatpush1.bf16.msra.mxu0 0
      %668 = vmatprep.subr.bf16.mxu0 0
      %669 = vmatpush1.bf16.msra.mxu0 0
      %670 = vmatprep.mubr.bf16.mxu0 0
      %671 = vmatmul.mubr.bf16.gmra.mrb[0].mxu0 %v518
      %v672 = vpop.f32.mrb[0].mxu0
      %v673 = vadd.f32 %v436, %v672
      %v674 = vpop.f32.mrb[0].mxu0
      %v675 = vpop.f32.mrb[0].mxu0
      %v676 = vadd.f32 %v439, %v675
      %v677 = vpop.f32.mrb[0].mxu0
      %678 = vmatprep.mubr.bf16.mxu0 0
      %679 = vmatmul.mubr.bf16.gmra.mrb[0].mxu0 %v527
      %v680 = vpop.f32.mrb[0].mxu0
      %v681 = vadd.f32 %v444, %v680
      %v682 = vpop.f32.mrb[0].mxu0
      %v683 = vpop.f32.mrb[0].mxu0
      %v684 = vadd.f32 %v447, %v683
      %v685 = vpop.f32.mrb[0].mxu0
      %686 = vmatprep.mubr.bf16.mxu0 0
      %687 = vmatmul.mubr.bf16.gmra.mrb[0].mxu0 %v536
      %v688 = vpop.f32.mrb[0].mxu0
      %v689 = vadd.f32 %v452, %v688
      %v690 = vpop.f32.mrb[0].mxu0
      %v691 = vpop.f32.mrb[0].mxu0
      %v692 = vadd.f32 %v455, %v691
      %v693 = vpop.f32.mrb[0].mxu0
      %694 = vmatprep.mubr.bf16.mxu0 0
      %695 = vmatmul.mubr.bf16.gmra.mrb[0].mxu0 %v545
      %v696 = vpop.f32.mrb[0].mxu0
      %v697 = vadd.f32 %v460, %v696
      %v698 = vpop.f32.mrb[0].mxu0
      %v699 = vpop.f32.mrb[0].mxu0
      %v700 = vadd.f32 %v463, %v699
      %v701 = vpop.f32.mrb[0].mxu0
      %702 = vmatprep.mubr.bf16.mxu0 0
      %703 = vmatmul.mubr.bf16.gmra.mrb[0].mxu0 %v554
      %v704 = vpop.f32.mrb[0].mxu0
      %v705 = vadd.f32 %v468, %v704
      %v706 = vpop.f32.mrb[0].mxu0
      %v707 = vpop.f32.mrb[0].mxu0
      %v708 = vadd.f32 %v471, %v707
      %v709 = vpop.f32.mrb[0].mxu0
      %710 = vmatprep.mubr.bf16.mxu0 0
      %711 = vmatmul.mubr.bf16.gmra.mrb[0].mxu0 %v563
      %v712 = vpop.f32.mrb[0].mxu0
      %v713 = vadd.f32 %v476, %v712
      %v714 = vpop.f32.mrb[0].mxu0
      %v715 = vpop.f32.mrb[0].mxu0
      %v716 = vadd.f32 %v479, %v715
      %v717 = vpop.f32.mrb[0].mxu0
      %718 = vmatprep.mubr.bf16.mxu0 0
      %719 = vmatmul.mubr.bf16.gmra.mrb[0].mxu0 %v572
      %v720 = vpop.f32.mrb[0].mxu0
      %v721 = vadd.f32 %v484, %v720
      %v722 = vpop.f32.mrb[0].mxu0
      %v723 = vpop.f32.mrb[0].mxu0
      %v724 = vadd.f32 %v487, %v723
      %v725 = vpop.f32.mrb[0].mxu0
      %726 = vmatprep.mubr.bf16.mxu0 0
      %727 = vmatmul.mubr.bf16.gmra.mrb[0].mxu0 %v581
      %v728 = vpop.f32.mrb[0].mxu0
      %v729 = vadd.f32 %v492, %v728
      %v730 = vpop.f32.mrb[0].mxu0
      %v731 = vpop.f32.mrb[0].mxu0
      %v732 = vadd.f32 %v495, %v731
      %v733 = vpop.f32.mrb[0].mxu0
      %734 = vdwg.mxu0
      %v735 = vld [vmem:[%s215 + $0x40] sm:$0xf]
      %s736 = scalar_lea.vmem %s1, 128
      %v737 = vld [vmem:[%s736] sm:$0xf]
      %v738 = vld [vmem:[%s736 + $0x4] sm:$0xf]
      %v739 = vld [vmem:[%s736 + $0x8] sm:$0xf]
      %v740 = vld [vmem:[%s736 + $0xc] sm:$0xf]
      %v741 = vld [vmem:[%s736 + $0x10] sm:$0xf]
      %v742 = vld [vmem:[%s736 + $0x14] sm:$0xf]
      %v743 = vld [vmem:[%s736 + $0x18] sm:$0xf]
      %v744 = vld [vmem:[%s736 + $0x1c] sm:$0xf]
      %v745 = vld [vmem:[%s736 + $0x20] sm:$0xf]
      %v746 = vld [vmem:[%s736 + $0x24] sm:$0xf]
      %v747 = vld [vmem:[%s736 + $0x28] sm:$0xf]
      %v748 = vld [vmem:[%s736 + $0x2c] sm:$0xf]
      %v749 = vld [vmem:[%s736 + $0x30] sm:$0xf]
      %v750 = vld [vmem:[%s736 + $0x34] sm:$0xf]
      %v751 = vld [vmem:[%s736 + $0x38] sm:$0xf]
      %v752 = vld [vmem:[%s736 + $0x3c] sm:$0xf]
      %v754 = vunpack.c.l.b16 %v735
      %v755 = vpack.c.b16 %v754, %v754
      %vm756 = vsmask.f32 4352
      %v758 = vshrl.u32 %v318, 16
      %v760 = vrot.slane %v758, 3
      %v761 = vshll.u32 %v318, 16
      %v763 = vrot.slane %v761, 4
      %v764 = vor.u32 %v760, %v763
      %v765 = vrot.slane %v511, 3
      %v766 = vrot.slane %v514, 4
      %v767 = vor.u32 %v765, %v766
      %v768 = vsel %vm756, %v764, %v767
      %v769 = vrot.slane %v520, 3
      %v770 = vrot.slane %v523, 4
      %v771 = vor.u32 %v769, %v770
      %v772 = vsel %vm756, %v767, %v771
      %v773 = vrot.slane %v529, 3
      %v774 = vrot.slane %v532, 4
      %v775 = vor.u32 %v773, %v774
      %v776 = vsel %vm756, %v771, %v775
      %v777 = vrot.slane %v538, 3
      %v778 = vrot.slane %v541, 4
      %v779 = vor.u32 %v777, %v778
      %v780 = vsel %vm756, %v775, %v779
      %v781 = vrot.slane %v547, 3
      %v782 = vrot.slane %v550, 4
      %v783 = vor.u32 %v781, %v782
      %v784 = vsel %vm756, %v779, %v783
      %v785 = vrot.slane %v556, 3
      %v786 = vrot.slane %v559, 4
      %v787 = vor.u32 %v785, %v786
      %v788 = vsel %vm756, %v783, %v787
      %v789 = vrot.slane %v565, 3
      %v790 = vrot.slane %v568, 4
      %v791 = vor.u32 %v789, %v790
      %v792 = vsel %vm756, %v787, %v791
      %v794 = vshrl.u32 %v755, 16
      %v796 = vrot.slane %v794, 3
      %v797 = vshll.u32 %v755, 16
      %v799 = vrot.slane %v797, 4
      %v800 = vor.u32 %v796, %v799
      %v801 = vsel %vm756, %v791, %v800
      %v826 = vunpack.c.l.b16 %v737
      %v827 = vunpack.c.l.b16 %v738
      %v828 = vunpack.c.l.b16 %v739
      %v829 = vunpack.c.l.b16 %v740
      %v830 = vunpack.c.l.b16 %v741
      %v831 = vunpack.c.l.b16 %v742
      %v832 = vunpack.c.l.b16 %v743
      %v833 = vunpack.c.l.b16 %v744
      %v834 = vunpack.c.l.b16 %v745
      %v835 = vunpack.c.l.b16 %v746
      %v836 = vunpack.c.l.b16 %v747
      %v837 = vunpack.c.l.b16 %v748
      %v838 = vunpack.c.l.b16 %v749
      %v839 = vunpack.c.l.b16 %v750
      %v840 = vunpack.c.l.b16 %v751
      %v841 = vunpack.c.l.b16 %v752
      %v842 = vpack.c.b16 %v827, %v826
      %v843 = vpack.c.b16 %v829, %v828
      %v844 = vpack.c.b16 %v831, %v830
      %v845 = vpack.c.b16 %v833, %v832
      %v846 = vpack.c.b16 %v835, %v834
      %v847 = vpack.c.b16 %v837, %v836
      %v848 = vpack.c.b16 %v839, %v838
      %v849 = vpack.c.b16 %v841, %v840
      %858 = vmatprep.subr.bf16.mxu0 0
      %859 = vmatpush1.bf16.msra.mxu0 %v842
      %860 = vmatprep.subr.bf16.mxu0 0
      %861 = vmatpush1.bf16.msra.mxu0 %v843
      %862 = vmatprep.subr.bf16.mxu0 0
      %863 = vmatpush1.bf16.msra.mxu0 %v844
      %864 = vmatprep.subr.bf16.mxu0 0
      %865 = vmatpush1.bf16.msra.mxu0 %v845
      %866 = vmatprep.subr.bf16.mxu0 0
      %867 = vmatpush1.bf16.msra.mxu0 %v846
      %868 = vmatprep.subr.bf16.mxu0 0
      %869 = vmatpush1.bf16.msra.mxu0 %v847
      %870 = vmatprep.subr.bf16.mxu0 0
      %871 = vmatpush1.bf16.msra.mxu0 %v848
      %872 = vmatprep.subr.bf16.mxu0 0
      %873 = vmatpush1.bf16.msra.mxu0 %v849
      %874 = vmatprep.subr.bf16.mxu0 0
      %875 = vmatpush1.bf16.msra.mxu0 0
      %876 = vmatprep.subr.bf16.mxu0 0
      %877 = vmatpush1.bf16.msra.mxu0 0
      %878 = vmatprep.subr.bf16.mxu0 0
      %879 = vmatpush1.bf16.msra.mxu0 0
      %880 = vmatprep.subr.bf16.mxu0 0
      %881 = vmatpush1.bf16.msra.mxu0 0
      %882 = vmatprep.subr.bf16.mxu0 0
      %883 = vmatpush1.bf16.msra.mxu0 0
      %884 = vmatprep.subr.bf16.mxu0 0
      %885 = vmatpush1.bf16.msra.mxu0 0
      %886 = vmatprep.subr.bf16.mxu0 0
      %887 = vmatpush1.bf16.msra.mxu0 0
      %888 = vmatprep.subr.bf16.mxu0 0
      %889 = vmatpush1.bf16.msra.mxu0 0
      %890 = vmatprep.mubr.bf16.mxu0 0
      %891 = vmatmul.mubr.bf16.gmra.mrb[0].mxu0 %v768
      %v892 = vpop.f32.mrb[0].mxu0
      %v893 = vadd.f32 0.0, %v892
      %v894 = vpop.f32.mrb[0].mxu0
      %v895 = vpop.f32.mrb[0].mxu0
      %v896 = vadd.f32 0.0, %v895
      %v897 = vpop.f32.mrb[0].mxu0
      %898 = vmatprep.mubr.bf16.mxu0 0
      %899 = vmatmul.mubr.bf16.gmra.mrb[0].mxu0 %v772
      %v900 = vpop.f32.mrb[0].mxu0
      %v901 = vadd.f32 0.0, %v900
      %v902 = vpop.f32.mrb[0].mxu0
      %v903 = vpop.f32.mrb[0].mxu0
      %v904 = vadd.f32 0.0, %v903
      %v905 = vpop.f32.mrb[0].mxu0
      %906 = vmatprep.mubr.bf16.mxu0 0
      %907 = vmatmul.mubr.bf16.gmra.mrb[0].mxu0 %v776
      %v908 = vpop.f32.mrb[0].mxu0
      %v909 = vadd.f32 0.0, %v908
      %v910 = vpop.f32.mrb[0].mxu0
      %v911 = vpop.f32.mrb[0].mxu0
      %v912 = vadd.f32 0.0, %v911
      %v913 = vpop.f32.mrb[0].mxu0
      %914 = vmatprep.mubr.bf16.mxu0 0
      %915 = vmatmul.mubr.bf16.gmra.mrb[0].mxu0 %v780
      %v916 = vpop.f32.mrb[0].mxu0
      %v917 = vadd.f32 0.0, %v916
      %v918 = vpop.f32.mrb[0].mxu0
      %v919 = vpop.f32.mrb[0].mxu0
      %v920 = vadd.f32 0.0, %v919
      %v921 = vpop.f32.mrb[0].mxu0
      %922 = vmatprep.mubr.bf16.mxu0 0
      %923 = vmatmul.mubr.bf16.gmra.mrb[0].mxu0 %v784
      %v924 = vpop.f32.mrb[0].mxu0
      %v925 = vadd.f32 0.0, %v924
      %v926 = vpop.f32.mrb[0].mxu0
      %v927 = vpop.f32.mrb[0].mxu0
      %v928 = vadd.f32 0.0, %v927
      %v929 = vpop.f32.mrb[0].mxu0
      %930 = vmatprep.mubr.bf16.mxu0 0
      %931 = vmatmul.mubr.bf16.gmra.mrb[0].mxu0 %v788
      %v932 = vpop.f32.mrb[0].mxu0
      %v933 = vadd.f32 0.0, %v932
      %v934 = vpop.f32.mrb[0].mxu0
      %v935 = vpop.f32.mrb[0].mxu0
      %v936 = vadd.f32 0.0, %v935
      %v937 = vpop.f32.mrb[0].mxu0
      %938 = vmatprep.mubr.bf16.mxu0 0
      %939 = vmatmul.mubr.bf16.gmra.mrb[0].mxu0 %v792
      %v940 = vpop.f32.mrb[0].mxu0
      %v941 = vadd.f32 0.0, %v940
      %v942 = vpop.f32.mrb[0].mxu0
      %v943 = vpop.f32.mrb[0].mxu0
      %v944 = vadd.f32 0.0, %v943
      %v945 = vpop.f32.mrb[0].mxu0
      %946 = vmatprep.mubr.bf16.mxu0 0
      %947 = vmatmul.mubr.bf16.gmra.mrb[0].mxu0 %v801
      %v948 = vpop.f32.mrb[0].mxu0
      %v949 = vadd.f32 0.0, %v948
      %v950 = vpop.f32.mrb[0].mxu0
      %v951 = vpop.f32.mrb[0].mxu0
      %v952 = vadd.f32 0.0, %v951
      %v953 = vpop.f32.mrb[0].mxu0
      %954 = vdwg.mxu0
      %v955 = vadd.f32 %v673, %v893
      %v956 = vadd.f32 %v676, %v896
      %v957 = vadd.f32 %v681, %v901
      %v958 = vadd.f32 %v684, %v904
      %v959 = vadd.f32 %v689, %v909
      %v960 = vadd.f32 %v692, %v912
      %v961 = vadd.f32 %v697, %v917
      %v962 = vadd.f32 %v700, %v920
      %v963 = vadd.f32 %v705, %v925
      %v964 = vadd.f32 %v708, %v928
      %v965 = vadd.f32 %v713, %v933
      %v966 = vadd.f32 %v716, %v936
      %v967 = vadd.f32 %v721, %v941
      %v968 = vadd.f32 %v724, %v944
      %v969 = vadd.f32 %v729, %v949
      %v970 = vadd.f32 %v732, %v952
      %v971 = vld [vmem:[%s215 + $0x4] sm:$0x8]
      %v972 = vld [vmem:[%s215 + $0x8] sm:$0xf]
      %v973 = vld [vmem:[%s215 + $0xc] sm:$0xf]
      %v974 = vld [vmem:[%s215 + $0x10] sm:$0xf]
      %v975 = vld [vmem:[%s215 + $0x14] sm:$0xf]
      %v976 = vld [vmem:[%s215 + $0x18] sm:$0xf]
      %v977 = vld [vmem:[%s215 + $0x1c] sm:$0xf]
      %v978 = vld [vmem:[%s215 + $0x20] sm:$0xf]
      %v979 = vld [vmem:[%s215 + $0x24] sm:$0xf]
      %v980 = vld [vmem:[%s215 + $0x28] sm:$0xf]
      %v981 = vld [vmem:[%s215 + $0x2c] sm:$0xf]
      %v982 = vld [vmem:[%s215 + $0x30] sm:$0xf]
      %v983 = vld [vmem:[%s215 + $0x34] sm:$0xf]
      %v984 = vld [vmem:[%s215 + $0x38] sm:$0xf]
      %v985 = vld [vmem:[%s215 + $0x3c] sm:$0xf]
      %v986 = vld [vmem:[%s215 + $0x40] sm:$0xf]
      %v987 = vld [vmem:[%s215 + $0x44] sm:$0xf]
      %s988 = scalar_lea.vmem %s1, 192
      %v989 = vld [vmem:[%s988] sm:$0xf]
      %v990 = vld [vmem:[%s988 + $0x4] sm:$0xf]
      %v991 = vld [vmem:[%s988 + $0x8] sm:$0xf]
      %v992 = vld [vmem:[%s988 + $0xc] sm:$0xf]
      %v993 = vld [vmem:[%s988 + $0x10] sm:$0xf]
      %v994 = vld [vmem:[%s988 + $0x14] sm:$0xf]
      %v995 = vld [vmem:[%s988 + $0x18] sm:$0xf]
      %v996 = vld [vmem:[%s988 + $0x1c] sm:$0xf]
      %v997 = vld [vmem:[%s988 + $0x20] sm:$0xf]
      %v998 = vld [vmem:[%s988 + $0x24] sm:$0xf]
      %v999 = vld [vmem:[%s988 + $0x28] sm:$0xf]
      %v1000 = vld [vmem:[%s988 + $0x2c] sm:$0xf]
      %v1001 = vld [vmem:[%s988 + $0x30] sm:$0xf]
      %v1002 = vld [vmem:[%s988 + $0x34] sm:$0xf]
      %v1003 = vld [vmem:[%s988 + $0x38] sm:$0xf]
      %v1004 = vld [vmem:[%s988 + $0x3c] sm:$0xf]
      %v1022 = vunpack.c.l.b16 %v971
      %v1023 = vunpack.c.l.b16 %v972
      %v1024 = vunpack.c.l.b16 %v973
      %v1025 = vunpack.c.l.b16 %v974
      %v1026 = vunpack.c.l.b16 %v975
      %v1027 = vunpack.c.l.b16 %v976
      %v1028 = vunpack.c.l.b16 %v977
      %v1029 = vunpack.c.l.b16 %v978
      %v1030 = vunpack.c.l.b16 %v979
      %v1031 = vunpack.c.l.b16 %v980
      %v1032 = vunpack.c.l.b16 %v981
      %v1033 = vunpack.c.l.b16 %v982
      %v1034 = vunpack.c.l.b16 %v983
      %v1035 = vunpack.c.l.b16 %v984
      %v1036 = vunpack.c.l.b16 %v985
      %v1037 = vunpack.c.l.b16 %v986
      %v1038 = vunpack.c.l.b16 %v987
      %v1039 = vpack.c.b16 %v1023, %v1022
      %v1040 = vpack.c.b16 %v1025, %v1024
      %v1041 = vpack.c.b16 %v1027, %v1026
      %v1042 = vpack.c.b16 %v1029, %v1028
      %v1043 = vpack.c.b16 %v1031, %v1030
      %v1044 = vpack.c.b16 %v1033, %v1032
      %v1045 = vpack.c.b16 %v1035, %v1034
      %v1046 = vpack.c.b16 %v1037, %v1036
      %v1047 = vpack.c.b16 %v1038, %v1038
      %v1049 = vshrl.u32 %v1039, 16
      %v1051 = vrot.slane %v1049, 3
      %v1052 = vshll.u32 %v1039, 16
      %v1054 = vrot.slane %v1052, 4
      %v1055 = vor.u32 %v1051, %v1054
      %v1057 = vshrl.u32 %v1040, 16
      %v1059 = vrot.slane %v1057, 3
      %v1060 = vshll.u32 %v1040, 16
      %v1062 = vrot.slane %v1060, 4
      %v1063 = vor.u32 %v1059, %v1062
      %v1064 = vsel %vm756, %v1055, %v1063
      %v1066 = vshrl.u32 %v1041, 16
      %v1068 = vrot.slane %v1066, 3
      %v1069 = vshll.u32 %v1041, 16
      %v1071 = vrot.slane %v1069, 4
      %v1072 = vor.u32 %v1068, %v1071
      %v1073 = vsel %vm756, %v1063, %v1072
      %v1075 = vshrl.u32 %v1042, 16
      %v1077 = vrot.slane %v1075, 3
      %v1078 = vshll.u32 %v1042, 16
      %v1080 = vrot.slane %v1078, 4
      %v1081 = vor.u32 %v1077, %v1080
      %v1082 = vsel %vm756, %v1072, %v1081
      %v1084 = vshrl.u32 %v1043, 16
      %v1086 = vrot.slane %v1084, 3
      %v1087 = vshll.u32 %v1043, 16
      %v1089 = vrot.slane %v1087, 4
      %v1090 = vor.u32 %v1086, %v1089
      %v1091 = vsel %vm756, %v1081, %v1090
      %v1093 = vshrl.u32 %v1044, 16
      %v1095 = vrot.slane %v1093, 3
      %v1096 = vshll.u32 %v1044, 16
      %v1098 = vrot.slane %v1096, 4
      %v1099 = vor.u32 %v1095, %v1098
      %v1100 = vsel %vm756, %v1090, %v1099
      %v1102 = vshrl.u32 %v1045, 16
      %v1104 = vrot.slane %v1102, 3
      %v1105 = vshll.u32 %v1045, 16
      %v1107 = vrot.slane %v1105, 4
      %v1108 = vor.u32 %v1104, %v1107
      %v1109 = vsel %vm756, %v1099, %v1108
      %v1111 = vshrl.u32 %v1046, 16
      %v1113 = vrot.slane %v1111, 3
      %v1114 = vshll.u32 %v1046, 16
      %v1116 = vrot.slane %v1114, 4
      %v1117 = vor.u32 %v1113, %v1116
      %v1118 = vsel %vm756, %v1108, %v1117
      %v1120 = vshrl.u32 %v1047, 16
      %v1122 = vrot.slane %v1120, 3
      %v1123 = vshll.u32 %v1047, 16
      %v1125 = vrot.slane %v1123, 4
      %v1126 = vor.u32 %v1122, %v1125
      %v1127 = vsel %vm756, %v1117, %v1126
      %v1152 = vunpack.c.l.b16 %v989
      %v1153 = vunpack.c.l.b16 %v990
      %v1154 = vunpack.c.l.b16 %v991
      %v1155 = vunpack.c.l.b16 %v992
      %v1156 = vunpack.c.l.b16 %v993
      %v1157 = vunpack.c.l.b16 %v994
      %v1158 = vunpack.c.l.b16 %v995
      %v1159 = vunpack.c.l.b16 %v996
      %v1160 = vunpack.c.l.b16 %v997
      %v1161 = vunpack.c.l.b16 %v998
      %v1162 = vunpack.c.l.b16 %v999
      %v1163 = vunpack.c.l.b16 %v1000
      %v1164 = vunpack.c.l.b16 %v1001
      %v1165 = vunpack.c.l.b16 %v1002
      %v1166 = vunpack.c.l.b16 %v1003
      %v1167 = vunpack.c.l.b16 %v1004
      %v1168 = vpack.c.b16 %v1153, %v1152
      %v1169 = vpack.c.b16 %v1155, %v1154
      %v1170 = vpack.c.b16 %v1157, %v1156
      %v1171 = vpack.c.b16 %v1159, %v1158
      %v1172 = vpack.c.b16 %v1161, %v1160
      %v1173 = vpack.c.b16 %v1163, %v1162
      %v1174 = vpack.c.b16 %v1165, %v1164
      %v1175 = vpack.c.b16 %v1167, %v1166
      %1184 = vmatprep.subr.bf16.mxu0 0
      %1185 = vmatpush1.bf16.msra.mxu0 %v1168
      %1186 = vmatprep.subr.bf16.mxu0 0
      %1187 = vmatpush1.bf16.msra.mxu0 %v1169
      %1188 = vmatprep.subr.bf16.mxu0 0
      %1189 = vmatpush1.bf16.msra.mxu0 %v1170
      %1190 = vmatprep.subr.bf16.mxu0 0
      %1191 = vmatpush1.bf16.msra.mxu0 %v1171
      %1192 = vmatprep.subr.bf16.mxu0 0
      %1193 = vmatpush1.bf16.msra.mxu0 %v1172
      %1194 = vmatprep.subr.bf16.mxu0 0
      %1195 = vmatpush1.bf16.msra.mxu0 %v1173
      %1196 = vmatprep.subr.bf16.mxu0 0
      %1197 = vmatpush1.bf16.msra.mxu0 %v1174
      %1198 = vmatprep.subr.bf16.mxu0 0
      %1199 = vmatpush1.bf16.msra.mxu0 %v1175
      %1200 = vmatprep.subr.bf16.mxu0 0
      %1201 = vmatpush1.bf16.msra.mxu0 0
      %1202 = vmatprep.subr.bf16.mxu0 0
      %1203 = vmatpush1.bf16.msra.mxu0 0
      %1204 = vmatprep.subr.bf16.mxu0 0
      %1205 = vmatpush1.bf16.msra.mxu0 0
      %1206 = vmatprep.subr.bf16.mxu0 0
      %1207 = vmatpush1.bf16.msra.mxu0 0
      %1208 = vmatprep.subr.bf16.mxu0 0
      %1209 = vmatpush1.bf16.msra.mxu0 0
      %1210 = vmatprep.subr.bf16.mxu0 0
      %1211 = vmatpush1.bf16.msra.mxu0 0
      %1212 = vmatprep.subr.bf16.mxu0 0
      %1213 = vmatpush1.bf16.msra.mxu0 0
      %1214 = vmatprep.subr.bf16.mxu0 0
      %1215 = vmatpush1.bf16.msra.mxu0 0
      %1216 = vmatprep.mubr.bf16.mxu0 0
      %1217 = vmatmul.mubr.bf16.gmra.mrb[0].mxu0 %v1064
      %v1218 = vpop.f32.mrb[0].mxu0
      %v1219 = vadd.f32 0.0, %v1218
      %v1220 = vpop.f32.mrb[0].mxu0
      %v1221 = vpop.f32.mrb[0].mxu0
      %v1222 = vadd.f32 0.0, %v1221
      %v1223 = vpop.f32.mrb[0].mxu0
      %1224 = vmatprep.mubr.bf16.mxu0 0
      %1225 = vmatmul.mubr.bf16.gmra.mrb[0].mxu0 %v1073
      %v1226 = vpop.f32.mrb[0].mxu0
      %v1227 = vadd.f32 0.0, %v1226
      %v1228 = vpop.f32.mrb[0].mxu0
      %v1229 = vpop.f32.mrb[0].mxu0
      %v1230 = vadd.f32 0.0, %v1229
      %v1231 = vpop.f32.mrb[0].mxu0
      %1232 = vmatprep.mubr.bf16.mxu0 0
      %1233 = vmatmul.mubr.bf16.gmra.mrb[0].mxu0 %v1082
      %v1234 = vpop.f32.mrb[0].mxu0
      %v1235 = vadd.f32 0.0, %v1234
      %v1236 = vpop.f32.mrb[0].mxu0
      %v1237 = vpop.f32.mrb[0].mxu0
      %v1238 = vadd.f32 0.0, %v1237
      %v1239 = vpop.f32.mrb[0].mxu0
      %1240 = vmatprep.mubr.bf16.mxu0 0
      %1241 = vmatmul.mubr.bf16.gmra.mrb[0].mxu0 %v1091
      %v1242 = vpop.f32.mrb[0].mxu0
      %v1243 = vadd.f32 0.0, %v1242
      %v1244 = vpop.f32.mrb[0].mxu0
      %v1245 = vpop.f32.mrb[0].mxu0
      %v1246 = vadd.f32 0.0, %v1245
      %v1247 = vpop.f32.mrb[0].mxu0
      %1248 = vmatprep.mubr.bf16.mxu0 0
      %1249 = vmatmul.mubr.bf16.gmra.mrb[0].mxu0 %v1100
      %v1250 = vpop.f32.mrb[0].mxu0
      %v1251 = vadd.f32 0.0, %v1250
      %v1252 = vpop.f32.mrb[0].mxu0
      %v1253 = vpop.f32.mrb[0].mxu0
      %v1254 = vadd.f32 0.0, %v1253
      %v1255 = vpop.f32.mrb[0].mxu0
      %1256 = vmatprep.mubr.bf16.mxu0 0
      %1257 = vmatmul.mubr.bf16.gmra.mrb[0].mxu0 %v1109
      %v1258 = vpop.f32.mrb[0].mxu0
      %v1259 = vadd.f32 0.0, %v1258
      %v1260 = vpop.f32.mrb[0].mxu0
      %v1261 = vpop.f32.mrb[0].mxu0
      %v1262 = vadd.f32 0.0, %v1261
      %v1263 = vpop.f32.mrb[0].mxu0
      %1264 = vmatprep.mubr.bf16.mxu0 0
      %1265 = vmatmul.mubr.bf16.gmra.mrb[0].mxu0 %v1118
      %v1266 = vpop.f32.mrb[0].mxu0
      %v1267 = vadd.f32 0.0, %v1266
      %v1268 = vpop.f32.mrb[0].mxu0
      %v1269 = vpop.f32.mrb[0].mxu0
      %v1270 = vadd.f32 0.0, %v1269
      %v1271 = vpop.f32.mrb[0].mxu0
      %1272 = vmatprep.mubr.bf16.mxu0 0
      %1273 = vmatmul.mubr.bf16.gmra.mrb[0].mxu0 %v1127
      %v1274 = vpop.f32.mrb[0].mxu0
      %v1275 = vadd.f32 0.0, %v1274
      %v1276 = vpop.f32.mrb[0].mxu0
      %v1277 = vpop.f32.mrb[0].mxu0
      %v1278 = vadd.f32 0.0, %v1277
      %v1279 = vpop.f32.mrb[0].mxu0
      %1280 = vdwg.mxu0
      %v1281 = vadd.f32 %v955, %v1219
      %v1282 = vadd.f32 %v956, %v1222
      %v1283 = vadd.f32 %v957, %v1227
      %v1284 = vadd.f32 %v958, %v1230
      %v1285 = vadd.f32 %v959, %v1235
      %v1286 = vadd.f32 %v960, %v1238
      %v1287 = vadd.f32 %v961, %v1243
      %v1288 = vadd.f32 %v962, %v1246
      %v1289 = vadd.f32 %v963, %v1251
      %v1290 = vadd.f32 %v964, %v1254
      %v1291 = vadd.f32 %v965, %v1259
      %v1292 = vadd.f32 %v966, %v1262
      %v1293 = vadd.f32 %v967, %v1267
      %v1294 = vadd.f32 %v968, %v1270
      %v1295 = vadd.f32 %v969, %v1275
      %v1296 = vadd.f32 %v970, %v1278
      %s1297 = scalar_lea.vmem %s1, 256
      %v1298 = vld [vmem:[%s1297] sm:$0xf]
      %v1299 = vld [vmem:[%s1297 + $0x4] sm:$0xf]
      %v1300 = vld [vmem:[%s1297 + $0x8] sm:$0xf]
      %v1301 = vld [vmem:[%s1297 + $0xc] sm:$0xf]
      %v1302 = vld [vmem:[%s1297 + $0x10] sm:$0xf]
      %v1303 = vld [vmem:[%s1297 + $0x14] sm:$0xf]
      %v1304 = vld [vmem:[%s1297 + $0x18] sm:$0xf]
      %v1305 = vld [vmem:[%s1297 + $0x1c] sm:$0xf]
      %v1306 = vld [vmem:[%s1297 + $0x20] sm:$0xf]
      %v1307 = vld [vmem:[%s1297 + $0x24] sm:$0xf]
      %v1308 = vld [vmem:[%s1297 + $0x28] sm:$0xf]
      %v1309 = vld [vmem:[%s1297 + $0x2c] sm:$0xf]
      %v1310 = vld [vmem:[%s1297 + $0x30] sm:$0xf]
      %v1311 = vld [vmem:[%s1297 + $0x34] sm:$0xf]
      %v1312 = vld [vmem:[%s1297 + $0x38] sm:$0xf]
      %v1313 = vld [vmem:[%s1297 + $0x3c] sm:$0xf]
      %v1314 = vpack.c.b16 %v1024, %v1023
      %v1315 = vpack.c.b16 %v1026, %v1025
      %v1316 = vpack.c.b16 %v1028, %v1027
      %v1317 = vpack.c.b16 %v1030, %v1029
      %v1318 = vpack.c.b16 %v1032, %v1031
      %v1319 = vpack.c.b16 %v1034, %v1033
      %v1320 = vpack.c.b16 %v1036, %v1035
      %v1321 = vpack.c.b16 %v1038, %v1037
      %v1346 = vunpack.c.l.b16 %v1298
      %v1347 = vunpack.c.l.b16 %v1299
      %v1348 = vunpack.c.l.b16 %v1300
      %v1349 = vunpack.c.l.b16 %v1301
      %v1350 = vunpack.c.l.b16 %v1302
      %v1351 = vunpack.c.l.b16 %v1303
      %v1352 = vunpack.c.l.b16 %v1304
      %v1353 = vunpack.c.l.b16 %v1305
      %v1354 = vunpack.c.l.b16 %v1306
      %v1355 = vunpack.c.l.b16 %v1307
      %v1356 = vunpack.c.l.b16 %v1308
      %v1357 = vunpack.c.l.b16 %v1309
      %v1358 = vunpack.c.l.b16 %v1310
      %v1359 = vunpack.c.l.b16 %v1311
      %v1360 = vunpack.c.l.b16 %v1312
      %v1361 = vunpack.c.l.b16 %v1313
      %v1362 = vpack.c.b16 %v1347, %v1346
      %v1363 = vpack.c.b16 %v1349, %v1348
      %v1364 = vpack.c.b16 %v1351, %v1350
      %v1365 = vpack.c.b16 %v1353, %v1352
      %v1366 = vpack.c.b16 %v1355, %v1354
      %v1367 = vpack.c.b16 %v1357, %v1356
      %v1368 = vpack.c.b16 %v1359, %v1358
      %v1369 = vpack.c.b16 %v1361, %v1360
      %1378 = vmatprep.subr.bf16.mxu0 0
      %1379 = vmatpush1.bf16.msra.mxu0 %v1362
      %1380 = vmatprep.subr.bf16.mxu0 0
      %1381 = vmatpush1.bf16.msra.mxu0 %v1363
      %1382 = vmatprep.subr.bf16.mxu0 0
      %1383 = vmatpush1.bf16.msra.mxu0 %v1364
      %1384 = vmatprep.subr.bf16.mxu0 0
      %1385 = vmatpush1.bf16.msra.mxu0 %v1365
      %1386 = vmatprep.subr.bf16.mxu0 0
      %1387 = vmatpush1.bf16.msra.mxu0 %v1366
      %1388 = vmatprep.subr.bf16.mxu0 0
      %1389 = vmatpush1.bf16.msra.mxu0 %v1367
      %1390 = vmatprep.subr.bf16.mxu0 0
      %1391 = vmatpush1.bf16.msra.mxu0 %v1368
      %1392 = vmatprep.subr.bf16.mxu0 0
      %1393 = vmatpush1.bf16.msra.mxu0 %v1369
      %1394 = vmatprep.subr.bf16.mxu0 0
      %1395 = vmatpush1.bf16.msra.mxu0 0
      %1396 = vmatprep.subr.bf16.mxu0 0
      %1397 = vmatpush1.bf16.msra.mxu0 0
      %1398 = vmatprep.subr.bf16.mxu0 0
      %1399 = vmatpush1.bf16.msra.mxu0 0
      %1400 = vmatprep.subr.bf16.mxu0 0
      %1401 = vmatpush1.bf16.msra.mxu0 0
      %1402 = vmatprep.subr.bf16.mxu0 0
      %1403 = vmatpush1.bf16.msra.mxu0 0
      %1404 = vmatprep.subr.bf16.mxu0 0
      %1405 = vmatpush1.bf16.msra.mxu0 0
      %1406 = vmatprep.subr.bf16.mxu0 0
      %1407 = vmatpush1.bf16.msra.mxu0 0
      %1408 = vmatprep.subr.bf16.mxu0 0
      %1409 = vmatpush1.bf16.msra.mxu0 0
      %1410 = vmatprep.mubr.bf16.mxu0 0
      %1411 = vmatmul.mubr.bf16.gmra.mrb[0].mxu0 %v1314
      %v1412 = vpop.f32.mrb[0].mxu0
      %v1413 = vadd.f32 0.0, %v1412
      %v1414 = vpop.f32.mrb[0].mxu0
      %v1415 = vpop.f32.mrb[0].mxu0
      %v1416 = vadd.f32 0.0, %v1415
      %v1417 = vpop.f32.mrb[0].mxu0
      %1418 = vmatprep.mubr.bf16.mxu0 0
      %1419 = vmatmul.mubr.bf16.gmra.mrb[0].mxu0 %v1315
      %v1420 = vpop.f32.mrb[0].mxu0
      %v1421 = vadd.f32 0.0, %v1420
      %v1422 = vpop.f32.mrb[0].mxu0
      %v1423 = vpop.f32.mrb[0].mxu0
      %v1424 = vadd.f32 0.0, %v1423
      %v1425 = vpop.f32.mrb[0].mxu0
      %1426 = vmatprep.mubr.bf16.mxu0 0
      %1427 = vmatmul.mubr.bf16.gmra.mrb[0].mxu0 %v1316
      %v1428 = vpop.f32.mrb[0].mxu0
      %v1429 = vadd.f32 0.0, %v1428
      %v1430 = vpop.f32.mrb[0].mxu0
      %v1431 = vpop.f32.mrb[0].mxu0
      %v1432 = vadd.f32 0.0, %v1431
      %v1433 = vpop.f32.mrb[0].mxu0
      %1434 = vmatprep.mubr.bf16.mxu0 0
      %1435 = vmatmul.mubr.bf16.gmra.mrb[0].mxu0 %v1317
      %v1436 = vpop.f32.mrb[0].mxu0
      %v1437 = vadd.f32 0.0, %v1436
      %v1438 = vpop.f32.mrb[0].mxu0
      %v1439 = vpop.f32.mrb[0].mxu0
      %v1440 = vadd.f32 0.0, %v1439
      %v1441 = vpop.f32.mrb[0].mxu0
      %1442 = vmatprep.mubr.bf16.mxu0 0
      %1443 = vmatmul.mubr.bf16.gmra.mrb[0].mxu0 %v1318
      %v1444 = vpop.f32.mrb[0].mxu0
      %v1445 = vadd.f32 0.0, %v1444
      %v1446 = vpop.f32.mrb[0].mxu0
      %v1447 = vpop.f32.mrb[0].mxu0
      %v1448 = vadd.f32 0.0, %v1447
      %v1449 = vpop.f32.mrb[0].mxu0
      %1450 = vmatprep.mubr.bf16.mxu0 0
      %1451 = vmatmul.mubr.bf16.gmra.mrb[0].mxu0 %v1319
      %v1452 = vpop.f32.mrb[0].mxu0
      %v1453 = vadd.f32 0.0, %v1452
      %v1454 = vpop.f32.mrb[0].mxu0
      %v1455 = vpop.f32.mrb[0].mxu0
      %v1456 = vadd.f32 0.0, %v1455
      %v1457 = vpop.f32.mrb[0].mxu0
      %1458 = vmatprep.mubr.bf16.mxu0 0
      %1459 = vmatmul.mubr.bf16.gmra.mrb[0].mxu0 %v1320
      %v1460 = vpop.f32.mrb[0].mxu0
      %v1461 = vadd.f32 0.0, %v1460
      %v1462 = vpop.f32.mrb[0].mxu0
      %v1463 = vpop.f32.mrb[0].mxu0
      %v1464 = vadd.f32 0.0, %v1463
      %v1465 = vpop.f32.mrb[0].mxu0
      %1466 = vmatprep.mubr.bf16.mxu0 0
      %1467 = vmatmul.mubr.bf16.gmra.mrb[0].mxu0 %v1321
      %v1468 = vpop.f32.mrb[0].mxu0
      %v1469 = vadd.f32 0.0, %v1468
      %v1470 = vpop.f32.mrb[0].mxu0
      %v1471 = vpop.f32.mrb[0].mxu0
      %v1472 = vadd.f32 0.0, %v1471
      %v1473 = vpop.f32.mrb[0].mxu0
      %1474 = vdwg.mxu0
      %v1475 = vadd.f32 %v1281, %v1413
      %v1476 = vadd.f32 %v1282, %v1416
      %v1477 = vadd.f32 %v1283, %v1421
      %v1478 = vadd.f32 %v1284, %v1424
      %v1479 = vadd.f32 %v1285, %v1429
      %v1480 = vadd.f32 %v1286, %v1432
      %v1481 = vadd.f32 %v1287, %v1437
      %v1482 = vadd.f32 %v1288, %v1440
      %v1483 = vadd.f32 %v1289, %v1445
      %v1484 = vadd.f32 %v1290, %v1448
      %v1485 = vadd.f32 %v1291, %v1453
      %v1486 = vadd.f32 %v1292, %v1456
      %v1487 = vadd.f32 %v1293, %v1461
      %v1488 = vadd.f32 %v1294, %v1464
      %v1489 = vadd.f32 %v1295, %v1469
      %v1490 = vadd.f32 %v1296, %v1472
      %v1491 = vld [vmem:[%s215 + $0x8] sm:$0xf]
      %v1492 = vld [vmem:[%s215 + $0xc] sm:$0xf]
      %v1493 = vld [vmem:[%s215 + $0x10] sm:$0xf]
      %v1494 = vld [vmem:[%s215 + $0x14] sm:$0xf]
      %v1495 = vld [vmem:[%s215 + $0x18] sm:$0xf]
      %v1496 = vld [vmem:[%s215 + $0x1c] sm:$0xf]
      %v1497 = vld [vmem:[%s215 + $0x20] sm:$0xf]
      %v1498 = vld [vmem:[%s215 + $0x24] sm:$0xf]
      %v1499 = vld [vmem:[%s215 + $0x28] sm:$0xf]
      %v1500 = vld [vmem:[%s215 + $0x2c] sm:$0xf]
      %v1501 = vld [vmem:[%s215 + $0x30] sm:$0xf]
      %v1502 = vld [vmem:[%s215 + $0x34] sm:$0xf]
      %v1503 = vld [vmem:[%s215 + $0x38] sm:$0xf]
      %v1504 = vld [vmem:[%s215 + $0x3c] sm:$0xf]
      %v1505 = vld [vmem:[%s215 + $0x40] sm:$0xf]
      %v1506 = vld [vmem:[%s215 + $0x44] sm:$0xf]
      %v1507 = vld [vmem:[%s215 + $0x48] sm:$0x1]
      %s1508 = scalar_lea.vmem %s1, 320
      %v1509 = vld [vmem:[%s1508] sm:$0xf]
      %v1510 = vld [vmem:[%s1508 + $0x4] sm:$0xf]
      %v1511 = vld [vmem:[%s1508 + $0x8] sm:$0xf]
      %v1512 = vld [vmem:[%s1508 + $0xc] sm:$0xf]
      %v1513 = vld [vmem:[%s1508 + $0x10] sm:$0xf]
      %v1514 = vld [vmem:[%s1508 + $0x14] sm:$0xf]
      %v1515 = vld [vmem:[%s1508 + $0x18] sm:$0xf]
      %v1516 = vld [vmem:[%s1508 + $0x1c] sm:$0xf]
      %v1517 = vld [vmem:[%s1508 + $0x20] sm:$0xf]
      %v1518 = vld [vmem:[%s1508 + $0x24] sm:$0xf]
      %v1519 = vld [vmem:[%s1508 + $0x28] sm:$0xf]
      %v1520 = vld [vmem:[%s1508 + $0x2c] sm:$0xf]
      %v1521 = vld [vmem:[%s1508 + $0x30] sm:$0xf]
      %v1522 = vld [vmem:[%s1508 + $0x34] sm:$0xf]
      %v1523 = vld [vmem:[%s1508 + $0x38] sm:$0xf]
      %v1524 = vld [vmem:[%s1508 + $0x3c] sm:$0xf]
      %v1542 = vunpack.c.l.b16 %v1491
      %v1543 = vunpack.c.l.b16 %v1492
      %v1544 = vunpack.c.l.b16 %v1493
      %v1545 = vunpack.c.l.b16 %v1494
      %v1546 = vunpack.c.l.b16 %v1495
      %v1547 = vunpack.c.l.b16 %v1496
      %v1548 = vunpack.c.l.b16 %v1497
      %v1549 = vunpack.c.l.b16 %v1498
      %v1550 = vunpack.c.l.b16 %v1499
      %v1551 = vunpack.c.l.b16 %v1500
      %v1552 = vunpack.c.l.b16 %v1501
      %v1553 = vunpack.c.l.b16 %v1502
      %v1554 = vunpack.c.l.b16 %v1503
      %v1555 = vunpack.c.l.b16 %v1504
      %v1556 = vunpack.c.l.b16 %v1505
      %v1557 = vunpack.c.l.b16 %v1506
      %v1558 = vunpack.c.l.b16 %v1507
      %v1559 = vpack.c.b16 %v1543, %v1542
      %v1560 = vpack.c.b16 %v1545, %v1544
      %v1561 = vpack.c.b16 %v1547, %v1546
      %v1562 = vpack.c.b16 %v1549, %v1548
      %v1563 = vpack.c.b16 %v1551, %v1550
      %v1564 = vpack.c.b16 %v1553, %v1552
      %v1565 = vpack.c.b16 %v1555, %v1554
      %v1566 = vpack.c.b16 %v1557, %v1556
      %v1567 = vpack.c.b16 %v1558, %v1558
      %vm1568 = vsmask.f32 7424
      %v1570 = vshrl.u32 %v1559, 16
      %v1572 = vshll.u32 %v1559, 16
      %v1574 = vrot.slane %v1572, 1
      %v1575 = vor.u32 %v1570, %v1574
      %v1577 = vshll.u32 %v1560, 16
      %v1579 = vrot.slane %v1577, 1
      %v1580 = vsel %vm1568, %v1575, %v1579
      %v1581 = vshrl.u32 %v1560, 16
      %v1583 = vor.u32 %v1581, %v1579
      %v1585 = vshll.u32 %v1561, 16
      %v1587 = vrot.slane %v1585, 1
      %v1588 = vsel %vm1568, %v1583, %v1587
      %v1589 = vshrl.u32 %v1561, 16
      %v1591 = vor.u32 %v1589, %v1587
      %v1593 = vshll.u32 %v1562, 16
      %v1595 = vrot.slane %v1593, 1
      %v1596 = vsel %vm1568, %v1591, %v1595
      %v1597 = vshrl.u32 %v1562, 16
      %v1599 = vor.u32 %v1597, %v1595
      %v1601 = vshll.u32 %v1563, 16
      %v1603 = vrot.slane %v1601, 1
      %v1604 = vsel %vm1568, %v1599, %v1603
      %v1605 = vshrl.u32 %v1563, 16
      %v1607 = vor.u32 %v1605, %v1603
      %v1609 = vshll.u32 %v1564, 16
      %v1611 = vrot.slane %v1609, 1
      %v1612 = vsel %vm1568, %v1607, %v1611
      %v1613 = vshrl.u32 %v1564, 16
      %v1615 = vor.u32 %v1613, %v1611
      %v1617 = vshll.u32 %v1565, 16
      %v1619 = vrot.slane %v1617, 1
      %v1620 = vsel %vm1568, %v1615, %v1619
      %v1621 = vshrl.u32 %v1565, 16
      %v1623 = vor.u32 %v1621, %v1619
      %v1625 = vshll.u32 %v1566, 16
      %v1627 = vrot.slane %v1625, 1
      %v1628 = vsel %vm1568, %v1623, %v1627
      %v1629 = vshrl.u32 %v1566, 16
      %v1631 = vor.u32 %v1629, %v1627
      %v1633 = vshll.u32 %v1567, 16
      %v1635 = vrot.slane %v1633, 1
      %v1636 = vsel %vm1568, %v1631, %v1635
      %v1661 = vunpack.c.l.b16 %v1509
      %v1662 = vunpack.c.l.b16 %v1510
      %v1663 = vunpack.c.l.b16 %v1511
      %v1664 = vunpack.c.l.b16 %v1512
      %v1665 = vunpack.c.l.b16 %v1513
      %v1666 = vunpack.c.l.b16 %v1514
      %v1667 = vunpack.c.l.b16 %v1515
      %v1668 = vunpack.c.l.b16 %v1516
      %v1669 = vunpack.c.l.b16 %v1517
      %v1670 = vunpack.c.l.b16 %v1518
      %v1671 = vunpack.c.l.b16 %v1519
      %v1672 = vunpack.c.l.b16 %v1520
      %v1673 = vunpack.c.l.b16 %v1521
      %v1674 = vunpack.c.l.b16 %v1522
      %v1675 = vunpack.c.l.b16 %v1523
      %v1676 = vunpack.c.l.b16 %v1524
      %v1677 = vpack.c.b16 %v1662, %v1661
      %v1678 = vpack.c.b16 %v1664, %v1663
      %v1679 = vpack.c.b16 %v1666, %v1665
      %v1680 = vpack.c.b16 %v1668, %v1667
      %v1681 = vpack.c.b16 %v1670, %v1669
      %v1682 = vpack.c.b16 %v1672, %v1671
      %v1683 = vpack.c.b16 %v1674, %v1673
      %v1684 = vpack.c.b16 %v1676, %v1675
      %1693 = vmatprep.subr.bf16.mxu0 0
      %1694 = vmatpush1.bf16.msra.mxu0 %v1677
      %1695 = vmatprep.subr.bf16.mxu0 0
      %1696 = vmatpush1.bf16.msra.mxu0 %v1678
      %1697 = vmatprep.subr.bf16.mxu0 0
      %1698 = vmatpush1.bf16.msra.mxu0 %v1679
      %1699 = vmatprep.subr.bf16.mxu0 0
      %1700 = vmatpush1.bf16.msra.mxu0 %v1680
      %1701 = vmatprep.subr.bf16.mxu0 0
      %1702 = vmatpush1.bf16.msra.mxu0 %v1681
      %1703 = vmatprep.subr.bf16.mxu0 0
      %1704 = vmatpush1.bf16.msra.mxu0 %v1682
      %1705 = vmatprep.subr.bf16.mxu0 0
      %1706 = vmatpush1.bf16.msra.mxu0 %v1683
      %1707 = vmatprep.subr.bf16.mxu0 0
      %1708 = vmatpush1.bf16.msra.mxu0 %v1684
      %1709 = vmatprep.subr.bf16.mxu0 0
      %1710 = vmatpush1.bf16.msra.mxu0 0
      %1711 = vmatprep.subr.bf16.mxu0 0
      %1712 = vmatpush1.bf16.msra.mxu0 0
      %1713 = vmatprep.subr.bf16.mxu0 0
      %1714 = vmatpush1.bf16.msra.mxu0 0
      %1715 = vmatprep.subr.bf16.mxu0 0
      %1716 = vmatpush1.bf16.msra.mxu0 0
      %1717 = vmatprep.subr.bf16.mxu0 0
      %1718 = vmatpush1.bf16.msra.mxu0 0
      %1719 = vmatprep.subr.bf16.mxu0 0
      %1720 = vmatpush1.bf16.msra.mxu0 0
      %1721 = vmatprep.subr.bf16.mxu0 0
      %1722 = vmatpush1.bf16.msra.mxu0 0
      %1723 = vmatprep.subr.bf16.mxu0 0
      %1724 = vmatpush1.bf16.msra.mxu0 0
      %1725 = vmatprep.mubr.bf16.mxu0 0
      %1726 = vmatmul.mubr.bf16.gmra.mrb[0].mxu0 %v1580
      %v1727 = vpop.f32.mrb[0].mxu0
      %v1728 = vadd.f32 0.0, %v1727
      %v1729 = vpop.f32.mrb[0].mxu0
      %v1730 = vpop.f32.mrb[0].mxu0
      %v1731 = vadd.f32 0.0, %v1730
      %v1732 = vpop.f32.mrb[0].mxu0
      %1733 = vmatprep.mubr.bf16.mxu0 0
      %1734 = vmatmul.mubr.bf16.gmra.mrb[0].mxu0 %v1588
      %v1735 = vpop.f32.mrb[0].mxu0
      %v1736 = vadd.f32 0.0, %v1735
      %v1737 = vpop.f32.mrb[0].mxu0
      %v1738 = vpop.f32.mrb[0].mxu0
      %v1739 = vadd.f32 0.0, %v1738
      %v1740 = vpop.f32.mrb[0].mxu0
      %1741 = vmatprep.mubr.bf16.mxu0 0
      %1742 = vmatmul.mubr.bf16.gmra.mrb[0].mxu0 %v1596
      %v1743 = vpop.f32.mrb[0].mxu0
      %v1744 = vadd.f32 0.0, %v1743
      %v1745 = vpop.f32.mrb[0].mxu0
      %v1746 = vpop.f32.mrb[0].mxu0
      %v1747 = vadd.f32 0.0, %v1746
      %v1748 = vpop.f32.mrb[0].mxu0
      %1749 = vmatprep.mubr.bf16.mxu0 0
      %1750 = vmatmul.mubr.bf16.gmra.mrb[0].mxu0 %v1604
      %v1751 = vpop.f32.mrb[0].mxu0
      %v1752 = vadd.f32 0.0, %v1751
      %v1753 = vpop.f32.mrb[0].mxu0
      %v1754 = vpop.f32.mrb[0].mxu0
      %v1755 = vadd.f32 0.0, %v1754
      %v1756 = vpop.f32.mrb[0].mxu0
      %1757 = vmatprep.mubr.bf16.mxu0 0
      %1758 = vmatmul.mubr.bf16.gmra.mrb[0].mxu0 %v1612
      %v1759 = vpop.f32.mrb[0].mxu0
      %v1760 = vadd.f32 0.0, %v1759
      %v1761 = vpop.f32.mrb[0].mxu0
      %v1762 = vpop.f32.mrb[0].mxu0
      %v1763 = vadd.f32 0.0, %v1762
      %v1764 = vpop.f32.mrb[0].mxu0
      %1765 = vmatprep.mubr.bf16.mxu0 0
      %1766 = vmatmul.mubr.bf16.gmra.mrb[0].mxu0 %v1620
      %v1767 = vpop.f32.mrb[0].mxu0
      %v1768 = vadd.f32 0.0, %v1767
      %v1769 = vpop.f32.mrb[0].mxu0
      %v1770 = vpop.f32.mrb[0].mxu0
      %v1771 = vadd.f32 0.0, %v1770
      %v1772 = vpop.f32.mrb[0].mxu0
      %1773 = vmatprep.mubr.bf16.mxu0 0
      %1774 = vmatmul.mubr.bf16.gmra.mrb[0].mxu0 %v1628
      %v1775 = vpop.f32.mrb[0].mxu0
      %v1776 = vadd.f32 0.0, %v1775
      %v1777 = vpop.f32.mrb[0].mxu0
      %v1778 = vpop.f32.mrb[0].mxu0
      %v1779 = vadd.f32 0.0, %v1778
      %v1780 = vpop.f32.mrb[0].mxu0
      %1781 = vmatprep.mubr.bf16.mxu0 0
      %1782 = vmatmul.mubr.bf16.gmra.mrb[0].mxu0 %v1636
      %v1783 = vpop.f32.mrb[0].mxu0
      %v1784 = vadd.f32 0.0, %v1783
      %v1785 = vpop.f32.mrb[0].mxu0
      %v1786 = vpop.f32.mrb[0].mxu0
      %v1787 = vadd.f32 0.0, %v1786
      %v1788 = vpop.f32.mrb[0].mxu0
      %1789 = vdwg.mxu0
      %v1790 = vadd.f32 %v1475, %v1728
      %v1791 = vadd.f32 %v1476, %v1731
      %v1792 = vadd.f32 %v1477, %v1736
      %v1793 = vadd.f32 %v1478, %v1739
      %v1794 = vadd.f32 %v1479, %v1744
      %v1795 = vadd.f32 %v1480, %v1747
      %v1796 = vadd.f32 %v1481, %v1752
      %v1797 = vadd.f32 %v1482, %v1755
      %v1798 = vadd.f32 %v1483, %v1760
      %v1799 = vadd.f32 %v1484, %v1763
      %v1800 = vadd.f32 %v1485, %v1768
      %v1801 = vadd.f32 %v1486, %v1771
      %v1802 = vadd.f32 %v1487, %v1776
      %v1803 = vadd.f32 %v1488, %v1779
      %v1804 = vadd.f32 %v1489, %v1784
      %v1805 = vadd.f32 %v1490, %v1787
      %v1806 = vld [vmem:[%s215 + $0xc] sm:$0xf]
      %v1807 = vld [vmem:[%s215 + $0x10] sm:$0xf]
      %v1808 = vld [vmem:[%s215 + $0x14] sm:$0xf]
      %v1809 = vld [vmem:[%s215 + $0x18] sm:$0xf]
      %v1810 = vld [vmem:[%s215 + $0x1c] sm:$0xf]
      %v1811 = vld [vmem:[%s215 + $0x20] sm:$0xf]
      %v1812 = vld [vmem:[%s215 + $0x24] sm:$0xf]
      %v1813 = vld [vmem:[%s215 + $0x28] sm:$0xf]
      %v1814 = vld [vmem:[%s215 + $0x2c] sm:$0xf]
      %v1815 = vld [vmem:[%s215 + $0x30] sm:$0xf]
      %v1816 = vld [vmem:[%s215 + $0x34] sm:$0xf]
      %v1817 = vld [vmem:[%s215 + $0x38] sm:$0xf]
      %v1818 = vld [vmem:[%s215 + $0x3c] sm:$0xf]
      %v1819 = vld [vmem:[%s215 + $0x40] sm:$0xf]
      %v1820 = vld [vmem:[%s215 + $0x44] sm:$0xf]
      %v1821 = vld [vmem:[%s215 + $0x48] sm:$0xf]
      %v1822 = vld [vmem:[%s215 + $0x4c] sm:$0x1]
      %s1823 = scalar_lea.vmem %s1, 384
      %v1824 = vld [vmem:[%s1823] sm:$0xf]
      %v1825 = vld [vmem:[%s1823 + $0x4] sm:$0xf]
      %v1826 = vld [vmem:[%s1823 + $0x8] sm:$0xf]
      %v1827 = vld [vmem:[%s1823 + $0xc] sm:$0xf]
      %v1828 = vld [vmem:[%s1823 + $0x10] sm:$0xf]
      %v1829 = vld [vmem:[%s1823 + $0x14] sm:$0xf]
      %v1830 = vld [vmem:[%s1823 + $0x18] sm:$0xf]
      %v1831 = vld [vmem:[%s1823 + $0x1c] sm:$0xf]
      %v1832 = vld [vmem:[%s1823 + $0x20] sm:$0xf]
      %v1833 = vld [vmem:[%s1823 + $0x24] sm:$0xf]
      %v1834 = vld [vmem:[%s1823 + $0x28] sm:$0xf]
      %v1835 = vld [vmem:[%s1823 + $0x2c] sm:$0xf]
      %v1836 = vld [vmem:[%s1823 + $0x30] sm:$0xf]
      %v1837 = vld [vmem:[%s1823 + $0x34] sm:$0xf]
      %v1838 = vld [vmem:[%s1823 + $0x38] sm:$0xf]
      %v1839 = vld [vmem:[%s1823 + $0x3c] sm:$0xf]
      %v1857 = vunpack.c.l.b16 %v1806
      %v1858 = vunpack.c.l.b16 %v1807
      %v1859 = vunpack.c.l.b16 %v1808
      %v1860 = vunpack.c.l.b16 %v1809
      %v1861 = vunpack.c.l.b16 %v1810
      %v1862 = vunpack.c.l.b16 %v1811
      %v1863 = vunpack.c.l.b16 %v1812
      %v1864 = vunpack.c.l.b16 %v1813
      %v1865 = vunpack.c.l.b16 %v1814
      %v1866 = vunpack.c.l.b16 %v1815
      %v1867 = vunpack.c.l.b16 %v1816
      %v1868 = vunpack.c.l.b16 %v1817
      %v1869 = vunpack.c.l.b16 %v1818
      %v1870 = vunpack.c.l.b16 %v1819
      %v1871 = vunpack.c.l.b16 %v1820
      %v1872 = vunpack.c.l.b16 %v1821
      %v1873 = vunpack.c.l.b16 %v1822
      %v1874 = vpack.c.b16 %v1858, %v1857
      %v1875 = vpack.c.b16 %v1860, %v1859
      %v1876 = vpack.c.b16 %v1862, %v1861
      %v1877 = vpack.c.b16 %v1864, %v1863
      %v1878 = vpack.c.b16 %v1866, %v1865
      %v1879 = vpack.c.b16 %v1868, %v1867
      %v1880 = vpack.c.b16 %v1870, %v1869
      %v1881 = vpack.c.b16 %v1872, %v1871
      %v1882 = vpack.c.b16 %v1873, %v1873
      %v1884 = vshrl.u32 %v1874, 16
      %v1886 = vshll.u32 %v1874, 16
      %v1888 = vrot.slane %v1886, 1
      %v1889 = vor.u32 %v1884, %v1888
      %v1891 = vshll.u32 %v1875, 16
      %v1893 = vrot.slane %v1891, 1
      %v1894 = vsel %vm1568, %v1889, %v1893
      %v1895 = vshrl.u32 %v1875, 16
      %v1897 = vor.u32 %v1895, %v1893
      %v1899 = vshll.u32 %v1876, 16
      %v1901 = vrot.slane %v1899, 1
      %v1902 = vsel %vm1568, %v1897, %v1901
      %v1903 = vshrl.u32 %v1876, 16
      %v1905 = vor.u32 %v1903, %v1901
      %v1907 = vshll.u32 %v1877, 16
      %v1909 = vrot.slane %v1907, 1
      %v1910 = vsel %vm1568, %v1905, %v1909
      %v1911 = vshrl.u32 %v1877, 16
      %v1913 = vor.u32 %v1911, %v1909
      %v1915 = vshll.u32 %v1878, 16
      %v1917 = vrot.slane %v1915, 1
      %v1918 = vsel %vm1568, %v1913, %v1917
      %v1919 = vshrl.u32 %v1878, 16
      %v1921 = vor.u32 %v1919, %v1917
      %v1923 = vshll.u32 %v1879, 16
      %v1925 = vrot.slane %v1923, 1
      %v1926 = vsel %vm1568, %v1921, %v1925
      %v1927 = vshrl.u32 %v1879, 16
      %v1929 = vor.u32 %v1927, %v1925
      %v1931 = vshll.u32 %v1880, 16
      %v1933 = vrot.slane %v1931, 1
      %v1934 = vsel %vm1568, %v1929, %v1933
      %v1935 = vshrl.u32 %v1880, 16
      %v1937 = vor.u32 %v1935, %v1933
      %v1939 = vshll.u32 %v1881, 16
      %v1941 = vrot.slane %v1939, 1
      %v1942 = vsel %vm1568, %v1937, %v1941
      %v1943 = vshrl.u32 %v1881, 16
      %v1945 = vor.u32 %v1943, %v1941
      %v1947 = vshll.u32 %v1882, 16
      %v1949 = vrot.slane %v1947, 1
      %v1950 = vsel %vm1568, %v1945, %v1949
      %v1975 = vunpack.c.l.b16 %v1824
      %v1976 = vunpack.c.l.b16 %v1825
      %v1977 = vunpack.c.l.b16 %v1826
      %v1978 = vunpack.c.l.b16 %v1827
      %v1979 = vunpack.c.l.b16 %v1828
      %v1980 = vunpack.c.l.b16 %v1829
      %v1981 = vunpack.c.l.b16 %v1830
      %v1982 = vunpack.c.l.b16 %v1831
      %v1983 = vunpack.c.l.b16 %v1832
      %v1984 = vunpack.c.l.b16 %v1833
      %v1985 = vunpack.c.l.b16 %v1834
      %v1986 = vunpack.c.l.b16 %v1835
      %v1987 = vunpack.c.l.b16 %v1836
      %v1988 = vunpack.c.l.b16 %v1837
      %v1989 = vunpack.c.l.b16 %v1838
      %v1990 = vunpack.c.l.b16 %v1839
      %v1991 = vpack.c.b16 %v1976, %v1975
      %v1992 = vpack.c.b16 %v1978, %v1977
      %v1993 = vpack.c.b16 %v1980, %v1979
      %v1994 = vpack.c.b16 %v1982, %v1981
      %v1995 = vpack.c.b16 %v1984, %v1983
      %v1996 = vpack.c.b16 %v1986, %v1985
      %v1997 = vpack.c.b16 %v1988, %v1987
      %v1998 = vpack.c.b16 %v1990, %v1989
      %2007 = vmatprep.subr.bf16.mxu0 0
      %2008 = vmatpush1.bf16.msra.mxu0 %v1991
      %2009 = vmatprep.subr.bf16.mxu0 0
      %2010 = vmatpush1.bf16.msra.mxu0 %v1992
      %2011 = vmatprep.subr.bf16.mxu0 0
      %2012 = vmatpush1.bf16.msra.mxu0 %v1993
      %2013 = vmatprep.subr.bf16.mxu0 0
      %2014 = vmatpush1.bf16.msra.mxu0 %v1994
      %2015 = vmatprep.subr.bf16.mxu0 0
      %2016 = vmatpush1.bf16.msra.mxu0 %v1995
      %2017 = vmatprep.subr.bf16.mxu0 0
      %2018 = vmatpush1.bf16.msra.mxu0 %v1996
      %2019 = vmatprep.subr.bf16.mxu0 0
      %2020 = vmatpush1.bf16.msra.mxu0 %v1997
      %2021 = vmatprep.subr.bf16.mxu0 0
      %2022 = vmatpush1.bf16.msra.mxu0 %v1998
      %2023 = vmatprep.subr.bf16.mxu0 0
      %2024 = vmatpush1.bf16.msra.mxu0 0
      %2025 = vmatprep.subr.bf16.mxu0 0
      %2026 = vmatpush1.bf16.msra.mxu0 0
      %2027 = vmatprep.subr.bf16.mxu0 0
      %2028 = vmatpush1.bf16.msra.mxu0 0
      %2029 = vmatprep.subr.bf16.mxu0 0
      %2030 = vmatpush1.bf16.msra.mxu0 0
      %2031 = vmatprep.subr.bf16.mxu0 0
      %2032 = vmatpush1.bf16.msra.mxu0 0
      %2033 = vmatprep.subr.bf16.mxu0 0
      %2034 = vmatpush1.bf16.msra.mxu0 0
      %2035 = vmatprep.subr.bf16.mxu0 0
      %2036 = vmatpush1.bf16.msra.mxu0 0
      %2037 = vmatprep.subr.bf16.mxu0 0
      %2038 = vmatpush1.bf16.msra.mxu0 0
      %2039 = vmatprep.mubr.bf16.mxu0 0
      %2040 = vmatmul.mubr.bf16.gmra.mrb[0].mxu0 %v1894
      %v2041 = vpop.f32.mrb[0].mxu0
      %v2042 = vadd.f32 0.0, %v2041
      %v2043 = vpop.f32.mrb[0].mxu0
      %v2044 = vpop.f32.mrb[0].mxu0
      %v2045 = vadd.f32 0.0, %v2044
      %v2046 = vpop.f32.mrb[0].mxu0
      %2047 = vmatprep.mubr.bf16.mxu0 0
      %2048 = vmatmul.mubr.bf16.gmra.mrb[0].mxu0 %v1902
      %v2049 = vpop.f32.mrb[0].mxu0
      %v2050 = vadd.f32 0.0, %v2049
      %v2051 = vpop.f32.mrb[0].mxu0
      %v2052 = vpop.f32.mrb[0].mxu0
      %v2053 = vadd.f32 0.0, %v2052
      %v2054 = vpop.f32.mrb[0].mxu0
      %2055 = vmatprep.mubr.bf16.mxu0 0
      %2056 = vmatmul.mubr.bf16.gmra.mrb[0].mxu0 %v1910
      %v2057 = vpop.f32.mrb[0].mxu0
      %v2058 = vadd.f32 0.0, %v2057
      %v2059 = vpop.f32.mrb[0].mxu0
      %v2060 = vpop.f32.mrb[0].mxu0
      %v2061 = vadd.f32 0.0, %v2060
      %v2062 = vpop.f32.mrb[0].mxu0
      %2063 = vmatprep.mubr.bf16.mxu0 0
      %2064 = vmatmul.mubr.bf16.gmra.mrb[0].mxu0 %v1918
      %v2065 = vpop.f32.mrb[0].mxu0
      %v2066 = vadd.f32 0.0, %v2065
      %v2067 = vpop.f32.mrb[0].mxu0
      %v2068 = vpop.f32.mrb[0].mxu0
      %v2069 = vadd.f32 0.0, %v2068
      %v2070 = vpop.f32.mrb[0].mxu0
      %2071 = vmatprep.mubr.bf16.mxu0 0
      %2072 = vmatmul.mubr.bf16.gmra.mrb[0].mxu0 %v1926
      %v2073 = vpop.f32.mrb[0].mxu0
      %v2074 = vadd.f32 0.0, %v2073
      %v2075 = vpop.f32.mrb[0].mxu0
      %v2076 = vpop.f32.mrb[0].mxu0
      %v2077 = vadd.f32 0.0, %v2076
      %v2078 = vpop.f32.mrb[0].mxu0
      %2079 = vmatprep.mubr.bf16.mxu0 0
      %2080 = vmatmul.mubr.bf16.gmra.mrb[0].mxu0 %v1934
      %v2081 = vpop.f32.mrb[0].mxu0
      %v2082 = vadd.f32 0.0, %v2081
      %v2083 = vpop.f32.mrb[0].mxu0
      %v2084 = vpop.f32.mrb[0].mxu0
      %v2085 = vadd.f32 0.0, %v2084
      %v2086 = vpop.f32.mrb[0].mxu0
      %2087 = vmatprep.mubr.bf16.mxu0 0
      %2088 = vmatmul.mubr.bf16.gmra.mrb[0].mxu0 %v1942
      %v2089 = vpop.f32.mrb[0].mxu0
      %v2090 = vadd.f32 0.0, %v2089
      %v2091 = vpop.f32.mrb[0].mxu0
      %v2092 = vpop.f32.mrb[0].mxu0
      %v2093 = vadd.f32 0.0, %v2092
      %v2094 = vpop.f32.mrb[0].mxu0
      %2095 = vmatprep.mubr.bf16.mxu0 0
      %2096 = vmatmul.mubr.bf16.gmra.mrb[0].mxu0 %v1950
      %v2097 = vpop.f32.mrb[0].mxu0
      %v2098 = vadd.f32 0.0, %v2097
      %v2099 = vpop.f32.mrb[0].mxu0
      %v2100 = vpop.f32.mrb[0].mxu0
      %v2101 = vadd.f32 0.0, %v2100
      %v2102 = vpop.f32.mrb[0].mxu0
      %2103 = vdwg.mxu0
      %v2104 = vadd.f32 %v1790, %v2042
      %v2105 = vadd.f32 %v1791, %v2045
      %v2106 = vadd.f32 %v1792, %v2050
      %v2107 = vadd.f32 %v1793, %v2053
      %v2108 = vadd.f32 %v1794, %v2058
      %v2109 = vadd.f32 %v1795, %v2061
      %v2110 = vadd.f32 %v1796, %v2066
      %v2111 = vadd.f32 %v1797, %v2069
      %v2112 = vadd.f32 %v1798, %v2074
      %v2113 = vadd.f32 %v1799, %v2077
      %v2114 = vadd.f32 %v1800, %v2082
      %v2115 = vadd.f32 %v1801, %v2085
      %v2116 = vadd.f32 %v1802, %v2090
      %v2117 = vadd.f32 %v1803, %v2093
      %v2118 = vadd.f32 %v1804, %v2098
      %v2119 = vadd.f32 %v1805, %v2101
      %v2120 = vld [vmem:[%s215 + $0xc] sm:$0xe]
      %s2121 = scalar_lea.vmem %s1, 448
      %v2122 = vld [vmem:[%s2121] sm:$0xf]
      %v2123 = vld [vmem:[%s2121 + $0x4] sm:$0xf]
      %v2124 = vld [vmem:[%s2121 + $0x8] sm:$0xf]
      %v2125 = vld [vmem:[%s2121 + $0xc] sm:$0xf]
      %v2126 = vld [vmem:[%s2121 + $0x10] sm:$0xf]
      %v2127 = vld [vmem:[%s2121 + $0x14] sm:$0xf]
      %v2128 = vld [vmem:[%s2121 + $0x18] sm:$0xf]
      %v2129 = vld [vmem:[%s2121 + $0x1c] sm:$0xf]
      %v2130 = vld [vmem:[%s2121 + $0x20] sm:$0xf]
      %v2131 = vld [vmem:[%s2121 + $0x24] sm:$0xf]
      %v2132 = vld [vmem:[%s2121 + $0x28] sm:$0xf]
      %v2133 = vld [vmem:[%s2121 + $0x2c] sm:$0xf]
      %v2134 = vld [vmem:[%s2121 + $0x30] sm:$0xf]
      %v2135 = vld [vmem:[%s2121 + $0x34] sm:$0xf]
      %v2136 = vld [vmem:[%s2121 + $0x38] sm:$0xf]
      %v2137 = vld [vmem:[%s2121 + $0x3c] sm:$0xf]
      %v2139 = vunpack.c.l.b16 %v2120
      %v2140 = vpack.c.b16 %v1858, %v2139
      %vm2141 = vcmask 1046528
      %v2142 = vrot.slane %v2140, 1
      %v2143 = vrot.slane %v1875, 1
      %v2144 = vsel %vm2141, %v2142, %v2143
      %v2145 = vrot.slane %v1876, 1
      %v2146 = vsel %vm2141, %v2143, %v2145
      %v2147 = vrot.slane %v1877, 1
      %v2148 = vsel %vm2141, %v2145, %v2147
      %v2149 = vrot.slane %v1878, 1
      %v2150 = vsel %vm2141, %v2147, %v2149
      %v2151 = vrot.slane %v1879, 1
      %v2152 = vsel %vm2141, %v2149, %v2151
      %v2153 = vrot.slane %v1880, 1
      %v2154 = vsel %vm2141, %v2151, %v2153
      %v2155 = vrot.slane %v1881, 1
      %v2156 = vsel %vm2141, %v2153, %v2155
      %v2157 = vrot.slane %v1882, 1
      %v2158 = vsel %vm2141, %v2155, %v2157
      %v2183 = vunpack.c.l.b16 %v2122
      %v2184 = vunpack.c.l.b16 %v2123
      %v2185 = vunpack.c.l.b16 %v2124
      %v2186 = vunpack.c.l.b16 %v2125
      %v2187 = vunpack.c.l.b16 %v2126
      %v2188 = vunpack.c.l.b16 %v2127
      %v2189 = vunpack.c.l.b16 %v2128
      %v2190 = vunpack.c.l.b16 %v2129
      %v2191 = vunpack.c.l.b16 %v2130
      %v2192 = vunpack.c.l.b16 %v2131
      %v2193 = vunpack.c.l.b16 %v2132
      %v2194 = vunpack.c.l.b16 %v2133
      %v2195 = vunpack.c.l.b16 %v2134
      %v2196 = vunpack.c.l.b16 %v2135
      %v2197 = vunpack.c.l.b16 %v2136
      %v2198 = vunpack.c.l.b16 %v2137
      %v2199 = vpack.c.b16 %v2184, %v2183
      %v2200 = vpack.c.b16 %v2186, %v2185
      %v2201 = vpack.c.b16 %v2188, %v2187
      %v2202 = vpack.c.b16 %v2190, %v2189
      %v2203 = vpack.c.b16 %v2192, %v2191
      %v2204 = vpack.c.b16 %v2194, %v2193
      %v2205 = vpack.c.b16 %v2196, %v2195
      %v2206 = vpack.c.b16 %v2198, %v2197
      %2215 = vmatprep.subr.bf16.mxu0 0
      %2216 = vmatpush1.bf16.msra.mxu0 %v2199
      %2217 = vmatprep.subr.bf16.mxu0 0
      %2218 = vmatpush1.bf16.msra.mxu0 %v2200
      %2219 = vmatprep.subr.bf16.mxu0 0
      %2220 = vmatpush1.bf16.msra.mxu0 %v2201
      %2221 = vmatprep.subr.bf16.mxu0 0
      %2222 = vmatpush1.bf16.msra.mxu0 %v2202
      %2223 = vmatprep.subr.bf16.mxu0 0
      %2224 = vmatpush1.bf16.msra.mxu0 %v2203
      %2225 = vmatprep.subr.bf16.mxu0 0
      %2226 = vmatpush1.bf16.msra.mxu0 %v2204
      %2227 = vmatprep.subr.bf16.mxu0 0
      %2228 = vmatpush1.bf16.msra.mxu0 %v2205
      %2229 = vmatprep.subr.bf16.mxu0 0
      %2230 = vmatpush1.bf16.msra.mxu0 %v2206
      %2231 = vmatprep.subr.bf16.mxu0 0
      %2232 = vmatpush1.bf16.msra.mxu0 0
      %2233 = vmatprep.subr.bf16.mxu0 0
      %2234 = vmatpush1.bf16.msra.mxu0 0
      %2235 = vmatprep.subr.bf16.mxu0 0
      %2236 = vmatpush1.bf16.msra.mxu0 0
      %2237 = vmatprep.subr.bf16.mxu0 0
      %2238 = vmatpush1.bf16.msra.mxu0 0
      %2239 = vmatprep.subr.bf16.mxu0 0
      %2240 = vmatpush1.bf16.msra.mxu0 0
      %2241 = vmatprep.subr.bf16.mxu0 0
      %2242 = vmatpush1.bf16.msra.mxu0 0
      %2243 = vmatprep.subr.bf16.mxu0 0
      %2244 = vmatpush1.bf16.msra.mxu0 0
      %2245 = vmatprep.subr.bf16.mxu0 0
      %2246 = vmatpush1.bf16.msra.mxu0 0
      %2247 = vmatprep.mubr.bf16.mxu0 0
      %2248 = vmatmul.mubr.bf16.gmra.mrb[0].mxu0 %v2144
      %v2249 = vpop.f32.mrb[0].mxu0
      %v2250 = vadd.f32 0.0, %v2249
      %v2251 = vpop.f32.mrb[0].mxu0
      %v2252 = vpop.f32.mrb[0].mxu0
      %v2253 = vadd.f32 0.0, %v2252
      %v2254 = vpop.f32.mrb[0].mxu0
      %2255 = vmatprep.mubr.bf16.mxu0 0
      %2256 = vmatmul.mubr.bf16.gmra.mrb[0].mxu0 %v2146
      %v2257 = vpop.f32.mrb[0].mxu0
      %v2258 = vadd.f32 0.0, %v2257
      %v2259 = vpop.f32.mrb[0].mxu0
      %v2260 = vpop.f32.mrb[0].mxu0
      %v2261 = vadd.f32 0.0, %v2260
      %v2262 = vpop.f32.mrb[0].mxu0
      %2263 = vmatprep.mubr.bf16.mxu0 0
      %2264 = vmatmul.mubr.bf16.gmra.mrb[0].mxu0 %v2148
      %v2265 = vpop.f32.mrb[0].mxu0
      %v2266 = vadd.f32 0.0, %v2265
      %v2267 = vpop.f32.mrb[0].mxu0
      %v2268 = vpop.f32.mrb[0].mxu0
      %v2269 = vadd.f32 0.0, %v2268
      %v2270 = vpop.f32.mrb[0].mxu0
      %2271 = vmatprep.mubr.bf16.mxu0 0
      %2272 = vmatmul.mubr.bf16.gmra.mrb[0].mxu0 %v2150
      %v2273 = vpop.f32.mrb[0].mxu0
      %v2274 = vadd.f32 0.0, %v2273
      %v2275 = vpop.f32.mrb[0].mxu0
      %v2276 = vpop.f32.mrb[0].mxu0
      %v2277 = vadd.f32 0.0, %v2276
      %v2278 = vpop.f32.mrb[0].mxu0
      %2279 = vmatprep.mubr.bf16.mxu0 0
      %2280 = vmatmul.mubr.bf16.gmra.mrb[0].mxu0 %v2152
      %v2281 = vpop.f32.mrb[0].mxu0
      %v2282 = vadd.f32 0.0, %v2281
      %v2283 = vpop.f32.mrb[0].mxu0
      %v2284 = vpop.f32.mrb[0].mxu0
      %v2285 = vadd.f32 0.0, %v2284
      %v2286 = vpop.f32.mrb[0].mxu0
      %2287 = vmatprep.mubr.bf16.mxu0 0
      %2288 = vmatmul.mubr.bf16.gmra.mrb[0].mxu0 %v2154
      %v2289 = vpop.f32.mrb[0].mxu0
      %v2290 = vadd.f32 0.0, %v2289
      %v2291 = vpop.f32.mrb[0].mxu0
      %v2292 = vpop.f32.mrb[0].mxu0
      %v2293 = vadd.f32 0.0, %v2292
      %v2294 = vpop.f32.mrb[0].mxu0
      %2295 = vmatprep.mubr.bf16.mxu0 0
      %2296 = vmatmul.mubr.bf16.gmra.mrb[0].mxu0 %v2156
      %v2297 = vpop.f32.mrb[0].mxu0
      %v2298 = vadd.f32 0.0, %v2297
      %v2299 = vpop.f32.mrb[0].mxu0
      %v2300 = vpop.f32.mrb[0].mxu0
      %v2301 = vadd.f32 0.0, %v2300
      %v2302 = vpop.f32.mrb[0].mxu0
      %2303 = vmatprep.mubr.bf16.mxu0 0
      %2304 = vmatmul.mubr.bf16.gmra.mrb[0].mxu0 %v2158
      %v2305 = vpop.f32.mrb[0].mxu0
      %v2306 = vadd.f32 0.0, %v2305
      %v2307 = vpop.f32.mrb[0].mxu0
      %v2308 = vpop.f32.mrb[0].mxu0
      %v2309 = vadd.f32 0.0, %v2308
      %v2310 = vpop.f32.mrb[0].mxu0
      %2311 = vdwg.mxu0
      %v2312 = vadd.f32 %v2104, %v2250
      %v2313 = vadd.f32 %v2105, %v2253
      %v2314 = vadd.f32 %v2106, %v2258
      %v2315 = vadd.f32 %v2107, %v2261
      %v2316 = vadd.f32 %v2108, %v2266
      %v2317 = vadd.f32 %v2109, %v2269
      %v2318 = vadd.f32 %v2110, %v2274
      %v2319 = vadd.f32 %v2111, %v2277
      %v2320 = vadd.f32 %v2112, %v2282
      %v2321 = vadd.f32 %v2113, %v2285
      %v2322 = vadd.f32 %v2114, %v2290
      %v2323 = vadd.f32 %v2115, %v2293
      %v2324 = vadd.f32 %v2116, %v2298
      %v2325 = vadd.f32 %v2117, %v2301
      %v2326 = vadd.f32 %v2118, %v2306
      %v2327 = vadd.f32 %v2119, %v2309
      %v2328 = vld [vmem:[%s215 + $0x4c] sm:$0x3]
      %s2329 = scalar_lea.vmem %s1, 512
      %v2330 = vld [vmem:[%s2329] sm:$0xf]
      %v2331 = vld [vmem:[%s2329 + $0x4] sm:$0xf]
      %v2332 = vld [vmem:[%s2329 + $0x8] sm:$0xf]
      %v2333 = vld [vmem:[%s2329 + $0xc] sm:$0xf]
      %v2334 = vld [vmem:[%s2329 + $0x10] sm:$0xf]
      %v2335 = vld [vmem:[%s2329 + $0x14] sm:$0xf]
      %v2336 = vld [vmem:[%s2329 + $0x18] sm:$0xf]
      %v2337 = vld [vmem:[%s2329 + $0x1c] sm:$0xf]
      %v2338 = vld [vmem:[%s2329 + $0x20] sm:$0xf]
      %v2339 = vld [vmem:[%s2329 + $0x24] sm:$0xf]
      %v2340 = vld [vmem:[%s2329 + $0x28] sm:$0xf]
      %v2341 = vld [vmem:[%s2329 + $0x2c] sm:$0xf]
      %v2342 = vld [vmem:[%s2329 + $0x30] sm:$0xf]
      %v2343 = vld [vmem:[%s2329 + $0x34] sm:$0xf]
      %v2344 = vld [vmem:[%s2329 + $0x38] sm:$0xf]
      %v2345 = vld [vmem:[%s2329 + $0x3c] sm:$0xf]
      %v2347 = vunpack.c.l.b16 %v2328
      %v2348 = vpack.c.b16 %v2347, %v2347
      %vm2349 = vsmask.f32 6400
      %v2351 = vshrl.u32 %v2140, 16
      %v2353 = vrot.slane %v2351, 1
      %v2354 = vshll.u32 %v2140, 16
      %v2356 = vrot.slane %v2354, 2
      %v2357 = vor.u32 %v2353, %v2356
      %v2358 = vrot.slane %v1895, 1
      %v2359 = vrot.slane %v1891, 2
      %v2360 = vor.u32 %v2358, %v2359
      %v2361 = vsel %vm2349, %v2357, %v2360
      %v2362 = vrot.slane %v1903, 1
      %v2363 = vrot.slane %v1899, 2
      %v2364 = vor.u32 %v2362, %v2363
      %v2365 = vsel %vm2349, %v2360, %v2364
      %v2366 = vrot.slane %v1911, 1
      %v2367 = vrot.slane %v1907, 2
      %v2368 = vor.u32 %v2366, %v2367
      %v2369 = vsel %vm2349, %v2364, %v2368
      %v2370 = vrot.slane %v1919, 1
      %v2371 = vrot.slane %v1915, 2
      %v2372 = vor.u32 %v2370, %v2371
      %v2373 = vsel %vm2349, %v2368, %v2372
      %v2374 = vrot.slane %v1927, 1
      %v2375 = vrot.slane %v1923, 2
      %v2376 = vor.u32 %v2374, %v2375
      %v2377 = vsel %vm2349, %v2372, %v2376
      %v2378 = vrot.slane %v1935, 1
      %v2379 = vrot.slane %v1931, 2
      %v2380 = vor.u32 %v2378, %v2379
      %v2381 = vsel %vm2349, %v2376, %v2380
      %v2382 = vrot.slane %v1943, 1
      %v2383 = vrot.slane %v1939, 2
      %v2384 = vor.u32 %v2382, %v2383
      %v2385 = vsel %vm2349, %v2380, %v2384
      %v2387 = vshrl.u32 %v2348, 16
      %v2389 = vrot.slane %v2387, 1
      %v2390 = vshll.u32 %v2348, 16
      %v2392 = vrot.slane %v2390, 2
      %v2393 = vor.u32 %v2389, %v2392
      %v2394 = vsel %vm2349, %v2384, %v2393
      %v2419 = vunpack.c.l.b16 %v2330
      %v2420 = vunpack.c.l.b16 %v2331
      %v2421 = vunpack.c.l.b16 %v2332
      %v2422 = vunpack.c.l.b16 %v2333
      %v2423 = vunpack.c.l.b16 %v2334
      %v2424 = vunpack.c.l.b16 %v2335
      %v2425 = vunpack.c.l.b16 %v2336
      %v2426 = vunpack.c.l.b16 %v2337
      %v2427 = vunpack.c.l.b16 %v2338
      %v2428 = vunpack.c.l.b16 %v2339
      %v2429 = vunpack.c.l.b16 %v2340
      %v2430 = vunpack.c.l.b16 %v2341
      %v2431 = vunpack.c.l.b16 %v2342
      %v2432 = vunpack.c.l.b16 %v2343
      %v2433 = vunpack.c.l.b16 %v2344
      %v2434 = vunpack.c.l.b16 %v2345
      %v2435 = vpack.c.b16 %v2420, %v2419
      %v2436 = vpack.c.b16 %v2422, %v2421
      %v2437 = vpack.c.b16 %v2424, %v2423
      %v2438 = vpack.c.b16 %v2426, %v2425
      %v2439 = vpack.c.b16 %v2428, %v2427
      %v2440 = vpack.c.b16 %v2430, %v2429
      %v2441 = vpack.c.b16 %v2432, %v2431
      %v2442 = vpack.c.b16 %v2434, %v2433
      %2451 = vmatprep.subr.bf16.mxu0 0
      %2452 = vmatpush1.bf16.msra.mxu0 %v2435
      %2453 = vmatprep.subr.bf16.mxu0 0
      %2454 = vmatpush1.bf16.msra.mxu0 %v2436
      %2455 = vmatprep.subr.bf16.mxu0 0
      %2456 = vmatpush1.bf16.msra.mxu0 %v2437
      %2457 = vmatprep.subr.bf16.mxu0 0
      %2458 = vmatpush1.bf16.msra.mxu0 %v2438
      %2459 = vmatprep.subr.bf16.mxu0 0
      %2460 = vmatpush1.bf16.msra.mxu0 %v2439
      %2461 = vmatprep.subr.bf16.mxu0 0
      %2462 = vmatpush1.bf16.msra.mxu0 %v2440
      %2463 = vmatprep.subr.bf16.mxu0 0
      %2464 = vmatpush1.bf16.msra.mxu0 %v2441
      %2465 = vmatprep.subr.bf16.mxu0 0
      %2466 = vmatpush1.bf16.msra.mxu0 %v2442
      %2467 = vmatprep.subr.bf16.mxu0 0
      %2468 = vmatpush1.bf16.msra.mxu0 0
      %2469 = vmatprep.subr.bf16.mxu0 0
      %2470 = vmatpush1.bf16.msra.mxu0 0
      %2471 = vmatprep.subr.bf16.mxu0 0
      %2472 = vmatpush1.bf16.msra.mxu0 0
      %2473 = vmatprep.subr.bf16.mxu0 0
      %2474 = vmatpush1.bf16.msra.mxu0 0
      %2475 = vmatprep.subr.bf16.mxu0 0
      %2476 = vmatpush1.bf16.msra.mxu0 0
      %2477 = vmatprep.subr.bf16.mxu0 0
      %2478 = vmatpush1.bf16.msra.mxu0 0
      %2479 = vmatprep.subr.bf16.mxu0 0
      %2480 = vmatpush1.bf16.msra.mxu0 0
      %2481 = vmatprep.subr.bf16.mxu0 0
      %2482 = vmatpush1.bf16.msra.mxu0 0
      %2483 = vmatprep.mubr.bf16.mxu0 0
      %2484 = vmatmul.mubr.bf16.gmra.mrb[0].mxu0 %v2361
      %v2485 = vpop.f32.mrb[0].mxu0
      %v2486 = vadd.f32 0.0, %v2485
      %v2487 = vpop.f32.mrb[0].mxu0
      %v2488 = vpop.f32.mrb[0].mxu0
      %v2489 = vadd.f32 0.0, %v2488
      %v2490 = vpop.f32.mrb[0].mxu0
      %2491 = vmatprep.mubr.bf16.mxu0 0
      %2492 = vmatmul.mubr.bf16.gmra.mrb[0].mxu0 %v2365
      %v2493 = vpop.f32.mrb[0].mxu0
      %v2494 = vadd.f32 0.0, %v2493
      %v2495 = vpop.f32.mrb[0].mxu0
      %v2496 = vpop.f32.mrb[0].mxu0
      %v2497 = vadd.f32 0.0, %v2496
      %v2498 = vpop.f32.mrb[0].mxu0
      %2499 = vmatprep.mubr.bf16.mxu0 0
      %2500 = vmatmul.mubr.bf16.gmra.mrb[0].mxu0 %v2369
      %v2501 = vpop.f32.mrb[0].mxu0
      %v2502 = vadd.f32 0.0, %v2501
      %v2503 = vpop.f32.mrb[0].mxu0
      %v2504 = vpop.f32.mrb[0].mxu0
      %v2505 = vadd.f32 0.0, %v2504
      %v2506 = vpop.f32.mrb[0].mxu0
      %2507 = vmatprep.mubr.bf16.mxu0 0
      %2508 = vmatmul.mubr.bf16.gmra.mrb[0].mxu0 %v2373
      %v2509 = vpop.f32.mrb[0].mxu0
      %v2510 = vadd.f32 0.0, %v2509
      %v2511 = vpop.f32.mrb[0].mxu0
      %v2512 = vpop.f32.mrb[0].mxu0
      %v2513 = vadd.f32 0.0, %v2512
      %v2514 = vpop.f32.mrb[0].mxu0
      %2515 = vmatprep.mubr.bf16.mxu0 0
      %2516 = vmatmul.mubr.bf16.gmra.mrb[0].mxu0 %v2377
      %v2517 = vpop.f32.mrb[0].mxu0
      %v2518 = vadd.f32 0.0, %v2517
      %v2519 = vpop.f32.mrb[0].mxu0
      %v2520 = vpop.f32.mrb[0].mxu0
      %v2521 = vadd.f32 0.0, %v2520
      %v2522 = vpop.f32.mrb[0].mxu0
      %2523 = vmatprep.mubr.bf16.mxu0 0
      %2524 = vmatmul.mubr.bf16.gmra.mrb[0].mxu0 %v2381
      %v2525 = vpop.f32.mrb[0].mxu0
      %v2526 = vadd.f32 0.0, %v2525
      %v2527 = vpop.f32.mrb[0].mxu0
      %v2528 = vpop.f32.mrb[0].mxu0
      %v2529 = vadd.f32 0.0, %v2528
      %v2530 = vpop.f32.mrb[0].mxu0
      %2531 = vmatprep.mubr.bf16.mxu0 0
      %2532 = vmatmul.mubr.bf16.gmra.mrb[0].mxu0 %v2385
      %v2533 = vpop.f32.mrb[0].mxu0
      %v2534 = vadd.f32 0.0, %v2533
      %v2535 = vpop.f32.mrb[0].mxu0
      %v2536 = vpop.f32.mrb[0].mxu0
      %v2537 = vadd.f32 0.0, %v2536
      %v2538 = vpop.f32.mrb[0].mxu0
      %2539 = vmatprep.mubr.bf16.mxu0 0
      %2540 = vmatmul.mubr.bf16.gmra.mrb[0].mxu0 %v2394
      %v2541 = vpop.f32.mrb[0].mxu0
      %v2542 = vadd.f32 0.0, %v2541
      %v2543 = vpop.f32.mrb[0].mxu0
      %v2544 = vpop.f32.mrb[0].mxu0
      %v2545 = vadd.f32 0.0, %v2544
      %v2546 = vpop.f32.mrb[0].mxu0
      %2547 = vdwg.mxu0
      %v2548 = vadd.f32 %v2312, %v2486
      %v2549 = vadd.f32 %v2313, %v2489
      %v2550 = vadd.f32 %v2314, %v2494
      %v2551 = vadd.f32 %v2315, %v2497
      %v2552 = vadd.f32 %v2316, %v2502
      %v2553 = vadd.f32 %v2317, %v2505
      %v2554 = vadd.f32 %v2318, %v2510
      %v2555 = vadd.f32 %v2319, %v2513
      %v2556 = vadd.f32 %v2320, %v2518
      %v2557 = vadd.f32 %v2321, %v2521
      %v2558 = vadd.f32 %v2322, %v2526
      %v2559 = vadd.f32 %v2323, %v2529
      %v2560 = vadd.f32 %v2324, %v2534
      %v2561 = vadd.f32 %v2325, %v2537
      %v2562 = vadd.f32 %v2326, %v2542
      %v2563 = vadd.f32 %v2327, %v2545
      %v2564 = vpack.c.bf16 %v2549, %v2548
      %v2565 = vpack.c.bf16 %v2551, %v2550
      %v2566 = vpack.c.bf16 %v2553, %v2552
      %v2567 = vpack.c.bf16 %v2555, %v2554
      %v2568 = vpack.c.bf16 %v2557, %v2556
      %v2569 = vpack.c.bf16 %v2559, %v2558
      %v2570 = vpack.c.bf16 %v2561, %v2560
      %v2571 = vpack.c.bf16 %v2563, %v2562
      %v2580 = vunpack.c.l.b16 %v2564
      %v2581 = vunpack.c.h.b16 %v2564
      %v2582 = vunpack.c.l.b16 %v2565
      %v2583 = vunpack.c.h.b16 %v2565
      %v2584 = vunpack.c.l.b16 %v2566
      %v2585 = vunpack.c.h.b16 %v2566
      %v2586 = vunpack.c.l.b16 %v2567
      %v2587 = vunpack.c.h.b16 %v2567
      %v2588 = vunpack.c.l.b16 %v2568
      %v2589 = vunpack.c.h.b16 %v2568
      %v2590 = vunpack.c.l.b16 %v2569
      %v2591 = vunpack.c.h.b16 %v2569
      %v2592 = vunpack.c.l.b16 %v2570
      %v2593 = vunpack.c.h.b16 %v2570
      %v2594 = vunpack.c.l.b16 %v2571
      %v2595 = vunpack.c.h.b16 %v2571
      %v2596 = vpack.c.b16 %v2580, %v2580
      %v2597 = vpack.c.b16 %v2581, %v2581
      %v2598 = vpack.c.b16 %v2582, %v2582
      %v2599 = vpack.c.b16 %v2583, %v2583
      %v2600 = vpack.c.b16 %v2584, %v2584
      %v2601 = vpack.c.b16 %v2585, %v2585
      %v2602 = vpack.c.b16 %v2586, %v2586
      %v2603 = vpack.c.b16 %v2587, %v2587
      %v2604 = vpack.c.b16 %v2588, %v2588
      %v2605 = vpack.c.b16 %v2589, %v2589
      %v2606 = vpack.c.b16 %v2590, %v2590
      %v2607 = vpack.c.b16 %v2591, %v2591
      %v2608 = vpack.c.b16 %v2592, %v2592
      %v2609 = vpack.c.b16 %v2593, %v2593
      %v2610 = vpack.c.b16 %v2594, %v2594
      %v2611 = vpack.c.b16 %v2595, %v2595
      %2628 = vst [vmem:[%s226] sm:$0xf] %v2596
      %2629 = vst [vmem:[%s226 + $0x4] sm:$0xf] %v2597
      %2630 = vst [vmem:[%s226 + $0x8] sm:$0xf] %v2598
      %2631 = vst [vmem:[%s226 + $0xc] sm:$0xf] %v2599
      %2632 = vst [vmem:[%s226 + $0x10] sm:$0xf] %v2600
      %2633 = vst [vmem:[%s226 + $0x14] sm:$0xf] %v2601
      %2634 = vst [vmem:[%s226 + $0x18] sm:$0xf] %v2602
      %2635 = vst [vmem:[%s226 + $0x1c] sm:$0xf] %v2603
      %2636 = vst [vmem:[%s226 + $0x20] sm:$0xf] %v2604
      %2637 = vst [vmem:[%s226 + $0x24] sm:$0xf] %v2605
      %2638 = vst [vmem:[%s226 + $0x28] sm:$0xf] %v2606
      %2639 = vst [vmem:[%s226 + $0x2c] sm:$0xf] %v2607
      %2640 = vst [vmem:[%s226 + $0x30] sm:$0xf] %v2608
      %2641 = vst [vmem:[%s226 + $0x34] sm:$0xf] %v2609
      %2642 = vst [vmem:[%s226 + $0x38] sm:$0xf] %v2610
      %2643 = vst [vmem:[%s226 + $0x3c] sm:$0xf] %v2611
      %v2644 = vld [vmem:[%s220] sm:$0xff]
      %v2645 = vld [vmem:[%s220 + $0x8] sm:$0xff]
      %v2646 = vld [vmem:[%s220 + $0x10] sm:$0xff]
      %v2647 = vld [vmem:[%s220 + $0x18] sm:$0xff]
      %v2648 = vld [vmem:[%s220 + $0x20] sm:$0xff]
      %v2649 = vld [vmem:[%s220 + $0x28] sm:$0xff]
      %v2650 = vld [vmem:[%s220 + $0x30] sm:$0xff]
      %v2651 = vld [vmem:[%s220 + $0x38] sm:$0xff]
      %v2652 = vld [vmem:[%s220 + $0x40] sm:$0xff]
      %v2653 = vld [vmem:[%s220 + $0x48] sm:$0xff]
      %v2654 = vld [vmem:[%s220 + $0x50] sm:$0xff]
      %v2655 = vld [vmem:[%s220 + $0x58] sm:$0xff]
      %v2656 = vld [vmem:[%s220 + $0x60] sm:$0xff]
      %v2657 = vld [vmem:[%s220 + $0x68] sm:$0xff]
      %v2658 = vld [vmem:[%s220 + $0x70] sm:$0xff]
      %v2659 = vld [vmem:[%s220 + $0x78] sm:$0xff]
      %2661 = vset.pattern.permute.xlu0 0
      %2662 = vperm.xlu0 %2661, %v2644
      %v2663 = vpop.permute.xlu0 %2662
      %2666 = vset.pattern.permute.xlu0 0
      %2667 = vperm.xlu0 %2666, %v2645
      %v2668 = vpop.permute.xlu0 %2667
      %2671 = vset.pattern.permute.xlu0 0
      %2672 = vperm.xlu0 %2671, %v2646
      %v2673 = vpop.permute.xlu0 %2672
      %2676 = vset.pattern.permute.xlu0 0
      %2677 = vperm.xlu0 %2676, %v2647
      %v2678 = vpop.permute.xlu0 %2677
      %2681 = vset.pattern.permute.xlu0 0
      %2682 = vperm.xlu0 %2681, %v2648
      %v2683 = vpop.permute.xlu0 %2682
      %2686 = vset.pattern.permute.xlu0 0
      %2687 = vperm.xlu0 %2686, %v2649
      %v2688 = vpop.permute.xlu0 %2687
      %2691 = vset.pattern.permute.xlu0 0
      %2692 = vperm.xlu0 %2691, %v2650
      %v2693 = vpop.permute.xlu0 %2692
      %2696 = vset.pattern.permute.xlu0 0
      %2697 = vperm.xlu0 %2696, %v2651
      %v2698 = vpop.permute.xlu0 %2697
      %2701 = vset.pattern.permute.xlu0 0
      %2702 = vperm.xlu0 %2701, %v2652
      %v2703 = vpop.permute.xlu0 %2702
      %2706 = vset.pattern.permute.xlu0 0
      %2707 = vperm.xlu0 %2706, %v2653
      %v2708 = vpop.permute.xlu0 %2707
      %2711 = vset.pattern.permute.xlu0 0
      %2712 = vperm.xlu0 %2711, %v2654
      %v2713 = vpop.permute.xlu0 %2712
      %2716 = vset.pattern.permute.xlu0 0
      %2717 = vperm.xlu0 %2716, %v2655
      %v2718 = vpop.permute.xlu0 %2717
      %2721 = vset.pattern.permute.xlu0 0
      %2722 = vperm.xlu0 %2721, %v2656
      %v2723 = vpop.permute.xlu0 %2722
      %2726 = vset.pattern.permute.xlu0 0
      %2727 = vperm.xlu0 %2726, %v2657
      %v2728 = vpop.permute.xlu0 %2727
      %2731 = vset.pattern.permute.xlu0 0
      %2732 = vperm.xlu0 %2731, %v2658
      %v2733 = vpop.permute.xlu0 %2732
      %2736 = vset.pattern.permute.xlu0 0
      %2737 = vperm.xlu0 %2736, %v2659
      %v2738 = vpop.permute.xlu0 %2737
      %v2740 = vmul.f32 %v2548, %v2663
      %v2741 = vmul.f32 %v2549, %v2668
      %v2742 = vmul.f32 %v2550, %v2673
      %v2743 = vmul.f32 %v2551, %v2678
      %v2744 = vmul.f32 %v2552, %v2683
      %v2745 = vmul.f32 %v2553, %v2688
      %v2746 = vmul.f32 %v2554, %v2693
      %v2747 = vmul.f32 %v2555, %v2698
      %v2748 = vmul.f32 %v2556, %v2703
      %v2749 = vmul.f32 %v2557, %v2708
      %v2750 = vmul.f32 %v2558, %v2713
      %v2751 = vmul.f32 %v2559, %v2718
      %v2752 = vmul.f32 %v2560, %v2723
      %v2753 = vmul.f32 %v2561, %v2728
      %v2754 = vmul.f32 %v2562, %v2733
      %v2755 = vmul.f32 %v2563, %v2738
      %v2756 = vadd.f32 %v2740, %v2741
      %v2757 = vadd.f32 %v2756, %v2742
      %v2758 = vadd.f32 %v2757, %v2743
      %v2759 = vadd.f32 %v2758, %v2744
      %v2760 = vadd.f32 %v2759, %v2745
      %v2761 = vadd.f32 %v2760, %v2746
      %v2762 = vadd.f32 %v2761, %v2747
      %v2763 = vadd.f32 %v2762, %v2748
      %v2764 = vadd.f32 %v2763, %v2749
      %v2765 = vadd.f32 %v2764, %v2750
      %v2766 = vadd.f32 %v2765, %v2751
      %v2767 = vadd.f32 %v2766, %v2752
      %v2768 = vadd.f32 %v2767, %v2753
      %v2769 = vadd.f32 %v2768, %v2754
      %v2770 = vadd.f32 %v2769, %v2755
      %v2771 = vrot.slane %v2770, 4
      %v2772 = vadd.f32 %v2770, %v2771
      %v2773 = vrot.slane %v2772, 2
      %v2774 = vadd.f32 %v2772, %v2773
      %v2775 = vrot.slane %v2774, 1
      %v2776 = vadd.f32 %v2774, %v2775
      %v2777 = vmul.f32 %v2740, %v2548
      %v2778 = vmul.f32 %v2741, %v2549
      %v2779 = vmul.f32 %v2742, %v2550
      %v2780 = vmul.f32 %v2743, %v2551
      %v2781 = vmul.f32 %v2744, %v2552
      %v2782 = vmul.f32 %v2745, %v2553
      %v2783 = vmul.f32 %v2746, %v2554
      %v2784 = vmul.f32 %v2747, %v2555
      %v2785 = vmul.f32 %v2748, %v2556
      %v2786 = vmul.f32 %v2749, %v2557
      %v2787 = vmul.f32 %v2750, %v2558
      %v2788 = vmul.f32 %v2751, %v2559
      %v2789 = vmul.f32 %v2752, %v2560
      %v2790 = vmul.f32 %v2753, %v2561
      %v2791 = vmul.f32 %v2754, %v2562
      %v2792 = vmul.f32 %v2755, %v2563
      %v2793 = vadd.f32 %v2777, %v2778
      %v2794 = vadd.f32 %v2793, %v2779
      %v2795 = vadd.f32 %v2794, %v2780
      %v2796 = vadd.f32 %v2795, %v2781
      %v2797 = vadd.f32 %v2796, %v2782
      %v2798 = vadd.f32 %v2797, %v2783
      %v2799 = vadd.f32 %v2798, %v2784
      %v2800 = vadd.f32 %v2799, %v2785
      %v2801 = vadd.f32 %v2800, %v2786
      %v2802 = vadd.f32 %v2801, %v2787
      %v2803 = vadd.f32 %v2802, %v2788
      %v2804 = vadd.f32 %v2803, %v2789
      %v2805 = vadd.f32 %v2804, %v2790
      %v2806 = vadd.f32 %v2805, %v2791
      %v2807 = vadd.f32 %v2806, %v2792
      %v2808 = vrot.slane %v2807, 4
      %v2809 = vadd.f32 %v2807, %v2808
      %v2810 = vrot.slane %v2809, 2
      %v2811 = vadd.f32 %v2809, %v2810
      %v2812 = vrot.slane %v2811, 1
      %v2813 = vadd.f32 %v2811, %v2812
      %2814 = vst [vmem:[%s231] sm:$0x1] %v2776
      %2815 = vst [vmem:[%s231 + $0x1] sm:$0x1] %v2813
      %2816 = vst [vmem:[%s231 + $0x2] sm:$0x3f] 0.0
      %s2817 = smul.u32 16, %s16
      %p2818 = scmp.lt.s32.totalorder %s2817, 31
      %s2819 = scalar_select %p2818, %s2817, 31
      %s2820 = smul.addr %s2819, 4
      %s2821 = scalar_lea.vmem %s3, %s2820
      %p2822 = scmp.lt.s32.totalorder %s16, 1
      %s2823 = scalar_select %p2822, %s16, 1
      %s2824 = smul.addr %s2823, 8
      %s2825 = scalar_lea.vmem %s4, %s2824
      // Predicated region
      $region33: #{basic_block.7} parent=31 // pred_check
        %p2826 = pneg %p107
      $region34: #{basic_block.7} parent=31 // pred_check_branch
        %2828 = sbr.rel (%p2826) target = $region36
      $region35: #{basic_block.7} parent=31 // pred_region
        %s2829 = smul.u32 16, %s16
      $region36: #{basic_block.7} parent=31 // pred_fallthru
        _
      // Predicated region
      $region37: #{basic_block.7} parent=31 // pred_check
        %p2830 = pneg %p133
      $region38: #{basic_block.7} parent=31 // pred_check_branch
        %2832 = sbr.rel (%p2830) target = $region40
      $region39: #{basic_block.7} parent=31 // pred_region
        _
      $region40: #{basic_block.7} parent=31 // pred_fallthru
        _
    $region32: #{basic_block.7} parent=5 // pred_fallthru
      _
    %p2833 = scmp.le.s32.totalorder 2, %s11
    // Predicated region
    $region41: #{basic_block.7} parent=5 // pred_check
      %p2834 = pneg %p2833
    $region42: #{basic_block.7} parent=5 // pred_check_branch
      %2836 = sbr.rel (%p2834) target = $region44
    $region43: #{basic_block.7} parent=5 // pred_region
      %s2837 = ssub.s32 %s11, 2
      // Predicated region
      $region45: #{basic_block.7} parent=43 // pred_check
        %p2838 = pneg %p113
      $region46: #{basic_block.7} parent=43 // pred_check_branch
        %2840 = sbr.rel (%p2838) target = $region48
      $region47: #{basic_block.7} parent=43 // pred_region
        %s2841 = smul.u32 16, %s17
        %p2842 = scmp.lt.s32.totalorder %s2841, 31
        %s2843 = scalar_select %p2842, %s2841, 31
        %s2844 = smul.addr %s2843, 4
        %s2845 = scalar_lea.vmem %s3, %s2844
      $region48: #{basic_block.7} parent=43 // pred_fallthru
        _
      // Predicated region
      $region49: #{basic_block.7} parent=43 // pred_check
        %p2846 = pneg %p139
      $region50: #{basic_block.7} parent=43 // pred_check_branch
        %2848 = sbr.rel (%p2846) target = $region52
      $region51: #{basic_block.7} parent=43 // pred_region
        %p2849 = scmp.lt.s32.totalorder %s17, 1
        %s2850 = scalar_select %p2849, %s17, 1
        %s2851 = smul.addr %s2850, 8
        %s2852 = scalar_lea.vmem %s4, %s2851
      $region52: #{basic_block.7} parent=43 // pred_fallthru
        _
    $region44: #{basic_block.7} parent=5 // pred_fallthru
      _
  $region6: #{basic_block.7} parent=0 // loop_footer
    %s15 = sadd.s32 1, %s11
  $region7: #{basic_block.7} parent=0 // loop_footer_branch
    %10 = sbr.rel target = $region3
  $region8: #{basic_block.7} parent=0 // loop_exit
    _

</llo_original>
